<compile_context>
chip_gen: v7x
topology: tpu7x:2x2x1
jax: 0.10.0
libtpu: 0.0.40
codegen_flags: <defaults>
</compile_context>

<pallas_src>
import functools

import jax
import jax.numpy as jnp
from jax.experimental import pallas as pl
from jax.experimental.pallas import tpu as pltpu

MAX_LEN = 20          # K (in_features)
OUT_FEATURES = 52739  # N (out_features)
TN = 13312            # lane tile along N (104 * 128) -> cdiv(52739, 13312) = 4 steps


def _linear_kernel(x_ref, wt_ref, o_ref):
    # x_ref : (B, K+1)   x with a trailing ones column (bias folded into W^T)
    # wt_ref: (K+1, TN)  one contiguous lane tile of [W^T ; bias]
    # o_ref : (B, TN)    last tile is store-masked against the (B, N) output
    o_ref[...] = jnp.dot(
        x_ref[...], wt_ref[...], preferred_element_type=jnp.float32)


def prepare_params(weight, bias, *, tn=TN):
    """One-time parameter packing (setup time, NOT per forward call).

    weight: (N, K) float32  (PyTorch nn.Linear layout)
    bias:   (N,)   float32
    Returns wt_tiles of shape (n_tiles, K+1, tn):
      * W^T pre-transposed and zero-padded along N to n_tiles * tn,
      * bias appended as row K (matmul against an x ones-column applies it),
      * laid out tile-contiguously so each grid step's weight DMA is one
        contiguous block.
    Padded columns are never written to the output (masked partial block).
    """
    N, K = weight.shape
    n_tiles = pl.cdiv(N, tn)
    n_pad = n_tiles * tn
    wt_aug = jnp.zeros((K + 1, n_pad), jnp.float32)
    wt_aug = wt_aug.at[:K, :N].set(weight.T.astype(jnp.float32))
    wt_aug = wt_aug.at[K, :N].set(bias.astype(jnp.float32))
    # (K+1, n_tiles, tn) -> (n_tiles, K+1, tn): tile j == wt_aug[:, j*tn:(j+1)*tn]
    wt_tiles = wt_aug.reshape(K + 1, n_tiles, tn).transpose(1, 0, 2)
    return wt_tiles


@functools.partial(jax.jit, static_argnames=("n",))
def linear_pallas(x, wt_tiles, *, n=OUT_FEATURES):
    """y = x @ W^T + bias  == Model.forward(x) = fc(x.float()).

    x       : (B, K) any float dtype (cast to f32, matching x.float())
    wt_tiles: (n_tiles, K+1, tn) float32 from prepare_params
    returns (B, n) float32
    """
    B, K = x.shape
    n_tiles, k_aug, tn = wt_tiles.shape
    assert k_aug == K + 1
    assert n_tiles == pl.cdiv(n, tn)

    # x.float() plus a ones column so the appended bias row of W^T applies it.
    x_aug = jnp.concatenate(
        [x.astype(jnp.float32), jnp.ones((B, 1), jnp.float32)], axis=1)

    cost = pl.CostEstimate(
        flops=2 * B * k_aug * n,
        transcendentals=0,
        bytes_accessed=B * k_aug * 4 + n_tiles * k_aug * tn * 4 + B * n * 4,
    )

    return pl.pallas_call(
        _linear_kernel,
        out_shape=jax.ShapeDtypeStruct((B, n), jnp.float32),
        grid_spec=pltpu.PrefetchScalarGridSpec(
            num_scalar_prefetch=0,
            grid=(n_tiles,),
            in_specs=[
                # x: full (B, K+1) block, resident across all N tiles.
                pl.BlockSpec((B, k_aug), lambda j: (0, 0)),
                # W^T: one contiguous (K+1, tn) tile per grid step.
                pl.BlockSpec((pl.Squeezed(), k_aug, tn), lambda j: (j, 0, 0)),
            ],
            # Output is unpadded (B, N); Pallas masks the partial last block.
            out_specs=pl.BlockSpec((B, tn), lambda j: (0, j)),
        ),
        compiler_params=pltpu.CompilerParams(
            dimension_semantics=("parallel",),
        ),
        cost_estimate=cost,
    )(x_aug, wt_tiles)


if __name__ == "__main__":
    key = jax.random.PRNGKey(0)
    kx, kw, kb = jax.random.split(key, 3)

    B = 4
    x = jax.random.normal(kx, (B, MAX_LEN), jnp.float32)

    # Deterministic nn.Linear(20, 52739)-style params (synthetic).
    bound = 1.0 / jnp.sqrt(jnp.float32(MAX_LEN))
    weight = jax.random.uniform(
        kw, (OUT_FEATURES, MAX_LEN), jnp.float32, -bound, bound)
    bias = jax.random.uniform(kb, (OUT_FEATURES,), jnp.float32, -bound, bound)

    # One-time packing (hoisted out of the forward path).
    wt_tiles = jax.block_until_ready(prepare_params(weight, bias))

    y = linear_pallas(x, wt_tiles)
    y = jax.block_until_ready(y)

    # Cross-check against plain JAX reference.
    y_ref = x @ weight.T + bias[None, :]
    assert y.shape == (B, OUT_FEATURES)
    assert jnp.allclose(y, y_ref, atol=1e-4, rtol=1e-4)

    print("KERNEL_OK")
</pallas_src>

<mosaic_0001>
module attributes {stable_mosaic.version = 11 : i64} {
  func.func @_linear_kernel(%arg0: i32, %arg1: memref<4x21xf32, #tpu.memory_space<vmem>>, %arg2: memref<1x21x13312xf32, #tpu.memory_space<vmem>>, %arg3: memref<4x13312xf32, #tpu.memory_space<vmem>>) attributes {dimension_semantics = [#tpu.dimension_semantics<parallel>], iteration_bounds = array<i64: 4>, scalar_prefetch = 0 : i64, scratch_operands = 0 : i64, tpu.core_type = #tpu.core_type<tc>, window_params = [{pipeline_mode = #tpu.pipeline_mode<synchronous>, transform_indices = @transform_0, window_bounds = array<i64: 4, 21>}, {transform_indices = @transform_1, window_bounds = array<i64: 1, 21, 13312>}, {transform_indices = @transform_2, window_bounds = array<i64: 4, 13312>}]} {
    %c0 = arith.constant 0 : index
    %c0_0 = arith.constant 0 : index
    %0 = vector.load %arg1[%c0, %c0_0] : memref<4x21xf32, #tpu.memory_space<vmem>>, vector<4x21xf32>
    %c0_1 = arith.constant 0 : index
    %c0_2 = arith.constant 0 : index
    %c0_3 = arith.constant 0 : index
    %1 = vector.load %arg2[%c0_1, %c0_2, %c0_3] : memref<1x21x13312xf32, #tpu.memory_space<vmem>>, vector<1x21x13312xf32>
    %2 = vector.shape_cast %1 : vector<1x21x13312xf32> to vector<21x13312xf32>
    %cst = arith.constant dense<0.000000e+00> : vector<4x13312xf32>
    %3 = tpu.matmul %0, %2, %cst {dimension_numbers = #tpu.dot_dimension_numbers<[1], [0], [0], [1], [0, 0, 1, 1], [], []>} : vector<4x21xf32>, vector<21x13312xf32>, vector<4x13312xf32> -> vector<4x13312xf32>
    %c0_4 = arith.constant 0 : index
    %c0_5 = arith.constant 0 : index
    %4 = vector.load %arg3[%c0_4, %c0_5] : memref<4x13312xf32, #tpu.memory_space<vmem>>, vector<4x13312xf32>
    tpu.vector_store %arg3[%c0_4, %c0_5], %3 {strides = array<i32>} : memref<4x13312xf32, #tpu.memory_space<vmem>>, vector<4x13312xf32>,
    return
  }
  func.func @transform_0(%arg0: i32) -> (i32, i32) {
    %c0_i32 = arith.constant 0 : i32
    %c0_i32_0 = arith.constant 0 : i32
    %c0_i32_1 = arith.constant 0 : i32
    return %c0_i32, %c0_i32_0 : i32, i32
  }
  func.func @transform_1(%arg0: i32) -> (i32, i32, i32) {
    %c0_i32 = arith.constant 0 : i32
    %c0_i32_0 = arith.constant 0 : i32
    %c0_i32_1 = arith.constant 0 : i32
    return %arg0, %c0_i32, %c0_i32_0 : i32, i32, i32
  }
  func.func @transform_2(%arg0: i32) -> (i32, i32) {
    %c0_i32 = arith.constant 0 : i32
    %c0_i32_0 = arith.constant 0 : i32
    return %c0_i32, %arg0 : i32, i32
  }
}

</mosaic_0001>

<llo_original>
// kernel: linear_pallas.1
$region0: #{linear_pallas.1}
  #allocation0 [shape = 'u32[]', space=smem, size = 0x4, offset = 0x4, fixed_abs, tag = 'smem constant byte address 0x4 - core index']
  #allocation1 [shape = 'u32[144,128]{1,0:T(1,128)}', space=vmem, size = 0x12000, scoped, tag = 'internal scratch']
  %s0 = inlined_call_operand.vmem [shape: f32[4,21], index: 0, kind: input, shape index: {}]
  %s1 = inlined_call_operand.vmem [shape: f32[4,21,13312], index: 1, kind: input, shape index: {}]
  %s2 = inlined_call_operand.hbm [shape: f32[4,52739], index: 2, kind: output, shape index: {}]
  %s3 = sld [smem:[#allocation0]]
  $region41: #{linear_pallas.1} parent=0
    _
  %s5 = ssub.s32 1, %s3
  %s6 = scalar_select 0, %s5, %s3
  $region1: #{linear_pallas.1} parent=0
    #allocation2 [shape = 'u8[425984]{0}', space=vmem, size = 0x68000, scoped, tag = 'output window, operand 0']
    #allocation3 [shape = 's32[2]{0}', space=sflag, size = 0x8, scoped, tag = 'scoped memory for linear_pallas.1']
    %7 = vsyncpa [#allocation3], 0
    %s8 = scalar_lea.sflag [#allocation3], 1
    %9 = vsyncpa %s8, 0
    loop: start=0, step=1, limit=6
    $region2: #{linear_pallas.1} parent=1 // loop_pre_header
      _
    $region3: #{linear_pallas.1} parent=1 // loop_header
      %s11 = sphi 0, %s15
      %p12 = scmp.ge.s32.totalorder %s11, 6
      %s19 = sphi 0, %s19
      %s21 = sphi 0, %s19
      %s22 = sphi 0, %s21
      %s36 = sphi 0, %s22
      %s42 = sphi 0, %s44
      %s45 = sphi 0, %s42
      %s46 = sphi 0, %s45
      %s62 = sphi 0, %s46
      %s68 = sphi 0, %s70
      %s71 = sphi 0, %s68
      %s72 = sphi 0, %s71
      %s88 = sphi 0, %s72
    $region4: #{linear_pallas.1} parent=1 // loop_header_branch
      %14 = sbr.rel (%p12) target = $region8
    $region5: #{linear_pallas.1} parent=1 // loop_body
      %s16 = ssub.s32 %s11, 1
      %s17 = ssub.s32 %s11, 2
      %s18 = sadd.s32 %s11, 1
      %s20 = sadd.s32 %s19, 1
      %p23 = scmp.eq.s32.totalorder %s11, 3
      %p24 = scmp.ne.s32.totalorder %s19, %s21
      %p25 = scmp.eq.s32.totalorder %s11, 0
      %p26 = por %p24, %p25
      %p27 = scmp.ne.s32.totalorder %s19, %s21
      %p28 = scmp.eq.s32.totalorder %s16, 3
      %p29 = por %p27, %p28
      %p30 = scmp.ne.s32.totalorder %s21, %s22
      %p31 = scmp.eq.s32.totalorder %s16, 0
      %p32 = por %p30, %p31
      %p33 = scmp.ne.s32.totalorder %s21, %s22
      %p34 = scmp.eq.s32.totalorder %s17, 3
      %p35 = por %p33, %p34
      %p37 = scmp.ne.s32.totalorder %s22, %s36
      %p38 = scmp.eq.s32.totalorder %s17, 0
      %p39 = por %p37, %p38
      %s40 = ssub.s32 %s11, %s18
      %p41 = scmp.eq.s32.totalorder %s40, 0
      %s43 = sadd.s32 %s42, 1
      %s44 = scalar_select %p41, %s42, %s43
      %p47 = pneg %p41
      %p48 = scmp.eq.s32.totalorder %s11, 3
      %p49 = por %p47, %p48
      %p50 = scmp.ne.s32.totalorder %s42, %s45
      %p51 = scmp.eq.s32.totalorder %s11, 0
      %p52 = por %p50, %p51
      %p53 = scmp.ne.s32.totalorder %s42, %s45
      %p54 = scmp.eq.s32.totalorder %s16, 3
      %p55 = por %p53, %p54
      %p56 = scmp.ne.s32.totalorder %s45, %s46
      %p57 = scmp.eq.s32.totalorder %s16, 0
      %p58 = por %p56, %p57
      %p59 = scmp.ne.s32.totalorder %s45, %s46
      %p60 = scmp.eq.s32.totalorder %s17, 3
      %p61 = por %p59, %p60
      %p63 = scmp.ne.s32.totalorder %s46, %s62
      %p64 = scmp.eq.s32.totalorder %s17, 0
      %p65 = por %p63, %p64
      %s66 = ssub.s32 %s11, %s18
      %p67 = scmp.eq.s32.totalorder %s66, 0
      %s69 = sadd.s32 %s68, 1
      %s70 = scalar_select %p67, %s68, %s69
      %p73 = pneg %p67
      %p74 = scmp.eq.s32.totalorder %s11, 3
      %p75 = por %p73, %p74
      %p76 = scmp.ne.s32.totalorder %s68, %s71
      %p77 = scmp.eq.s32.totalorder %s11, 0
      %p78 = por %p76, %p77
      %p79 = scmp.ne.s32.totalorder %s68, %s71
      %p80 = scmp.eq.s32.totalorder %s16, 3
      %p81 = por %p79, %p80
      %p82 = scmp.ne.s32.totalorder %s71, %s72
      %p83 = scmp.eq.s32.totalorder %s16, 0
      %p84 = por %p82, %p83
      %p85 = scmp.ne.s32.totalorder %s71, %s72
      %p86 = scmp.eq.s32.totalorder %s17, 3
      %p87 = por %p85, %p86
      %p89 = scmp.ne.s32.totalorder %s72, %s88
      %p90 = scmp.eq.s32.totalorder %s17, 0
      %p91 = por %p89, %p90
      %p92 = scmp.le.s32.totalorder 1, %s11
      %p93 = scmp.lt.s32.totalorder %s11, 5
      %p94 = pnand %p92, %p93
      %p95 = pneg %p94
      // Predicated region
      $region9: #{linear_pallas.1} parent=5 // pred_check
        _
      $region10: #{linear_pallas.1} parent=5 // pred_check_branch
        %97 = sbr.rel (%p94) target = $region12
      $region11: #{linear_pallas.1} parent=5 // pred_region
        %s98 = ssub.s32 %s11, 1
        // Predicated region
        $region13: #{linear_pallas.1} parent=11 // pred_check
          %p99 = pneg %p32
        $region14: #{linear_pallas.1} parent=11 // pred_check_branch
          %101 = sbr.rel (%p99) target = $region16
        $region15: #{linear_pallas.1} parent=11 // pred_region
          _
        $region16: #{linear_pallas.1} parent=11 // pred_fallthru
          _
      $region12: #{linear_pallas.1} parent=5 // pred_fallthru
        _
      %p102 = scmp.lt.s32.totalorder %s11, 4
      // Predicated region
      $region17: #{linear_pallas.1} parent=5 // pred_check
        %p103 = pneg %p102
      $region18: #{linear_pallas.1} parent=5 // pred_check_branch
        %105 = sbr.rel (%p103) target = $region20
      $region19: #{linear_pallas.1} parent=5 // pred_region
        // Predicated region
        $region21: #{linear_pallas.1} parent=19 // pred_check
          %p106 = pneg %p52
        $region22: #{linear_pallas.1} parent=19 // pred_check_branch
          %108 = sbr.rel (%p106) target = $region24
        $region23: #{linear_pallas.1} parent=19 // pred_region
          %p109 = scmp.lt.s32.totalorder %s11, 3
          %s110 = scalar_select %p109, %s11, 3
          %s111 = smul.addr %s110, 312
          %s112 = smul.addr %s111, 8
          %s113 = scalar_lea.vmem %s1, %s112
        $region24: #{linear_pallas.1} parent=19 // pred_fallthru
          _
      $region20: #{linear_pallas.1} parent=5 // pred_fallthru
        _
      %p114 = scmp.le.s32.totalorder 1, %s11
      %p115 = scmp.lt.s32.totalorder %s11, 5
      %p116 = pnand %p114, %p115
      %p117 = pneg %p116
      // Predicated region
      $region25: #{linear_pallas.1} parent=5 // pred_check
        _
      $region26: #{linear_pallas.1} parent=5 // pred_check_branch
        %119 = sbr.rel (%p116) target = $region28
      $region27: #{linear_pallas.1} parent=5 // pred_region
        %s120 = ssub.s32 %s11, 1
        %p121 = pneg %p32
        %p122 = pneg %p29
        %p123 = scmp.lt.s32.totalorder %s16, 3
        %s124 = scalar_select %p123, %s16, 3
        %s125 = smul.addr %s124, 312
        %s126 = smul.addr %s125, 8
        %s127 = scalar_lea.vmem %s1, %s126
        %p128 = pneg %p58
        %p129 = pneg %p55
        %p130 = pneg %p84
        %p131 = pneg %p81
        %s132 = sand.u32 %s71, 1
        %s133 = scalar_lea.sflag [#allocation3], %s132
        %s134 = sand.u32 %s71, 1
        %s135 = smul.addr %s134, 416
        %s136 = scalar_lea.vmem [#allocation2], %s135
        %p137 = scmp.lt.s32.totalorder %s16, 3
        %s138 = scalar_select %p137, %s16, 3
        %s139 = smul.addr %s138, 312
        %s140 = smul.addr %s139, 8
        %s141 = scalar_lea.vmem %s1, %s140
        %s142 = smul.u32 104, %s16
        %s143 = ssub.s32 413, %s142
        %p144 = scmp.lt.s32.totalorder %s143, 104
        %s145 = scalar_select %p144, %s143, 104
        %s146 = smul.u32 64, %s145
        %v147 = vld [vmem:[%s0] sm:$0xf]
        %v148 = vld [vmem:[%s141] sm:$0xff]
        %v149 = vld [vmem:[%s141 + $0x8] sm:$0xff]
        %v150 = vld [vmem:[%s141 + $0x10] sm:$0xff]
        %v151 = vld [vmem:[%s141 + $0x18] sm:$0xff]
        %v152 = vld [vmem:[%s141 + $0x20] sm:$0xff]
        %v153 = vld [vmem:[%s141 + $0x28] sm:$0xff]
        %v154 = vld [vmem:[%s141 + $0x30] sm:$0xff]
        %v155 = vld [vmem:[%s141 + $0x38] sm:$0xff]
        %v156 = vld [vmem:[%s141 + $0x40] sm:$0xff]
        %v157 = vld [vmem:[%s141 + $0x48] sm:$0xff]
        %v158 = vld [vmem:[%s141 + $0x50] sm:$0xff]
        %v159 = vld [vmem:[%s141 + $0x58] sm:$0xff]
        %v160 = vld [vmem:[%s141 + $0x60] sm:$0xff]
        %v161 = vld [vmem:[%s141 + $0x68] sm:$0xff]
        %v162 = vld [vmem:[%s141 + $0x70] sm:$0xff]
        %v163 = vld [vmem:[%s141 + $0x78] sm:$0xff]
        %v164 = vld [vmem:[%s141 + $0x80] sm:$0xff]
        %v165 = vld [vmem:[%s141 + $0x88] sm:$0xff]
        %v166 = vld [vmem:[%s141 + $0x90] sm:$0xff]
        %v167 = vld [vmem:[%s141 + $0x98] sm:$0xff]
        %v168 = vld [vmem:[%s141 + $0xa0] sm:$0xff]
        %v169 = vld [vmem:[%s141 + $0xa8] sm:$0xff]
        %v170 = vld [vmem:[%s141 + $0xb0] sm:$0xff]
        %v171 = vld [vmem:[%s141 + $0xb8] sm:$0xff]
        %v172 = vld [vmem:[%s141 + $0xc0] sm:$0xff]
        %v173 = vld [vmem:[%s141 + $0xc8] sm:$0xff]
        %v174 = vld [vmem:[%s141 + $0xd0] sm:$0xff]
        %v175 = vld [vmem:[%s141 + $0xd8] sm:$0xff]
        %v176 = vld [vmem:[%s141 + $0xe0] sm:$0xff]
        %v177 = vld [vmem:[%s141 + $0xe8] sm:$0xff]
        %v178 = vld [vmem:[%s141 + $0xf0] sm:$0xff]
        %v179 = vld [vmem:[%s141 + $0xf8] sm:$0xff]
        %v180 = vld [vmem:[%s141 + $0x100] sm:$0xff]
        %v181 = vld [vmem:[%s141 + $0x108] sm:$0xff]
        %v182 = vld [vmem:[%s141 + $0x110] sm:$0xff]
        %v183 = vld [vmem:[%s141 + $0x118] sm:$0xff]
        %v184 = vld [vmem:[%s141 + $0x120] sm:$0xff]
        %v185 = vld [vmem:[%s141 + $0x128] sm:$0xff]
        %v186 = vld [vmem:[%s141 + $0x130] sm:$0xff]
        %v187 = vld [vmem:[%s141 + $0x138] sm:$0xff]
        %v188 = vld [vmem:[%s141 + $0x140] sm:$0xff]
        %v189 = vld [vmem:[%s141 + $0x148] sm:$0xff]
        %v190 = vld [vmem:[%s141 + $0x150] sm:$0xff]
        %v191 = vld [vmem:[%s141 + $0x158] sm:$0xff]
        %v192 = vld [vmem:[%s141 + $0x160] sm:$0xff]
        %v193 = vld [vmem:[%s141 + $0x168] sm:$0xff]
        %v194 = vld [vmem:[%s141 + $0x170] sm:$0xff]
        %v195 = vld [vmem:[%s141 + $0x178] sm:$0xff]
        %v196 = vld [vmem:[%s141 + $0x180] sm:$0xff]
        %v197 = vld [vmem:[%s141 + $0x188] sm:$0xff]
        %v198 = vld [vmem:[%s141 + $0x190] sm:$0xff]
        %v199 = vld [vmem:[%s141 + $0x198] sm:$0xff]
        %v200 = vld [vmem:[%s141 + $0x1a0] sm:$0xff]
        %v201 = vld [vmem:[%s141 + $0x1a8] sm:$0xff]
        %v202 = vld [vmem:[%s141 + $0x1b0] sm:$0xff]
        %v203 = vld [vmem:[%s141 + $0x1b8] sm:$0xff]
        %v204 = vld [vmem:[%s141 + $0x1c0] sm:$0xff]
        %v205 = vld [vmem:[%s141 + $0x1c8] sm:$0xff]
        %v206 = vld [vmem:[%s141 + $0x1d0] sm:$0xff]
        %v207 = vld [vmem:[%s141 + $0x1d8] sm:$0xff]
        %v208 = vld [vmem:[%s141 + $0x1e0] sm:$0xff]
        %v209 = vld [vmem:[%s141 + $0x1e8] sm:$0xff]
        %v210 = vld [vmem:[%s141 + $0x1f0] sm:$0xff]
        %v211 = vld [vmem:[%s141 + $0x1f8] sm:$0xff]
        %v212 = vld [vmem:[%s141 + $0x200] sm:$0xff]
        %v213 = vld [vmem:[%s141 + $0x208] sm:$0xff]
        %v214 = vld [vmem:[%s141 + $0x210] sm:$0xff]
        %v215 = vld [vmem:[%s141 + $0x218] sm:$0xff]
        %v216 = vld [vmem:[%s141 + $0x220] sm:$0xff]
        %v217 = vld [vmem:[%s141 + $0x228] sm:$0xff]
        %v218 = vld [vmem:[%s141 + $0x230] sm:$0xff]
        %v219 = vld [vmem:[%s141 + $0x238] sm:$0xff]
        %v220 = vld [vmem:[%s141 + $0x240] sm:$0xff]
        %v221 = vld [vmem:[%s141 + $0x248] sm:$0xff]
        %v222 = vld [vmem:[%s141 + $0x250] sm:$0xff]
        %v223 = vld [vmem:[%s141 + $0x258] sm:$0xff]
        %v224 = vld [vmem:[%s141 + $0x260] sm:$0xff]
        %v225 = vld [vmem:[%s141 + $0x268] sm:$0xff]
        %v226 = vld [vmem:[%s141 + $0x270] sm:$0xff]
        %v227 = vld [vmem:[%s141 + $0x278] sm:$0xff]
        %v228 = vld [vmem:[%s141 + $0x280] sm:$0xff]
        %v229 = vld [vmem:[%s141 + $0x288] sm:$0xff]
        %v230 = vld [vmem:[%s141 + $0x290] sm:$0xff]
        %v231 = vld [vmem:[%s141 + $0x298] sm:$0xff]
        %v232 = vld [vmem:[%s141 + $0x2a0] sm:$0xff]
        %v233 = vld [vmem:[%s141 + $0x2a8] sm:$0xff]
        %v234 = vld [vmem:[%s141 + $0x2b0] sm:$0xff]
        %v235 = vld [vmem:[%s141 + $0x2b8] sm:$0xff]
        %v236 = vld [vmem:[%s141 + $0x2c0] sm:$0xff]
        %v237 = vld [vmem:[%s141 + $0x2c8] sm:$0xff]
        %v238 = vld [vmem:[%s141 + $0x2d0] sm:$0xff]
        %v239 = vld [vmem:[%s141 + $0x2d8] sm:$0xff]
        %v240 = vld [vmem:[%s141 + $0x2e0] sm:$0xff]
        %v241 = vld [vmem:[%s141 + $0x2e8] sm:$0xff]
        %v242 = vld [vmem:[%s141 + $0x2f0] sm:$0xff]
        %v243 = vld [vmem:[%s141 + $0x2f8] sm:$0xff]
        %v244 = vld [vmem:[%s141 + $0x300] sm:$0xff]
        %v245 = vld [vmem:[%s141 + $0x308] sm:$0xff]
        %v246 = vld [vmem:[%s141 + $0x310] sm:$0xff]
        %v247 = vld [vmem:[%s141 + $0x318] sm:$0xff]
        %v248 = vld [vmem:[%s141 + $0x320] sm:$0xff]
        %v249 = vld [vmem:[%s141 + $0x328] sm:$0xff]
        %v250 = vld [vmem:[%s141 + $0x330] sm:$0xff]
        %v251 = vld [vmem:[%s141 + $0x338] sm:$0xff]
        %v252 = vld [vmem:[%s141 + $0x340] sm:$0xff]
        %v253 = vld [vmem:[%s141 + $0x348] sm:$0xff]
        %v254 = vld [vmem:[%s141 + $0x350] sm:$0xff]
        %v255 = vld [vmem:[%s141 + $0x358] sm:$0xff]
        %v256 = vld [vmem:[%s141 + $0x360] sm:$0xff]
        %v257 = vld [vmem:[%s141 + $0x368] sm:$0xff]
        %v258 = vld [vmem:[%s141 + $0x370] sm:$0xff]
        %v259 = vld [vmem:[%s141 + $0x378] sm:$0xff]
        %v260 = vld [vmem:[%s141 + $0x380] sm:$0xff]
        %v261 = vld [vmem:[%s141 + $0x388] sm:$0xff]
        %v262 = vld [vmem:[%s141 + $0x390] sm:$0xff]
        %v263 = vld [vmem:[%s141 + $0x398] sm:$0xff]
        %v264 = vld [vmem:[%s141 + $0x3a0] sm:$0xff]
        %v265 = vld [vmem:[%s141 + $0x3a8] sm:$0xff]
        %v266 = vld [vmem:[%s141 + $0x3b0] sm:$0xff]
        %v267 = vld [vmem:[%s141 + $0x3b8] sm:$0xff]
        %v268 = vld [vmem:[%s141 + $0x3c0] sm:$0xff]
        %v269 = vld [vmem:[%s141 + $0x3c8] sm:$0xff]
        %v270 = vld [vmem:[%s141 + $0x3d0] sm:$0xff]
        %v271 = vld [vmem:[%s141 + $0x3d8] sm:$0xff]
        %v272 = vld [vmem:[%s141 + $0x3e0] sm:$0xff]
        %v273 = vld [vmem:[%s141 + $0x3e8] sm:$0xff]
        %v274 = vld [vmem:[%s141 + $0x3f0] sm:$0xff]
        %v275 = vld [vmem:[%s141 + $0x3f8] sm:$0xff]
        %v276 = vld [vmem:[%s141 + $0x400] sm:$0xff]
        %v277 = vld [vmem:[%s141 + $0x408] sm:$0xff]
        %v278 = vld [vmem:[%s141 + $0x410] sm:$0xff]
        %v279 = vld [vmem:[%s141 + $0x418] sm:$0xff]
        %v280 = vld [vmem:[%s141 + $0x420] sm:$0xff]
        %v281 = vld [vmem:[%s141 + $0x428] sm:$0xff]
        %v282 = vld [vmem:[%s141 + $0x430] sm:$0xff]
        %v283 = vld [vmem:[%s141 + $0x438] sm:$0xff]
        %v284 = vld [vmem:[%s141 + $0x440] sm:$0xff]
        %v285 = vld [vmem:[%s141 + $0x448] sm:$0xff]
        %v286 = vld [vmem:[%s141 + $0x450] sm:$0xff]
        %v287 = vld [vmem:[%s141 + $0x458] sm:$0xff]
        %v288 = vld [vmem:[%s141 + $0x460] sm:$0xff]
        %v289 = vld [vmem:[%s141 + $0x468] sm:$0xff]
        %v290 = vld [vmem:[%s141 + $0x470] sm:$0xff]
        %v291 = vld [vmem:[%s141 + $0x478] sm:$0xff]
        %v292 = vld [vmem:[%s141 + $0x480] sm:$0xff]
        %v293 = vld [vmem:[%s141 + $0x488] sm:$0xff]
        %v294 = vld [vmem:[%s141 + $0x490] sm:$0xff]
        %v295 = vld [vmem:[%s141 + $0x498] sm:$0xff]
        %v296 = vld [vmem:[%s141 + $0x4a0] sm:$0xff]
        %v297 = vld [vmem:[%s141 + $0x4a8] sm:$0xff]
        %v298 = vld [vmem:[%s141 + $0x4b0] sm:$0xff]
        %v299 = vld [vmem:[%s141 + $0x4b8] sm:$0xff]
        %v300 = vld [vmem:[%s141 + $0x4c0] sm:$0xff]
        %v301 = vld [vmem:[%s141 + $0x4c8] sm:$0xff]
        %v302 = vld [vmem:[%s141 + $0x4d0] sm:$0xff]
        %v303 = vld [vmem:[%s141 + $0x4d8] sm:$0xff]
        %v304 = vld [vmem:[%s141 + $0x4e0] sm:$0xff]
        %v305 = vld [vmem:[%s141 + $0x4e8] sm:$0xff]
        %v306 = vld [vmem:[%s141 + $0x4f0] sm:$0xff]
        %v307 = vld [vmem:[%s141 + $0x4f8] sm:$0xff]
        %v308 = vld [vmem:[%s141 + $0x500] sm:$0xff]
        %v309 = vld [vmem:[%s141 + $0x508] sm:$0xff]
        %v310 = vld [vmem:[%s141 + $0x510] sm:$0xff]
        %v311 = vld [vmem:[%s141 + $0x518] sm:$0xff]
        %v312 = vld [vmem:[%s141 + $0x520] sm:$0xff]
        %v313 = vld [vmem:[%s141 + $0x528] sm:$0xff]
        %v314 = vld [vmem:[%s141 + $0x530] sm:$0xff]
        %v315 = vld [vmem:[%s141 + $0x538] sm:$0xff]
        %v316 = vld [vmem:[%s141 + $0x540] sm:$0xff]
        %v317 = vld [vmem:[%s141 + $0x548] sm:$0xff]
        %v318 = vld [vmem:[%s141 + $0x550] sm:$0xff]
        %v319 = vld [vmem:[%s141 + $0x558] sm:$0xff]
        %v320 = vld [vmem:[%s141 + $0x560] sm:$0xff]
        %v321 = vld [vmem:[%s141 + $0x568] sm:$0xff]
        %v322 = vld [vmem:[%s141 + $0x570] sm:$0xff]
        %v323 = vld [vmem:[%s141 + $0x578] sm:$0xff]
        %v324 = vld [vmem:[%s141 + $0x580] sm:$0xff]
        %v325 = vld [vmem:[%s141 + $0x588] sm:$0xff]
        %v326 = vld [vmem:[%s141 + $0x590] sm:$0xff]
        %v327 = vld [vmem:[%s141 + $0x598] sm:$0xff]
        %v328 = vld [vmem:[%s141 + $0x5a0] sm:$0xff]
        %v329 = vld [vmem:[%s141 + $0x5a8] sm:$0xff]
        %v330 = vld [vmem:[%s141 + $0x5b0] sm:$0xff]
        %v331 = vld [vmem:[%s141 + $0x5b8] sm:$0xff]
        %v332 = vld [vmem:[%s141 + $0x5c0] sm:$0xff]
        %v333 = vld [vmem:[%s141 + $0x5c8] sm:$0xff]
        %v334 = vld [vmem:[%s141 + $0x5d0] sm:$0xff]
        %v335 = vld [vmem:[%s141 + $0x5d8] sm:$0xff]
        %v336 = vld [vmem:[%s141 + $0x5e0] sm:$0xff]
        %v337 = vld [vmem:[%s141 + $0x5e8] sm:$0xff]
        %v338 = vld [vmem:[%s141 + $0x5f0] sm:$0xff]
        %v339 = vld [vmem:[%s141 + $0x5f8] sm:$0xff]
        %v340 = vld [vmem:[%s141 + $0x600] sm:$0xff]
        %v341 = vld [vmem:[%s141 + $0x608] sm:$0xff]
        %v342 = vld [vmem:[%s141 + $0x610] sm:$0xff]
        %v343 = vld [vmem:[%s141 + $0x618] sm:$0xff]
        %v344 = vld [vmem:[%s141 + $0x620] sm:$0xff]
        %v345 = vld [vmem:[%s141 + $0x628] sm:$0xff]
        %v346 = vld [vmem:[%s141 + $0x630] sm:$0xff]
        %v347 = vld [vmem:[%s141 + $0x638] sm:$0xff]
        %v348 = vld [vmem:[%s141 + $0x640] sm:$0xff]
        %v349 = vld [vmem:[%s141 + $0x648] sm:$0xff]
        %v350 = vld [vmem:[%s141 + $0x650] sm:$0xff]
        %v351 = vld [vmem:[%s141 + $0x658] sm:$0xff]
        %v352 = vld [vmem:[%s141 + $0x660] sm:$0xff]
        %v353 = vld [vmem:[%s141 + $0x668] sm:$0xff]
        %v354 = vld [vmem:[%s141 + $0x670] sm:$0xff]
        %v355 = vld [vmem:[%s141 + $0x678] sm:$0xff]
        %v356 = vld [vmem:[%s141 + $0x680] sm:$0x1f]
        %v357 = vld [vmem:[%s141 + $0x688] sm:$0x1f]
        %v358 = vld [vmem:[%s141 + $0x690] sm:$0x1f]
        %v359 = vld [vmem:[%s141 + $0x698] sm:$0x1f]
        %v360 = vld [vmem:[%s141 + $0x6a0] sm:$0x1f]
        %v361 = vld [vmem:[%s141 + $0x6a8] sm:$0x1f]
        %v362 = vld [vmem:[%s141 + $0x6b0] sm:$0x1f]
        %v363 = vld [vmem:[%s141 + $0x6b8] sm:$0x1f]
        %v364 = vld [vmem:[%s141 + $0x6c0] sm:$0x1f]
        %v365 = vld [vmem:[%s141 + $0x6c8] sm:$0x1f]
        %v366 = vld [vmem:[%s141 + $0x6d0] sm:$0x1f]
        %v367 = vld [vmem:[%s141 + $0x6d8] sm:$0x1f]
        %v368 = vld [vmem:[%s141 + $0x6e0] sm:$0x1f]
        %v369 = vld [vmem:[%s141 + $0x6e8] sm:$0x1f]
        %v370 = vld [vmem:[%s141 + $0x6f0] sm:$0x1f]
        %v371 = vld [vmem:[%s141 + $0x6f8] sm:$0x1f]
        %v372 = vld [vmem:[%s141 + $0x700] sm:$0x1f]
        %v373 = vld [vmem:[%s141 + $0x708] sm:$0x1f]
        %v374 = vld [vmem:[%s141 + $0x710] sm:$0x1f]
        %v375 = vld [vmem:[%s141 + $0x718] sm:$0x1f]
        %v376 = vld [vmem:[%s141 + $0x720] sm:$0x1f]
        %v377 = vld [vmem:[%s141 + $0x728] sm:$0x1f]
        %v378 = vld [vmem:[%s141 + $0x730] sm:$0x1f]
        %v379 = vld [vmem:[%s141 + $0x738] sm:$0x1f]
        %v380 = vld [vmem:[%s141 + $0x740] sm:$0x1f]
        %v381 = vld [vmem:[%s141 + $0x748] sm:$0x1f]
        %v382 = vld [vmem:[%s141 + $0x750] sm:$0x1f]
        %v383 = vld [vmem:[%s141 + $0x758] sm:$0x1f]
        %v384 = vld [vmem:[%s141 + $0x760] sm:$0x1f]
        %v385 = vld [vmem:[%s141 + $0x768] sm:$0x1f]
        %v386 = vld [vmem:[%s141 + $0x770] sm:$0x1f]
        %v387 = vld [vmem:[%s141 + $0x778] sm:$0x1f]
        %v388 = vld [vmem:[%s141 + $0x780] sm:$0x1f]
        %v389 = vld [vmem:[%s141 + $0x788] sm:$0x1f]
        %v390 = vld [vmem:[%s141 + $0x790] sm:$0x1f]
        %v391 = vld [vmem:[%s141 + $0x798] sm:$0x1f]
        %v392 = vld [vmem:[%s141 + $0x7a0] sm:$0x1f]
        %v393 = vld [vmem:[%s141 + $0x7a8] sm:$0x1f]
        %v394 = vld [vmem:[%s141 + $0x7b0] sm:$0x1f]
        %v395 = vld [vmem:[%s141 + $0x7b8] sm:$0x1f]
        %v396 = vld [vmem:[%s141 + $0x7c0] sm:$0x1f]
        %v397 = vld [vmem:[%s141 + $0x7c8] sm:$0x1f]
        %v398 = vld [vmem:[%s141 + $0x7d0] sm:$0x1f]
        %v399 = vld [vmem:[%s141 + $0x7d8] sm:$0x1f]
        %v400 = vld [vmem:[%s141 + $0x7e0] sm:$0x1f]
        %v401 = vld [vmem:[%s141 + $0x7e8] sm:$0x1f]
        %v402 = vld [vmem:[%s141 + $0x7f0] sm:$0x1f]
        %v403 = vld [vmem:[%s141 + $0x7f8] sm:$0x1f]
        %v404 = vld [vmem:[%s141 + $0x800] sm:$0x1f]
        %v405 = vld [vmem:[%s141 + $0x808] sm:$0x1f]
        %v406 = vld [vmem:[%s141 + $0x810] sm:$0x1f]
        %v407 = vld [vmem:[%s141 + $0x818] sm:$0x1f]
        %v408 = vld [vmem:[%s141 + $0x820] sm:$0x1f]
        %v409 = vld [vmem:[%s141 + $0x828] sm:$0x1f]
        %v410 = vld [vmem:[%s141 + $0x830] sm:$0x1f]
        %v411 = vld [vmem:[%s141 + $0x838] sm:$0x1f]
        %v412 = vld [vmem:[%s141 + $0x840] sm:$0x1f]
        %v413 = vld [vmem:[%s141 + $0x848] sm:$0x1f]
        %v414 = vld [vmem:[%s141 + $0x850] sm:$0x1f]
        %v415 = vld [vmem:[%s141 + $0x858] sm:$0x1f]
        %v416 = vld [vmem:[%s141 + $0x860] sm:$0x1f]
        %v417 = vld [vmem:[%s141 + $0x868] sm:$0x1f]
        %v418 = vld [vmem:[%s141 + $0x870] sm:$0x1f]
        %v419 = vld [vmem:[%s141 + $0x878] sm:$0x1f]
        %v420 = vld [vmem:[%s141 + $0x880] sm:$0x1f]
        %v421 = vld [vmem:[%s141 + $0x888] sm:$0x1f]
        %v422 = vld [vmem:[%s141 + $0x890] sm:$0x1f]
        %v423 = vld [vmem:[%s141 + $0x898] sm:$0x1f]
        %v424 = vld [vmem:[%s141 + $0x8a0] sm:$0x1f]
        %v425 = vld [vmem:[%s141 + $0x8a8] sm:$0x1f]
        %v426 = vld [vmem:[%s141 + $0x8b0] sm:$0x1f]
        %v427 = vld [vmem:[%s141 + $0x8b8] sm:$0x1f]
        %v428 = vld [vmem:[%s141 + $0x8c0] sm:$0x1f]
        %v429 = vld [vmem:[%s141 + $0x8c8] sm:$0x1f]
        %v430 = vld [vmem:[%s141 + $0x8d0] sm:$0x1f]
        %v431 = vld [vmem:[%s141 + $0x8d8] sm:$0x1f]
        %v432 = vld [vmem:[%s141 + $0x8e0] sm:$0x1f]
        %v433 = vld [vmem:[%s141 + $0x8e8] sm:$0x1f]
        %v434 = vld [vmem:[%s141 + $0x8f0] sm:$0x1f]
        %v435 = vld [vmem:[%s141 + $0x8f8] sm:$0x1f]
        %v436 = vld [vmem:[%s141 + $0x900] sm:$0x1f]
        %v437 = vld [vmem:[%s141 + $0x908] sm:$0x1f]
        %v438 = vld [vmem:[%s141 + $0x910] sm:$0x1f]
        %v439 = vld [vmem:[%s141 + $0x918] sm:$0x1f]
        %v440 = vld [vmem:[%s141 + $0x920] sm:$0x1f]
        %v441 = vld [vmem:[%s141 + $0x928] sm:$0x1f]
        %v442 = vld [vmem:[%s141 + $0x930] sm:$0x1f]
        %v443 = vld [vmem:[%s141 + $0x938] sm:$0x1f]
        %v444 = vld [vmem:[%s141 + $0x940] sm:$0x1f]
        %v445 = vld [vmem:[%s141 + $0x948] sm:$0x1f]
        %v446 = vld [vmem:[%s141 + $0x950] sm:$0x1f]
        %v447 = vld [vmem:[%s141 + $0x958] sm:$0x1f]
        %v448 = vld [vmem:[%s141 + $0x960] sm:$0x1f]
        %v449 = vld [vmem:[%s141 + $0x968] sm:$0x1f]
        %v450 = vld [vmem:[%s141 + $0x970] sm:$0x1f]
        %v451 = vld [vmem:[%s141 + $0x978] sm:$0x1f]
        %v452 = vld [vmem:[%s141 + $0x980] sm:$0x1f]
        %v453 = vld [vmem:[%s141 + $0x988] sm:$0x1f]
        %v454 = vld [vmem:[%s141 + $0x990] sm:$0x1f]
        %v455 = vld [vmem:[%s141 + $0x998] sm:$0x1f]
        %v456 = vld [vmem:[%s141 + $0x9a0] sm:$0x1f]
        %v457 = vld [vmem:[%s141 + $0x9a8] sm:$0x1f]
        %v458 = vld [vmem:[%s141 + $0x9b0] sm:$0x1f]
        %v459 = vld [vmem:[%s141 + $0x9b8] sm:$0x1f]
        %vm460 = vcmask 171008
        %v462 = vsel %vm460, %v147, 0
        %vm464 = vcmask 1044480
        %v466 = vsel %vm464, %v356, 0
        %v469 = vsel %vm464, %v357, 0
        %v472 = vsel %vm464, %v358, 0
        %v475 = vsel %vm464, %v359, 0
        %v478 = vsel %vm464, %v360, 0
        %v481 = vsel %vm464, %v361, 0
        %v484 = vsel %vm464, %v362, 0
        %v487 = vsel %vm464, %v363, 0
        %v490 = vsel %vm464, %v364, 0
        %v493 = vsel %vm464, %v365, 0
        %v496 = vsel %vm464, %v366, 0
        %v499 = vsel %vm464, %v367, 0
        %v502 = vsel %vm464, %v368, 0
        %v505 = vsel %vm464, %v369, 0
        %v508 = vsel %vm464, %v370, 0
        %v511 = vsel %vm464, %v371, 0
        %v514 = vsel %vm464, %v372, 0
        %v517 = vsel %vm464, %v373, 0
        %v520 = vsel %vm464, %v374, 0
        %v523 = vsel %vm464, %v375, 0
        %v526 = vsel %vm464, %v376, 0
        %v529 = vsel %vm464, %v377, 0
        %v532 = vsel %vm464, %v378, 0
        %v535 = vsel %vm464, %v379, 0
        %v538 = vsel %vm464, %v380, 0
        %v541 = vsel %vm464, %v381, 0
        %v544 = vsel %vm464, %v382, 0
        %v547 = vsel %vm464, %v383, 0
        %v550 = vsel %vm464, %v384, 0
        %v553 = vsel %vm464, %v385, 0
        %v556 = vsel %vm464, %v386, 0
        %v559 = vsel %vm464, %v387, 0
        %v562 = vsel %vm464, %v388, 0
        %v565 = vsel %vm464, %v389, 0
        %v568 = vsel %vm464, %v390, 0
        %v571 = vsel %vm464, %v391, 0
        %v574 = vsel %vm464, %v392, 0
        %v577 = vsel %vm464, %v393, 0
        %v580 = vsel %vm464, %v394, 0
        %v583 = vsel %vm464, %v395, 0
        %v586 = vsel %vm464, %v396, 0
        %v589 = vsel %vm464, %v397, 0
        %v592 = vsel %vm464, %v398, 0
        %v595 = vsel %vm464, %v399, 0
        %v598 = vsel %vm464, %v400, 0
        %v601 = vsel %vm464, %v401, 0
        %v604 = vsel %vm464, %v402, 0
        %v607 = vsel %vm464, %v403, 0
        %v610 = vsel %vm464, %v404, 0
        %v613 = vsel %vm464, %v405, 0
        %v616 = vsel %vm464, %v406, 0
        %v619 = vsel %vm464, %v407, 0
        %v622 = vsel %vm464, %v408, 0
        %v625 = vsel %vm464, %v409, 0
        %v628 = vsel %vm464, %v410, 0
        %v631 = vsel %vm464, %v411, 0
        %v634 = vsel %vm464, %v412, 0
        %v637 = vsel %vm464, %v413, 0
        %v640 = vsel %vm464, %v414, 0
        %v643 = vsel %vm464, %v415, 0
        %v646 = vsel %vm464, %v416, 0
        %v649 = vsel %vm464, %v417, 0
        %v652 = vsel %vm464, %v418, 0
        %v655 = vsel %vm464, %v419, 0
        %v658 = vsel %vm464, %v420, 0
        %v661 = vsel %vm464, %v421, 0
        %v664 = vsel %vm464, %v422, 0
        %v667 = vsel %vm464, %v423, 0
        %v670 = vsel %vm464, %v424, 0
        %v673 = vsel %vm464, %v425, 0
        %v676 = vsel %vm464, %v426, 0
        %v679 = vsel %vm464, %v427, 0
        %v682 = vsel %vm464, %v428, 0
        %v685 = vsel %vm464, %v429, 0
        %v688 = vsel %vm464, %v430, 0
        %v691 = vsel %vm464, %v431, 0
        %v694 = vsel %vm464, %v432, 0
        %v697 = vsel %vm464, %v433, 0
        %v700 = vsel %vm464, %v434, 0
        %v703 = vsel %vm464, %v435, 0
        %v706 = vsel %vm464, %v436, 0
        %v709 = vsel %vm464, %v437, 0
        %v712 = vsel %vm464, %v438, 0
        %v715 = vsel %vm464, %v439, 0
        %v718 = vsel %vm464, %v440, 0
        %v721 = vsel %vm464, %v441, 0
        %v724 = vsel %vm464, %v442, 0
        %v727 = vsel %vm464, %v443, 0
        %v730 = vsel %vm464, %v444, 0
        %v733 = vsel %vm464, %v445, 0
        %v736 = vsel %vm464, %v446, 0
        %v739 = vsel %vm464, %v447, 0
        %v742 = vsel %vm464, %v448, 0
        %v745 = vsel %vm464, %v449, 0
        %v748 = vsel %vm464, %v450, 0
        %v751 = vsel %vm464, %v451, 0
        %v754 = vsel %vm464, %v452, 0
        %v757 = vsel %vm464, %v453, 0
        %v760 = vsel %vm464, %v454, 0
        %v763 = vsel %vm464, %v455, 0
        %v766 = vsel %vm464, %v456, 0
        %v769 = vsel %vm464, %v457, 0
        %v772 = vsel %vm464, %v458, 0
        %v775 = vsel %vm464, %v459, 0
        %777 = vmatprep.subr.mxu0 %v149
        %778 = vmatpush1.msra.mxu0 %v148
        %779 = vmatprep.subr.mxu0 %v253
        %780 = vmatpush1.msra.mxu0 %v252
        %781 = vmatprep.subr.mxu0 %v469
        %782 = vmatpush1.msra.mxu0 %v466
        %783 = vmatprep.subr.mxu0 0.0
        %784 = vmatpush1.msra.mxu0 0.0
        %785 = vmatprep.subr.mxu0 0.0
        %786 = vmatpush1.msra.mxu0 0.0
        %787 = vmatprep.subr.mxu0 0.0
        %788 = vmatpush1.msra.mxu0 0.0
        %789 = vmatprep.subr.mxu0 0.0
        %790 = vmatpush1.msra.mxu0 0.0
        %791 = vmatprep.subr.mxu0 0.0
        %792 = vmatpush1.msra.mxu0 0.0
        %793 = vmatprep.subr.mxu0 0.0
        %794 = vmatpush1.msra.mxu0 0.0
        %795 = vmatprep.subr.mxu0 0.0
        %796 = vmatpush1.msra.mxu0 0.0
        %797 = vmatprep.subr.mxu0 0.0
        %798 = vmatpush1.msra.mxu0 0.0
        %799 = vmatprep.subr.mxu0 0.0
        %800 = vmatpush1.msra.mxu0 0.0
        %801 = vmatprep.subr.mxu0 0.0
        %802 = vmatpush1.msra.mxu0 0.0
        %803 = vmatprep.subr.mxu0 0.0
        %804 = vmatpush1.msra.mxu0 0.0
        %805 = vmatprep.subr.mxu0 0.0
        %806 = vmatpush1.msra.mxu0 0.0
        %807 = vmatprep.subr.mxu0 0.0
        %808 = vmatpush1.msra.mxu0 0.0
        %809 = vmatprep.subr.mxu0 0.0
        %810 = vmatpush1.msra.mxu0 0.0
        %811 = vmatprep.subr.mxu0 0.0
        %812 = vmatpush1.msra.mxu0 0.0
        %813 = vmatprep.subr.mxu0 0.0
        %814 = vmatpush1.msra.mxu0 0.0
        %815 = vmatprep.subr.mxu0 0.0
        %816 = vmatpush1.msra.mxu0 0.0
        %817 = vmatprep.subr.mxu0 0.0
        %818 = vmatpush1.msra.mxu0 0.0
        %819 = vmatprep.subr.mxu0 0.0
        %820 = vmatpush1.msra.mxu0 0.0
        %821 = vmatprep.subr.mxu0 0.0
        %822 = vmatpush1.msra.mxu0 0.0
        %823 = vmatprep.subr.mxu0 0.0
        %824 = vmatpush1.msra.mxu0 0.0
        %825 = vmatprep.subr.mxu0 0.0
        %826 = vmatpush1.msra.mxu0 0.0
        %827 = vmatprep.subr.mxu0 0.0
        %828 = vmatpush1.msra.mxu0 0.0
        %829 = vmatprep.subr.mxu0 0.0
        %830 = vmatpush1.msra.mxu0 0.0
        %831 = vmatprep.subr.mxu0 0.0
        %832 = vmatpush1.msra.mxu0 0.0
        %833 = vmatprep.subr.mxu0 0.0
        %834 = vmatpush1.msra.mxu0 0.0
        %835 = vmatprep.subr.mxu0 0.0
        %836 = vmatpush1.msra.mxu0 0.0
        %837 = vmatprep.subr.mxu0 0.0
        %838 = vmatpush1.msra.mxu0 0.0
        %839 = vmatprep.subr.mxu0 0.0
        %840 = vmatpush1.msra.mxu0 0.0
        %841 = vmatprep.mubr.f32.mxu0 0.0
        %842 = vmatmul.mubr.f32.gmra.mrb[0].mxu0 %v462
        %v843 = vpop.f32.mrb[0].mxu0
        %v844 = vadd.f32 0.0, %v843
        %v845 = vpop.f32.mrb[0].mxu0
        %v846 = vadd.f32 0.0, %v845
        %847 = vdwg.mxu0
        %848 = vmatprep.subr.mxu0 %v151
        %849 = vmatpush1.msra.mxu0 %v150
        %850 = vmatprep.subr.mxu0 %v255
        %851 = vmatpush1.msra.mxu0 %v254
        %852 = vmatprep.subr.mxu0 %v475
        %853 = vmatpush1.msra.mxu0 %v472
        %854 = vmatprep.subr.mxu0 0.0
        %855 = vmatpush1.msra.mxu0 0.0
        %856 = vmatprep.subr.mxu0 0.0
        %857 = vmatpush1.msra.mxu0 0.0
        %858 = vmatprep.subr.mxu0 0.0
        %859 = vmatpush1.msra.mxu0 0.0
        %860 = vmatprep.subr.mxu0 0.0
        %861 = vmatpush1.msra.mxu0 0.0
        %862 = vmatprep.subr.mxu0 0.0
        %863 = vmatpush1.msra.mxu0 0.0
        %864 = vmatprep.subr.mxu0 0.0
        %865 = vmatpush1.msra.mxu0 0.0
        %866 = vmatprep.subr.mxu0 0.0
        %867 = vmatpush1.msra.mxu0 0.0
        %868 = vmatprep.subr.mxu0 0.0
        %869 = vmatpush1.msra.mxu0 0.0
        %870 = vmatprep.subr.mxu0 0.0
        %871 = vmatpush1.msra.mxu0 0.0
        %872 = vmatprep.subr.mxu0 0.0
        %873 = vmatpush1.msra.mxu0 0.0
        %874 = vmatprep.subr.mxu0 0.0
        %875 = vmatpush1.msra.mxu0 0.0
        %876 = vmatprep.subr.mxu0 0.0
        %877 = vmatpush1.msra.mxu0 0.0
        %878 = vmatprep.subr.mxu0 0.0
        %879 = vmatpush1.msra.mxu0 0.0
        %880 = vmatprep.subr.mxu0 0.0
        %881 = vmatpush1.msra.mxu0 0.0
        %882 = vmatprep.subr.mxu0 0.0
        %883 = vmatpush1.msra.mxu0 0.0
        %884 = vmatprep.subr.mxu0 0.0
        %885 = vmatpush1.msra.mxu0 0.0
        %886 = vmatprep.subr.mxu0 0.0
        %887 = vmatpush1.msra.mxu0 0.0
        %888 = vmatprep.subr.mxu0 0.0
        %889 = vmatpush1.msra.mxu0 0.0
        %890 = vmatprep.subr.mxu0 0.0
        %891 = vmatpush1.msra.mxu0 0.0
        %892 = vmatprep.subr.mxu0 0.0
        %893 = vmatpush1.msra.mxu0 0.0
        %894 = vmatprep.subr.mxu0 0.0
        %895 = vmatpush1.msra.mxu0 0.0
        %896 = vmatprep.subr.mxu0 0.0
        %897 = vmatpush1.msra.mxu0 0.0
        %898 = vmatprep.subr.mxu0 0.0
        %899 = vmatpush1.msra.mxu0 0.0
        %900 = vmatprep.subr.mxu0 0.0
        %901 = vmatpush1.msra.mxu0 0.0
        %902 = vmatprep.subr.mxu0 0.0
        %903 = vmatpush1.msra.mxu0 0.0
        %904 = vmatprep.subr.mxu0 0.0
        %905 = vmatpush1.msra.mxu0 0.0
        %906 = vmatprep.subr.mxu0 0.0
        %907 = vmatpush1.msra.mxu0 0.0
        %908 = vmatprep.subr.mxu0 0.0
        %909 = vmatpush1.msra.mxu0 0.0
        %910 = vmatprep.subr.mxu0 0.0
        %911 = vmatpush1.msra.mxu0 0.0
        %912 = vmatprep.mubr.f32.mxu0 0.0
        %913 = vmatmul.mubr.f32.gmra.mrb[0].mxu0 %v462
        %v914 = vpop.f32.mrb[0].mxu0
        %v915 = vadd.f32 0.0, %v914
        %v916 = vpop.f32.mrb[0].mxu0
        %v917 = vadd.f32 0.0, %v916
        %918 = vdwg.mxu0
        %919 = vmatprep.subr.mxu0 %v153
        %920 = vmatpush1.msra.mxu0 %v152
        %921 = vmatprep.subr.mxu0 %v257
        %922 = vmatpush1.msra.mxu0 %v256
        %923 = vmatprep.subr.mxu0 %v481
        %924 = vmatpush1.msra.mxu0 %v478
        %925 = vmatprep.subr.mxu0 0.0
        %926 = vmatpush1.msra.mxu0 0.0
        %927 = vmatprep.subr.mxu0 0.0
        %928 = vmatpush1.msra.mxu0 0.0
        %929 = vmatprep.subr.mxu0 0.0
        %930 = vmatpush1.msra.mxu0 0.0
        %931 = vmatprep.subr.mxu0 0.0
        %932 = vmatpush1.msra.mxu0 0.0
        %933 = vmatprep.subr.mxu0 0.0
        %934 = vmatpush1.msra.mxu0 0.0
        %935 = vmatprep.subr.mxu0 0.0
        %936 = vmatpush1.msra.mxu0 0.0
        %937 = vmatprep.subr.mxu0 0.0
        %938 = vmatpush1.msra.mxu0 0.0
        %939 = vmatprep.subr.mxu0 0.0
        %940 = vmatpush1.msra.mxu0 0.0
        %941 = vmatprep.subr.mxu0 0.0
        %942 = vmatpush1.msra.mxu0 0.0
        %943 = vmatprep.subr.mxu0 0.0
        %944 = vmatpush1.msra.mxu0 0.0
        %945 = vmatprep.subr.mxu0 0.0
        %946 = vmatpush1.msra.mxu0 0.0
        %947 = vmatprep.subr.mxu0 0.0
        %948 = vmatpush1.msra.mxu0 0.0
        %949 = vmatprep.subr.mxu0 0.0
        %950 = vmatpush1.msra.mxu0 0.0
        %951 = vmatprep.subr.mxu0 0.0
        %952 = vmatpush1.msra.mxu0 0.0
        %953 = vmatprep.subr.mxu0 0.0
        %954 = vmatpush1.msra.mxu0 0.0
        %955 = vmatprep.subr.mxu0 0.0
        %956 = vmatpush1.msra.mxu0 0.0
        %957 = vmatprep.subr.mxu0 0.0
        %958 = vmatpush1.msra.mxu0 0.0
        %959 = vmatprep.subr.mxu0 0.0
        %960 = vmatpush1.msra.mxu0 0.0
        %961 = vmatprep.subr.mxu0 0.0
        %962 = vmatpush1.msra.mxu0 0.0
        %963 = vmatprep.subr.mxu0 0.0
        %964 = vmatpush1.msra.mxu0 0.0
        %965 = vmatprep.subr.mxu0 0.0
        %966 = vmatpush1.msra.mxu0 0.0
        %967 = vmatprep.subr.mxu0 0.0
        %968 = vmatpush1.msra.mxu0 0.0
        %969 = vmatprep.subr.mxu0 0.0
        %970 = vmatpush1.msra.mxu0 0.0
        %971 = vmatprep.subr.mxu0 0.0
        %972 = vmatpush1.msra.mxu0 0.0
        %973 = vmatprep.subr.mxu0 0.0
        %974 = vmatpush1.msra.mxu0 0.0
        %975 = vmatprep.subr.mxu0 0.0
        %976 = vmatpush1.msra.mxu0 0.0
        %977 = vmatprep.subr.mxu0 0.0
        %978 = vmatpush1.msra.mxu0 0.0
        %979 = vmatprep.subr.mxu0 0.0
        %980 = vmatpush1.msra.mxu0 0.0
        %981 = vmatprep.subr.mxu0 0.0
        %982 = vmatpush1.msra.mxu0 0.0
        %983 = vmatprep.mubr.f32.mxu0 0.0
        %984 = vmatmul.mubr.f32.gmra.mrb[0].mxu0 %v462
        %v985 = vpop.f32.mrb[0].mxu0
        %v986 = vadd.f32 0.0, %v985
        %v987 = vpop.f32.mrb[0].mxu0
        %v988 = vadd.f32 0.0, %v987
        %989 = vdwg.mxu0
        %990 = vmatprep.subr.mxu0 %v155
        %991 = vmatpush1.msra.mxu0 %v154
        %992 = vmatprep.subr.mxu0 %v259
        %993 = vmatpush1.msra.mxu0 %v258
        %994 = vmatprep.subr.mxu0 %v487
        %995 = vmatpush1.msra.mxu0 %v484
        %996 = vmatprep.subr.mxu0 0.0
        %997 = vmatpush1.msra.mxu0 0.0
        %998 = vmatprep.subr.mxu0 0.0
        %999 = vmatpush1.msra.mxu0 0.0
        %1000 = vmatprep.subr.mxu0 0.0
        %1001 = vmatpush1.msra.mxu0 0.0
        %1002 = vmatprep.subr.mxu0 0.0
        %1003 = vmatpush1.msra.mxu0 0.0
        %1004 = vmatprep.subr.mxu0 0.0
        %1005 = vmatpush1.msra.mxu0 0.0
        %1006 = vmatprep.subr.mxu0 0.0
        %1007 = vmatpush1.msra.mxu0 0.0
        %1008 = vmatprep.subr.mxu0 0.0
        %1009 = vmatpush1.msra.mxu0 0.0
        %1010 = vmatprep.subr.mxu0 0.0
        %1011 = vmatpush1.msra.mxu0 0.0
        %1012 = vmatprep.subr.mxu0 0.0
        %1013 = vmatpush1.msra.mxu0 0.0
        %1014 = vmatprep.subr.mxu0 0.0
        %1015 = vmatpush1.msra.mxu0 0.0
        %1016 = vmatprep.subr.mxu0 0.0
        %1017 = vmatpush1.msra.mxu0 0.0
        %1018 = vmatprep.subr.mxu0 0.0
        %1019 = vmatpush1.msra.mxu0 0.0
        %1020 = vmatprep.subr.mxu0 0.0
        %1021 = vmatpush1.msra.mxu0 0.0
        %1022 = vmatprep.subr.mxu0 0.0
        %1023 = vmatpush1.msra.mxu0 0.0
        %1024 = vmatprep.subr.mxu0 0.0
        %1025 = vmatpush1.msra.mxu0 0.0
        %1026 = vmatprep.subr.mxu0 0.0
        %1027 = vmatpush1.msra.mxu0 0.0
        %1028 = vmatprep.subr.mxu0 0.0
        %1029 = vmatpush1.msra.mxu0 0.0
        %1030 = vmatprep.subr.mxu0 0.0
        %1031 = vmatpush1.msra.mxu0 0.0
        %1032 = vmatprep.subr.mxu0 0.0
        %1033 = vmatpush1.msra.mxu0 0.0
        %1034 = vmatprep.subr.mxu0 0.0
        %1035 = vmatpush1.msra.mxu0 0.0
        %1036 = vmatprep.subr.mxu0 0.0
        %1037 = vmatpush1.msra.mxu0 0.0
        %1038 = vmatprep.subr.mxu0 0.0
        %1039 = vmatpush1.msra.mxu0 0.0
        %1040 = vmatprep.subr.mxu0 0.0
        %1041 = vmatpush1.msra.mxu0 0.0
        %1042 = vmatprep.subr.mxu0 0.0
        %1043 = vmatpush1.msra.mxu0 0.0
        %1044 = vmatprep.subr.mxu0 0.0
        %1045 = vmatpush1.msra.mxu0 0.0
        %1046 = vmatprep.subr.mxu0 0.0
        %1047 = vmatpush1.msra.mxu0 0.0
        %1048 = vmatprep.subr.mxu0 0.0
        %1049 = vmatpush1.msra.mxu0 0.0
        %1050 = vmatprep.subr.mxu0 0.0
        %1051 = vmatpush1.msra.mxu0 0.0
        %1052 = vmatprep.subr.mxu0 0.0
        %1053 = vmatpush1.msra.mxu0 0.0
        %1054 = vmatprep.mubr.f32.mxu0 0.0
        %1055 = vmatmul.mubr.f32.gmra.mrb[0].mxu0 %v462
        %v1056 = vpop.f32.mrb[0].mxu0
        %v1057 = vadd.f32 0.0, %v1056
        %v1058 = vpop.f32.mrb[0].mxu0
        %v1059 = vadd.f32 0.0, %v1058
        %1060 = vdwg.mxu0
        %1061 = vmatprep.subr.mxu0 %v157
        %1062 = vmatpush1.msra.mxu0 %v156
        %1063 = vmatprep.subr.mxu0 %v261
        %1064 = vmatpush1.msra.mxu0 %v260
        %1065 = vmatprep.subr.mxu0 %v493
        %1066 = vmatpush1.msra.mxu0 %v490
        %1067 = vmatprep.subr.mxu0 0.0
        %1068 = vmatpush1.msra.mxu0 0.0
        %1069 = vmatprep.subr.mxu0 0.0
        %1070 = vmatpush1.msra.mxu0 0.0
        %1071 = vmatprep.subr.mxu0 0.0
        %1072 = vmatpush1.msra.mxu0 0.0
        %1073 = vmatprep.subr.mxu0 0.0
        %1074 = vmatpush1.msra.mxu0 0.0
        %1075 = vmatprep.subr.mxu0 0.0
        %1076 = vmatpush1.msra.mxu0 0.0
        %1077 = vmatprep.subr.mxu0 0.0
        %1078 = vmatpush1.msra.mxu0 0.0
        %1079 = vmatprep.subr.mxu0 0.0
        %1080 = vmatpush1.msra.mxu0 0.0
        %1081 = vmatprep.subr.mxu0 0.0
        %1082 = vmatpush1.msra.mxu0 0.0
        %1083 = vmatprep.subr.mxu0 0.0
        %1084 = vmatpush1.msra.mxu0 0.0
        %1085 = vmatprep.subr.mxu0 0.0
        %1086 = vmatpush1.msra.mxu0 0.0
        %1087 = vmatprep.subr.mxu0 0.0
        %1088 = vmatpush1.msra.mxu0 0.0
        %1089 = vmatprep.subr.mxu0 0.0
        %1090 = vmatpush1.msra.mxu0 0.0
        %1091 = vmatprep.subr.mxu0 0.0
        %1092 = vmatpush1.msra.mxu0 0.0
        %1093 = vmatprep.subr.mxu0 0.0
        %1094 = vmatpush1.msra.mxu0 0.0
        %1095 = vmatprep.subr.mxu0 0.0
        %1096 = vmatpush1.msra.mxu0 0.0
        %1097 = vmatprep.subr.mxu0 0.0
        %1098 = vmatpush1.msra.mxu0 0.0
        %1099 = vmatprep.subr.mxu0 0.0
        %1100 = vmatpush1.msra.mxu0 0.0
        %1101 = vmatprep.subr.mxu0 0.0
        %1102 = vmatpush1.msra.mxu0 0.0
        %1103 = vmatprep.subr.mxu0 0.0
        %1104 = vmatpush1.msra.mxu0 0.0
        %1105 = vmatprep.subr.mxu0 0.0
        %1106 = vmatpush1.msra.mxu0 0.0
        %1107 = vmatprep.subr.mxu0 0.0
        %1108 = vmatpush1.msra.mxu0 0.0
        %1109 = vmatprep.subr.mxu0 0.0
        %1110 = vmatpush1.msra.mxu0 0.0
        %1111 = vmatprep.subr.mxu0 0.0
        %1112 = vmatpush1.msra.mxu0 0.0
        %1113 = vmatprep.subr.mxu0 0.0
        %1114 = vmatpush1.msra.mxu0 0.0
        %1115 = vmatprep.subr.mxu0 0.0
        %1116 = vmatpush1.msra.mxu0 0.0
        %1117 = vmatprep.subr.mxu0 0.0
        %1118 = vmatpush1.msra.mxu0 0.0
        %1119 = vmatprep.subr.mxu0 0.0
        %1120 = vmatpush1.msra.mxu0 0.0
        %1121 = vmatprep.subr.mxu0 0.0
        %1122 = vmatpush1.msra.mxu0 0.0
        %1123 = vmatprep.subr.mxu0 0.0
        %1124 = vmatpush1.msra.mxu0 0.0
        %1125 = vmatprep.mubr.f32.mxu0 0.0
        %1126 = vmatmul.mubr.f32.gmra.mrb[0].mxu0 %v462
        %v1127 = vpop.f32.mrb[0].mxu0
        %v1128 = vadd.f32 0.0, %v1127
        %v1129 = vpop.f32.mrb[0].mxu0
        %v1130 = vadd.f32 0.0, %v1129
        %1131 = vdwg.mxu0
        %1132 = vmatprep.subr.mxu0 %v159
        %1133 = vmatpush1.msra.mxu0 %v158
        %1134 = vmatprep.subr.mxu0 %v263
        %1135 = vmatpush1.msra.mxu0 %v262
        %1136 = vmatprep.subr.mxu0 %v499
        %1137 = vmatpush1.msra.mxu0 %v496
        %1138 = vmatprep.subr.mxu0 0.0
        %1139 = vmatpush1.msra.mxu0 0.0
        %1140 = vmatprep.subr.mxu0 0.0
        %1141 = vmatpush1.msra.mxu0 0.0
        %1142 = vmatprep.subr.mxu0 0.0
        %1143 = vmatpush1.msra.mxu0 0.0
        %1144 = vmatprep.subr.mxu0 0.0
        %1145 = vmatpush1.msra.mxu0 0.0
        %1146 = vmatprep.subr.mxu0 0.0
        %1147 = vmatpush1.msra.mxu0 0.0
        %1148 = vmatprep.subr.mxu0 0.0
        %1149 = vmatpush1.msra.mxu0 0.0
        %1150 = vmatprep.subr.mxu0 0.0
        %1151 = vmatpush1.msra.mxu0 0.0
        %1152 = vmatprep.subr.mxu0 0.0
        %1153 = vmatpush1.msra.mxu0 0.0
        %1154 = vmatprep.subr.mxu0 0.0
        %1155 = vmatpush1.msra.mxu0 0.0
        %1156 = vmatprep.subr.mxu0 0.0
        %1157 = vmatpush1.msra.mxu0 0.0
        %1158 = vmatprep.subr.mxu0 0.0
        %1159 = vmatpush1.msra.mxu0 0.0
        %1160 = vmatprep.subr.mxu0 0.0
        %1161 = vmatpush1.msra.mxu0 0.0
        %1162 = vmatprep.subr.mxu0 0.0
        %1163 = vmatpush1.msra.mxu0 0.0
        %1164 = vmatprep.subr.mxu0 0.0
        %1165 = vmatpush1.msra.mxu0 0.0
        %1166 = vmatprep.subr.mxu0 0.0
        %1167 = vmatpush1.msra.mxu0 0.0
        %1168 = vmatprep.subr.mxu0 0.0
        %1169 = vmatpush1.msra.mxu0 0.0
        %1170 = vmatprep.subr.mxu0 0.0
        %1171 = vmatpush1.msra.mxu0 0.0
        %1172 = vmatprep.subr.mxu0 0.0
        %1173 = vmatpush1.msra.mxu0 0.0
        %1174 = vmatprep.subr.mxu0 0.0
        %1175 = vmatpush1.msra.mxu0 0.0
        %1176 = vmatprep.subr.mxu0 0.0
        %1177 = vmatpush1.msra.mxu0 0.0
        %1178 = vmatprep.subr.mxu0 0.0
        %1179 = vmatpush1.msra.mxu0 0.0
        %1180 = vmatprep.subr.mxu0 0.0
        %1181 = vmatpush1.msra.mxu0 0.0
        %1182 = vmatprep.subr.mxu0 0.0
        %1183 = vmatpush1.msra.mxu0 0.0
        %1184 = vmatprep.subr.mxu0 0.0
        %1185 = vmatpush1.msra.mxu0 0.0
        %1186 = vmatprep.subr.mxu0 0.0
        %1187 = vmatpush1.msra.mxu0 0.0
        %1188 = vmatprep.subr.mxu0 0.0
        %1189 = vmatpush1.msra.mxu0 0.0
        %1190 = vmatprep.subr.mxu0 0.0
        %1191 = vmatpush1.msra.mxu0 0.0
        %1192 = vmatprep.subr.mxu0 0.0
        %1193 = vmatpush1.msra.mxu0 0.0
        %1194 = vmatprep.subr.mxu0 0.0
        %1195 = vmatpush1.msra.mxu0 0.0
        %1196 = vmatprep.mubr.f32.mxu0 0.0
        %1197 = vmatmul.mubr.f32.gmra.mrb[0].mxu0 %v462
        %v1198 = vpop.f32.mrb[0].mxu0
        %v1199 = vadd.f32 0.0, %v1198
        %v1200 = vpop.f32.mrb[0].mxu0
        %v1201 = vadd.f32 0.0, %v1200
        %1202 = vdwg.mxu0
        %1203 = vmatprep.subr.mxu0 %v161
        %1204 = vmatpush1.msra.mxu0 %v160
        %1205 = vmatprep.subr.mxu0 %v265
        %1206 = vmatpush1.msra.mxu0 %v264
        %1207 = vmatprep.subr.mxu0 %v505
        %1208 = vmatpush1.msra.mxu0 %v502
        %1209 = vmatprep.subr.mxu0 0.0
        %1210 = vmatpush1.msra.mxu0 0.0
        %1211 = vmatprep.subr.mxu0 0.0
        %1212 = vmatpush1.msra.mxu0 0.0
        %1213 = vmatprep.subr.mxu0 0.0
        %1214 = vmatpush1.msra.mxu0 0.0
        %1215 = vmatprep.subr.mxu0 0.0
        %1216 = vmatpush1.msra.mxu0 0.0
        %1217 = vmatprep.subr.mxu0 0.0
        %1218 = vmatpush1.msra.mxu0 0.0
        %1219 = vmatprep.subr.mxu0 0.0
        %1220 = vmatpush1.msra.mxu0 0.0
        %1221 = vmatprep.subr.mxu0 0.0
        %1222 = vmatpush1.msra.mxu0 0.0
        %1223 = vmatprep.subr.mxu0 0.0
        %1224 = vmatpush1.msra.mxu0 0.0
        %1225 = vmatprep.subr.mxu0 0.0
        %1226 = vmatpush1.msra.mxu0 0.0
        %1227 = vmatprep.subr.mxu0 0.0
        %1228 = vmatpush1.msra.mxu0 0.0
        %1229 = vmatprep.subr.mxu0 0.0
        %1230 = vmatpush1.msra.mxu0 0.0
        %1231 = vmatprep.subr.mxu0 0.0
        %1232 = vmatpush1.msra.mxu0 0.0
        %1233 = vmatprep.subr.mxu0 0.0
        %1234 = vmatpush1.msra.mxu0 0.0
        %1235 = vmatprep.subr.mxu0 0.0
        %1236 = vmatpush1.msra.mxu0 0.0
        %1237 = vmatprep.subr.mxu0 0.0
        %1238 = vmatpush1.msra.mxu0 0.0
        %1239 = vmatprep.subr.mxu0 0.0
        %1240 = vmatpush1.msra.mxu0 0.0
        %1241 = vmatprep.subr.mxu0 0.0
        %1242 = vmatpush1.msra.mxu0 0.0
        %1243 = vmatprep.subr.mxu0 0.0
        %1244 = vmatpush1.msra.mxu0 0.0
        %1245 = vmatprep.subr.mxu0 0.0
        %1246 = vmatpush1.msra.mxu0 0.0
        %1247 = vmatprep.subr.mxu0 0.0
        %1248 = vmatpush1.msra.mxu0 0.0
        %1249 = vmatprep.subr.mxu0 0.0
        %1250 = vmatpush1.msra.mxu0 0.0
        %1251 = vmatprep.subr.mxu0 0.0
        %1252 = vmatpush1.msra.mxu0 0.0
        %1253 = vmatprep.subr.mxu0 0.0
        %1254 = vmatpush1.msra.mxu0 0.0
        %1255 = vmatprep.subr.mxu0 0.0
        %1256 = vmatpush1.msra.mxu0 0.0
        %1257 = vmatprep.subr.mxu0 0.0
        %1258 = vmatpush1.msra.mxu0 0.0
        %1259 = vmatprep.subr.mxu0 0.0
        %1260 = vmatpush1.msra.mxu0 0.0
        %1261 = vmatprep.subr.mxu0 0.0
        %1262 = vmatpush1.msra.mxu0 0.0
        %1263 = vmatprep.subr.mxu0 0.0
        %1264 = vmatpush1.msra.mxu0 0.0
        %1265 = vmatprep.subr.mxu0 0.0
        %1266 = vmatpush1.msra.mxu0 0.0
        %1267 = vmatprep.mubr.f32.mxu0 0.0
        %1268 = vmatmul.mubr.f32.gmra.mrb[0].mxu0 %v462
        %v1269 = vpop.f32.mrb[0].mxu0
        %v1270 = vadd.f32 0.0, %v1269
        %v1271 = vpop.f32.mrb[0].mxu0
        %v1272 = vadd.f32 0.0, %v1271
        %1273 = vdwg.mxu0
        %1274 = vmatprep.subr.mxu0 %v163
        %1275 = vmatpush1.msra.mxu0 %v162
        %1276 = vmatprep.subr.mxu0 %v267
        %1277 = vmatpush1.msra.mxu0 %v266
        %1278 = vmatprep.subr.mxu0 %v511
        %1279 = vmatpush1.msra.mxu0 %v508
        %1280 = vmatprep.subr.mxu0 0.0
        %1281 = vmatpush1.msra.mxu0 0.0
        %1282 = vmatprep.subr.mxu0 0.0
        %1283 = vmatpush1.msra.mxu0 0.0
        %1284 = vmatprep.subr.mxu0 0.0
        %1285 = vmatpush1.msra.mxu0 0.0
        %1286 = vmatprep.subr.mxu0 0.0
        %1287 = vmatpush1.msra.mxu0 0.0
        %1288 = vmatprep.subr.mxu0 0.0
        %1289 = vmatpush1.msra.mxu0 0.0
        %1290 = vmatprep.subr.mxu0 0.0
        %1291 = vmatpush1.msra.mxu0 0.0
        %1292 = vmatprep.subr.mxu0 0.0
        %1293 = vmatpush1.msra.mxu0 0.0
        %1294 = vmatprep.subr.mxu0 0.0
        %1295 = vmatpush1.msra.mxu0 0.0
        %1296 = vmatprep.subr.mxu0 0.0
        %1297 = vmatpush1.msra.mxu0 0.0
        %1298 = vmatprep.subr.mxu0 0.0
        %1299 = vmatpush1.msra.mxu0 0.0
        %1300 = vmatprep.subr.mxu0 0.0
        %1301 = vmatpush1.msra.mxu0 0.0
        %1302 = vmatprep.subr.mxu0 0.0
        %1303 = vmatpush1.msra.mxu0 0.0
        %1304 = vmatprep.subr.mxu0 0.0
        %1305 = vmatpush1.msra.mxu0 0.0
        %1306 = vmatprep.subr.mxu0 0.0
        %1307 = vmatpush1.msra.mxu0 0.0
        %1308 = vmatprep.subr.mxu0 0.0
        %1309 = vmatpush1.msra.mxu0 0.0
        %1310 = vmatprep.subr.mxu0 0.0
        %1311 = vmatpush1.msra.mxu0 0.0
        %1312 = vmatprep.subr.mxu0 0.0
        %1313 = vmatpush1.msra.mxu0 0.0
        %1314 = vmatprep.subr.mxu0 0.0
        %1315 = vmatpush1.msra.mxu0 0.0
        %1316 = vmatprep.subr.mxu0 0.0
        %1317 = vmatpush1.msra.mxu0 0.0
        %1318 = vmatprep.subr.mxu0 0.0
        %1319 = vmatpush1.msra.mxu0 0.0
        %1320 = vmatprep.subr.mxu0 0.0
        %1321 = vmatpush1.msra.mxu0 0.0
        %1322 = vmatprep.subr.mxu0 0.0
        %1323 = vmatpush1.msra.mxu0 0.0
        %1324 = vmatprep.subr.mxu0 0.0
        %1325 = vmatpush1.msra.mxu0 0.0
        %1326 = vmatprep.subr.mxu0 0.0
        %1327 = vmatpush1.msra.mxu0 0.0
        %1328 = vmatprep.subr.mxu0 0.0
        %1329 = vmatpush1.msra.mxu0 0.0
        %1330 = vmatprep.subr.mxu0 0.0
        %1331 = vmatpush1.msra.mxu0 0.0
        %1332 = vmatprep.subr.mxu0 0.0
        %1333 = vmatpush1.msra.mxu0 0.0
        %1334 = vmatprep.subr.mxu0 0.0
        %1335 = vmatpush1.msra.mxu0 0.0
        %1336 = vmatprep.subr.mxu0 0.0
        %1337 = vmatpush1.msra.mxu0 0.0
        %1338 = vmatprep.mubr.f32.mxu0 0.0
        %1339 = vmatmul.mubr.f32.gmra.mrb[0].mxu0 %v462
        %v1340 = vpop.f32.mrb[0].mxu0
        %v1341 = vadd.f32 0.0, %v1340
        %v1342 = vpop.f32.mrb[0].mxu0
        %v1343 = vadd.f32 0.0, %v1342
        %1344 = vdwg.mxu0
        %1345 = vmatprep.subr.mxu0 %v165
        %1346 = vmatpush1.msra.mxu0 %v164
        %1347 = vmatprep.subr.mxu0 %v269
        %1348 = vmatpush1.msra.mxu0 %v268
        %1349 = vmatprep.subr.mxu0 %v517
        %1350 = vmatpush1.msra.mxu0 %v514
        %1351 = vmatprep.subr.mxu0 0.0
        %1352 = vmatpush1.msra.mxu0 0.0
        %1353 = vmatprep.subr.mxu0 0.0
        %1354 = vmatpush1.msra.mxu0 0.0
        %1355 = vmatprep.subr.mxu0 0.0
        %1356 = vmatpush1.msra.mxu0 0.0
        %1357 = vmatprep.subr.mxu0 0.0
        %1358 = vmatpush1.msra.mxu0 0.0
        %1359 = vmatprep.subr.mxu0 0.0
        %1360 = vmatpush1.msra.mxu0 0.0
        %1361 = vmatprep.subr.mxu0 0.0
        %1362 = vmatpush1.msra.mxu0 0.0
        %1363 = vmatprep.subr.mxu0 0.0
        %1364 = vmatpush1.msra.mxu0 0.0
        %1365 = vmatprep.subr.mxu0 0.0
        %1366 = vmatpush1.msra.mxu0 0.0
        %1367 = vmatprep.subr.mxu0 0.0
        %1368 = vmatpush1.msra.mxu0 0.0
        %1369 = vmatprep.subr.mxu0 0.0
        %1370 = vmatpush1.msra.mxu0 0.0
        %1371 = vmatprep.subr.mxu0 0.0
        %1372 = vmatpush1.msra.mxu0 0.0
        %1373 = vmatprep.subr.mxu0 0.0
        %1374 = vmatpush1.msra.mxu0 0.0
        %1375 = vmatprep.subr.mxu0 0.0
        %1376 = vmatpush1.msra.mxu0 0.0
        %1377 = vmatprep.subr.mxu0 0.0
        %1378 = vmatpush1.msra.mxu0 0.0
        %1379 = vmatprep.subr.mxu0 0.0
        %1380 = vmatpush1.msra.mxu0 0.0
        %1381 = vmatprep.subr.mxu0 0.0
        %1382 = vmatpush1.msra.mxu0 0.0
        %1383 = vmatprep.subr.mxu0 0.0
        %1384 = vmatpush1.msra.mxu0 0.0
        %1385 = vmatprep.subr.mxu0 0.0
        %1386 = vmatpush1.msra.mxu0 0.0
        %1387 = vmatprep.subr.mxu0 0.0
        %1388 = vmatpush1.msra.mxu0 0.0
        %1389 = vmatprep.subr.mxu0 0.0
        %1390 = vmatpush1.msra.mxu0 0.0
        %1391 = vmatprep.subr.mxu0 0.0
        %1392 = vmatpush1.msra.mxu0 0.0
        %1393 = vmatprep.subr.mxu0 0.0
        %1394 = vmatpush1.msra.mxu0 0.0
        %1395 = vmatprep.subr.mxu0 0.0
        %1396 = vmatpush1.msra.mxu0 0.0
        %1397 = vmatprep.subr.mxu0 0.0
        %1398 = vmatpush1.msra.mxu0 0.0
        %1399 = vmatprep.subr.mxu0 0.0
        %1400 = vmatpush1.msra.mxu0 0.0
        %1401 = vmatprep.subr.mxu0 0.0
        %1402 = vmatpush1.msra.mxu0 0.0
        %1403 = vmatprep.subr.mxu0 0.0
        %1404 = vmatpush1.msra.mxu0 0.0
        %1405 = vmatprep.subr.mxu0 0.0
        %1406 = vmatpush1.msra.mxu0 0.0
        %1407 = vmatprep.subr.mxu0 0.0
        %1408 = vmatpush1.msra.mxu0 0.0
        %1409 = vmatprep.mubr.f32.mxu0 0.0
        %1410 = vmatmul.mubr.f32.gmra.mrb[0].mxu0 %v462
        %v1411 = vpop.f32.mrb[0].mxu0
        %v1412 = vadd.f32 0.0, %v1411
        %v1413 = vpop.f32.mrb[0].mxu0
        %v1414 = vadd.f32 0.0, %v1413
        %1415 = vdwg.mxu0
        %1416 = vmatprep.subr.mxu0 %v167
        %1417 = vmatpush1.msra.mxu0 %v166
        %1418 = vmatprep.subr.mxu0 %v271
        %1419 = vmatpush1.msra.mxu0 %v270
        %1420 = vmatprep.subr.mxu0 %v523
        %1421 = vmatpush1.msra.mxu0 %v520
        %1422 = vmatprep.subr.mxu0 0.0
        %1423 = vmatpush1.msra.mxu0 0.0
        %1424 = vmatprep.subr.mxu0 0.0
        %1425 = vmatpush1.msra.mxu0 0.0
        %1426 = vmatprep.subr.mxu0 0.0
        %1427 = vmatpush1.msra.mxu0 0.0
        %1428 = vmatprep.subr.mxu0 0.0
        %1429 = vmatpush1.msra.mxu0 0.0
        %1430 = vmatprep.subr.mxu0 0.0
        %1431 = vmatpush1.msra.mxu0 0.0
        %1432 = vmatprep.subr.mxu0 0.0
        %1433 = vmatpush1.msra.mxu0 0.0
        %1434 = vmatprep.subr.mxu0 0.0
        %1435 = vmatpush1.msra.mxu0 0.0
        %1436 = vmatprep.subr.mxu0 0.0
        %1437 = vmatpush1.msra.mxu0 0.0
        %1438 = vmatprep.subr.mxu0 0.0
        %1439 = vmatpush1.msra.mxu0 0.0
        %1440 = vmatprep.subr.mxu0 0.0
        %1441 = vmatpush1.msra.mxu0 0.0
        %1442 = vmatprep.subr.mxu0 0.0
        %1443 = vmatpush1.msra.mxu0 0.0
        %1444 = vmatprep.subr.mxu0 0.0
        %1445 = vmatpush1.msra.mxu0 0.0
        %1446 = vmatprep.subr.mxu0 0.0
        %1447 = vmatpush1.msra.mxu0 0.0
        %1448 = vmatprep.subr.mxu0 0.0
        %1449 = vmatpush1.msra.mxu0 0.0
        %1450 = vmatprep.subr.mxu0 0.0
        %1451 = vmatpush1.msra.mxu0 0.0
        %1452 = vmatprep.subr.mxu0 0.0
        %1453 = vmatpush1.msra.mxu0 0.0
        %1454 = vmatprep.subr.mxu0 0.0
        %1455 = vmatpush1.msra.mxu0 0.0
        %1456 = vmatprep.subr.mxu0 0.0
        %1457 = vmatpush1.msra.mxu0 0.0
        %1458 = vmatprep.subr.mxu0 0.0
        %1459 = vmatpush1.msra.mxu0 0.0
        %1460 = vmatprep.subr.mxu0 0.0
        %1461 = vmatpush1.msra.mxu0 0.0
        %1462 = vmatprep.subr.mxu0 0.0
        %1463 = vmatpush1.msra.mxu0 0.0
        %1464 = vmatprep.subr.mxu0 0.0
        %1465 = vmatpush1.msra.mxu0 0.0
        %1466 = vmatprep.subr.mxu0 0.0
        %1467 = vmatpush1.msra.mxu0 0.0
        %1468 = vmatprep.subr.mxu0 0.0
        %1469 = vmatpush1.msra.mxu0 0.0
        %1470 = vmatprep.subr.mxu0 0.0
        %1471 = vmatpush1.msra.mxu0 0.0
        %1472 = vmatprep.subr.mxu0 0.0
        %1473 = vmatpush1.msra.mxu0 0.0
        %1474 = vmatprep.subr.mxu0 0.0
        %1475 = vmatpush1.msra.mxu0 0.0
        %1476 = vmatprep.subr.mxu0 0.0
        %1477 = vmatpush1.msra.mxu0 0.0
        %1478 = vmatprep.subr.mxu0 0.0
        %1479 = vmatpush1.msra.mxu0 0.0
        %1480 = vmatprep.mubr.f32.mxu0 0.0
        %1481 = vmatmul.mubr.f32.gmra.mrb[0].mxu0 %v462
        %v1482 = vpop.f32.mrb[0].mxu0
        %v1483 = vadd.f32 0.0, %v1482
        %v1484 = vpop.f32.mrb[0].mxu0
        %v1485 = vadd.f32 0.0, %v1484
        %1486 = vdwg.mxu0
        %1487 = vmatprep.subr.mxu0 %v169
        %1488 = vmatpush1.msra.mxu0 %v168
        %1489 = vmatprep.subr.mxu0 %v273
        %1490 = vmatpush1.msra.mxu0 %v272
        %1491 = vmatprep.subr.mxu0 %v529
        %1492 = vmatpush1.msra.mxu0 %v526
        %1493 = vmatprep.subr.mxu0 0.0
        %1494 = vmatpush1.msra.mxu0 0.0
        %1495 = vmatprep.subr.mxu0 0.0
        %1496 = vmatpush1.msra.mxu0 0.0
        %1497 = vmatprep.subr.mxu0 0.0
        %1498 = vmatpush1.msra.mxu0 0.0
        %1499 = vmatprep.subr.mxu0 0.0
        %1500 = vmatpush1.msra.mxu0 0.0
        %1501 = vmatprep.subr.mxu0 0.0
        %1502 = vmatpush1.msra.mxu0 0.0
        %1503 = vmatprep.subr.mxu0 0.0
        %1504 = vmatpush1.msra.mxu0 0.0
        %1505 = vmatprep.subr.mxu0 0.0
        %1506 = vmatpush1.msra.mxu0 0.0
        %1507 = vmatprep.subr.mxu0 0.0
        %1508 = vmatpush1.msra.mxu0 0.0
        %1509 = vmatprep.subr.mxu0 0.0
        %1510 = vmatpush1.msra.mxu0 0.0
        %1511 = vmatprep.subr.mxu0 0.0
        %1512 = vmatpush1.msra.mxu0 0.0
        %1513 = vmatprep.subr.mxu0 0.0
        %1514 = vmatpush1.msra.mxu0 0.0
        %1515 = vmatprep.subr.mxu0 0.0
        %1516 = vmatpush1.msra.mxu0 0.0
        %1517 = vmatprep.subr.mxu0 0.0
        %1518 = vmatpush1.msra.mxu0 0.0
        %1519 = vmatprep.subr.mxu0 0.0
        %1520 = vmatpush1.msra.mxu0 0.0
        %1521 = vmatprep.subr.mxu0 0.0
        %1522 = vmatpush1.msra.mxu0 0.0
        %1523 = vmatprep.subr.mxu0 0.0
        %1524 = vmatpush1.msra.mxu0 0.0
        %1525 = vmatprep.subr.mxu0 0.0
        %1526 = vmatpush1.msra.mxu0 0.0
        %1527 = vmatprep.subr.mxu0 0.0
        %1528 = vmatpush1.msra.mxu0 0.0
        %1529 = vmatprep.subr.mxu0 0.0
        %1530 = vmatpush1.msra.mxu0 0.0
        %1531 = vmatprep.subr.mxu0 0.0
        %1532 = vmatpush1.msra.mxu0 0.0
        %1533 = vmatprep.subr.mxu0 0.0
        %1534 = vmatpush1.msra.mxu0 0.0
        %1535 = vmatprep.subr.mxu0 0.0
        %1536 = vmatpush1.msra.mxu0 0.0
        %1537 = vmatprep.subr.mxu0 0.0
        %1538 = vmatpush1.msra.mxu0 0.0
        %1539 = vmatprep.subr.mxu0 0.0
        %1540 = vmatpush1.msra.mxu0 0.0
        %1541 = vmatprep.subr.mxu0 0.0
        %1542 = vmatpush1.msra.mxu0 0.0
        %1543 = vmatprep.subr.mxu0 0.0
        %1544 = vmatpush1.msra.mxu0 0.0
        %1545 = vmatprep.subr.mxu0 0.0
        %1546 = vmatpush1.msra.mxu0 0.0
        %1547 = vmatprep.subr.mxu0 0.0
        %1548 = vmatpush1.msra.mxu0 0.0
        %1549 = vmatprep.subr.mxu0 0.0
        %1550 = vmatpush1.msra.mxu0 0.0
        %1551 = vmatprep.mubr.f32.mxu0 0.0
        %1552 = vmatmul.mubr.f32.gmra.mrb[0].mxu0 %v462
        %v1553 = vpop.f32.mrb[0].mxu0
        %v1554 = vadd.f32 0.0, %v1553
        %v1555 = vpop.f32.mrb[0].mxu0
        %v1556 = vadd.f32 0.0, %v1555
        %1557 = vdwg.mxu0
        %1558 = vmatprep.subr.mxu0 %v171
        %1559 = vmatpush1.msra.mxu0 %v170
        %1560 = vmatprep.subr.mxu0 %v275
        %1561 = vmatpush1.msra.mxu0 %v274
        %1562 = vmatprep.subr.mxu0 %v535
        %1563 = vmatpush1.msra.mxu0 %v532
        %1564 = vmatprep.subr.mxu0 0.0
        %1565 = vmatpush1.msra.mxu0 0.0
        %1566 = vmatprep.subr.mxu0 0.0
        %1567 = vmatpush1.msra.mxu0 0.0
        %1568 = vmatprep.subr.mxu0 0.0
        %1569 = vmatpush1.msra.mxu0 0.0
        %1570 = vmatprep.subr.mxu0 0.0
        %1571 = vmatpush1.msra.mxu0 0.0
        %1572 = vmatprep.subr.mxu0 0.0
        %1573 = vmatpush1.msra.mxu0 0.0
        %1574 = vmatprep.subr.mxu0 0.0
        %1575 = vmatpush1.msra.mxu0 0.0
        %1576 = vmatprep.subr.mxu0 0.0
        %1577 = vmatpush1.msra.mxu0 0.0
        %1578 = vmatprep.subr.mxu0 0.0
        %1579 = vmatpush1.msra.mxu0 0.0
        %1580 = vmatprep.subr.mxu0 0.0
        %1581 = vmatpush1.msra.mxu0 0.0
        %1582 = vmatprep.subr.mxu0 0.0
        %1583 = vmatpush1.msra.mxu0 0.0
        %1584 = vmatprep.subr.mxu0 0.0
        %1585 = vmatpush1.msra.mxu0 0.0
        %1586 = vmatprep.subr.mxu0 0.0
        %1587 = vmatpush1.msra.mxu0 0.0
        %1588 = vmatprep.subr.mxu0 0.0
        %1589 = vmatpush1.msra.mxu0 0.0
        %1590 = vmatprep.subr.mxu0 0.0
        %1591 = vmatpush1.msra.mxu0 0.0
        %1592 = vmatprep.subr.mxu0 0.0
        %1593 = vmatpush1.msra.mxu0 0.0
        %1594 = vmatprep.subr.mxu0 0.0
        %1595 = vmatpush1.msra.mxu0 0.0
        %1596 = vmatprep.subr.mxu0 0.0
        %1597 = vmatpush1.msra.mxu0 0.0
        %1598 = vmatprep.subr.mxu0 0.0
        %1599 = vmatpush1.msra.mxu0 0.0
        %1600 = vmatprep.subr.mxu0 0.0
        %1601 = vmatpush1.msra.mxu0 0.0
        %1602 = vmatprep.subr.mxu0 0.0
        %1603 = vmatpush1.msra.mxu0 0.0
        %1604 = vmatprep.subr.mxu0 0.0
        %1605 = vmatpush1.msra.mxu0 0.0
        %1606 = vmatprep.subr.mxu0 0.0
        %1607 = vmatpush1.msra.mxu0 0.0
        %1608 = vmatprep.subr.mxu0 0.0
        %1609 = vmatpush1.msra.mxu0 0.0
        %1610 = vmatprep.subr.mxu0 0.0
        %1611 = vmatpush1.msra.mxu0 0.0
        %1612 = vmatprep.subr.mxu0 0.0
        %1613 = vmatpush1.msra.mxu0 0.0
        %1614 = vmatprep.subr.mxu0 0.0
        %1615 = vmatpush1.msra.mxu0 0.0
        %1616 = vmatprep.subr.mxu0 0.0
        %1617 = vmatpush1.msra.mxu0 0.0
        %1618 = vmatprep.subr.mxu0 0.0
        %1619 = vmatpush1.msra.mxu0 0.0
        %1620 = vmatprep.subr.mxu0 0.0
        %1621 = vmatpush1.msra.mxu0 0.0
        %1622 = vmatprep.mubr.f32.mxu0 0.0
        %1623 = vmatmul.mubr.f32.gmra.mrb[0].mxu0 %v462
        %v1624 = vpop.f32.mrb[0].mxu0
        %v1625 = vadd.f32 0.0, %v1624
        %v1626 = vpop.f32.mrb[0].mxu0
        %v1627 = vadd.f32 0.0, %v1626
        %1628 = vdwg.mxu0
        %1629 = vmatprep.subr.mxu0 %v173
        %1630 = vmatpush1.msra.mxu0 %v172
        %1631 = vmatprep.subr.mxu0 %v277
        %1632 = vmatpush1.msra.mxu0 %v276
        %1633 = vmatprep.subr.mxu0 %v541
        %1634 = vmatpush1.msra.mxu0 %v538
        %1635 = vmatprep.subr.mxu0 0.0
        %1636 = vmatpush1.msra.mxu0 0.0
        %1637 = vmatprep.subr.mxu0 0.0
        %1638 = vmatpush1.msra.mxu0 0.0
        %1639 = vmatprep.subr.mxu0 0.0
        %1640 = vmatpush1.msra.mxu0 0.0
        %1641 = vmatprep.subr.mxu0 0.0
        %1642 = vmatpush1.msra.mxu0 0.0
        %1643 = vmatprep.subr.mxu0 0.0
        %1644 = vmatpush1.msra.mxu0 0.0
        %1645 = vmatprep.subr.mxu0 0.0
        %1646 = vmatpush1.msra.mxu0 0.0
        %1647 = vmatprep.subr.mxu0 0.0
        %1648 = vmatpush1.msra.mxu0 0.0
        %1649 = vmatprep.subr.mxu0 0.0
        %1650 = vmatpush1.msra.mxu0 0.0
        %1651 = vmatprep.subr.mxu0 0.0
        %1652 = vmatpush1.msra.mxu0 0.0
        %1653 = vmatprep.subr.mxu0 0.0
        %1654 = vmatpush1.msra.mxu0 0.0
        %1655 = vmatprep.subr.mxu0 0.0
        %1656 = vmatpush1.msra.mxu0 0.0
        %1657 = vmatprep.subr.mxu0 0.0
        %1658 = vmatpush1.msra.mxu0 0.0
        %1659 = vmatprep.subr.mxu0 0.0
        %1660 = vmatpush1.msra.mxu0 0.0
        %1661 = vmatprep.subr.mxu0 0.0
        %1662 = vmatpush1.msra.mxu0 0.0
        %1663 = vmatprep.subr.mxu0 0.0
        %1664 = vmatpush1.msra.mxu0 0.0
        %1665 = vmatprep.subr.mxu0 0.0
        %1666 = vmatpush1.msra.mxu0 0.0
        %1667 = vmatprep.subr.mxu0 0.0
        %1668 = vmatpush1.msra.mxu0 0.0
        %1669 = vmatprep.subr.mxu0 0.0
        %1670 = vmatpush1.msra.mxu0 0.0
        %1671 = vmatprep.subr.mxu0 0.0
        %1672 = vmatpush1.msra.mxu0 0.0
        %1673 = vmatprep.subr.mxu0 0.0
        %1674 = vmatpush1.msra.mxu0 0.0
        %1675 = vmatprep.subr.mxu0 0.0
        %1676 = vmatpush1.msra.mxu0 0.0
        %1677 = vmatprep.subr.mxu0 0.0
        %1678 = vmatpush1.msra.mxu0 0.0
        %1679 = vmatprep.subr.mxu0 0.0
        %1680 = vmatpush1.msra.mxu0 0.0
        %1681 = vmatprep.subr.mxu0 0.0
        %1682 = vmatpush1.msra.mxu0 0.0
        %1683 = vmatprep.subr.mxu0 0.0
        %1684 = vmatpush1.msra.mxu0 0.0
        %1685 = vmatprep.subr.mxu0 0.0
        %1686 = vmatpush1.msra.mxu0 0.0
        %1687 = vmatprep.subr.mxu0 0.0
        %1688 = vmatpush1.msra.mxu0 0.0
        %1689 = vmatprep.subr.mxu0 0.0
        %1690 = vmatpush1.msra.mxu0 0.0
        %1691 = vmatprep.subr.mxu0 0.0
        %1692 = vmatpush1.msra.mxu0 0.0
        %1693 = vmatprep.mubr.f32.mxu0 0.0
        %1694 = vmatmul.mubr.f32.gmra.mrb[0].mxu0 %v462
        %v1695 = vpop.f32.mrb[0].mxu0
        %v1696 = vadd.f32 0.0, %v1695
        %v1697 = vpop.f32.mrb[0].mxu0
        %v1698 = vadd.f32 0.0, %v1697
        %1699 = vdwg.mxu0
        %1700 = vmatprep.subr.mxu0 %v175
        %1701 = vmatpush1.msra.mxu0 %v174
        %1702 = vmatprep.subr.mxu0 %v279
        %1703 = vmatpush1.msra.mxu0 %v278
        %1704 = vmatprep.subr.mxu0 %v547
        %1705 = vmatpush1.msra.mxu0 %v544
        %1706 = vmatprep.subr.mxu0 0.0
        %1707 = vmatpush1.msra.mxu0 0.0
        %1708 = vmatprep.subr.mxu0 0.0
        %1709 = vmatpush1.msra.mxu0 0.0
        %1710 = vmatprep.subr.mxu0 0.0
        %1711 = vmatpush1.msra.mxu0 0.0
        %1712 = vmatprep.subr.mxu0 0.0
        %1713 = vmatpush1.msra.mxu0 0.0
        %1714 = vmatprep.subr.mxu0 0.0
        %1715 = vmatpush1.msra.mxu0 0.0
        %1716 = vmatprep.subr.mxu0 0.0
        %1717 = vmatpush1.msra.mxu0 0.0
        %1718 = vmatprep.subr.mxu0 0.0
        %1719 = vmatpush1.msra.mxu0 0.0
        %1720 = vmatprep.subr.mxu0 0.0
        %1721 = vmatpush1.msra.mxu0 0.0
        %1722 = vmatprep.subr.mxu0 0.0
        %1723 = vmatpush1.msra.mxu0 0.0
        %1724 = vmatprep.subr.mxu0 0.0
        %1725 = vmatpush1.msra.mxu0 0.0
        %1726 = vmatprep.subr.mxu0 0.0
        %1727 = vmatpush1.msra.mxu0 0.0
        %1728 = vmatprep.subr.mxu0 0.0
        %1729 = vmatpush1.msra.mxu0 0.0
        %1730 = vmatprep.subr.mxu0 0.0
        %1731 = vmatpush1.msra.mxu0 0.0
        %1732 = vmatprep.subr.mxu0 0.0
        %1733 = vmatpush1.msra.mxu0 0.0
        %1734 = vmatprep.subr.mxu0 0.0
        %1735 = vmatpush1.msra.mxu0 0.0
        %1736 = vmatprep.subr.mxu0 0.0
        %1737 = vmatpush1.msra.mxu0 0.0
        %1738 = vmatprep.subr.mxu0 0.0
        %1739 = vmatpush1.msra.mxu0 0.0
        %1740 = vmatprep.subr.mxu0 0.0
        %1741 = vmatpush1.msra.mxu0 0.0
        %1742 = vmatprep.subr.mxu0 0.0
        %1743 = vmatpush1.msra.mxu0 0.0
        %1744 = vmatprep.subr.mxu0 0.0
        %1745 = vmatpush1.msra.mxu0 0.0
        %1746 = vmatprep.subr.mxu0 0.0
        %1747 = vmatpush1.msra.mxu0 0.0
        %1748 = vmatprep.subr.mxu0 0.0
        %1749 = vmatpush1.msra.mxu0 0.0
        %1750 = vmatprep.subr.mxu0 0.0
        %1751 = vmatpush1.msra.mxu0 0.0
        %1752 = vmatprep.subr.mxu0 0.0
        %1753 = vmatpush1.msra.mxu0 0.0
        %1754 = vmatprep.subr.mxu0 0.0
        %1755 = vmatpush1.msra.mxu0 0.0
        %1756 = vmatprep.subr.mxu0 0.0
        %1757 = vmatpush1.msra.mxu0 0.0
        %1758 = vmatprep.subr.mxu0 0.0
        %1759 = vmatpush1.msra.mxu0 0.0
        %1760 = vmatprep.subr.mxu0 0.0
        %1761 = vmatpush1.msra.mxu0 0.0
        %1762 = vmatprep.subr.mxu0 0.0
        %1763 = vmatpush1.msra.mxu0 0.0
        %1764 = vmatprep.mubr.f32.mxu0 0.0
        %1765 = vmatmul.mubr.f32.gmra.mrb[0].mxu0 %v462
        %v1766 = vpop.f32.mrb[0].mxu0
        %v1767 = vadd.f32 0.0, %v1766
        %v1768 = vpop.f32.mrb[0].mxu0
        %v1769 = vadd.f32 0.0, %v1768
        %1770 = vdwg.mxu0
        %1771 = vmatprep.subr.mxu0 %v177
        %1772 = vmatpush1.msra.mxu0 %v176
        %1773 = vmatprep.subr.mxu0 %v281
        %1774 = vmatpush1.msra.mxu0 %v280
        %1775 = vmatprep.subr.mxu0 %v553
        %1776 = vmatpush1.msra.mxu0 %v550
        %1777 = vmatprep.subr.mxu0 0.0
        %1778 = vmatpush1.msra.mxu0 0.0
        %1779 = vmatprep.subr.mxu0 0.0
        %1780 = vmatpush1.msra.mxu0 0.0
        %1781 = vmatprep.subr.mxu0 0.0
        %1782 = vmatpush1.msra.mxu0 0.0
        %1783 = vmatprep.subr.mxu0 0.0
        %1784 = vmatpush1.msra.mxu0 0.0
        %1785 = vmatprep.subr.mxu0 0.0
        %1786 = vmatpush1.msra.mxu0 0.0
        %1787 = vmatprep.subr.mxu0 0.0
        %1788 = vmatpush1.msra.mxu0 0.0
        %1789 = vmatprep.subr.mxu0 0.0
        %1790 = vmatpush1.msra.mxu0 0.0
        %1791 = vmatprep.subr.mxu0 0.0
        %1792 = vmatpush1.msra.mxu0 0.0
        %1793 = vmatprep.subr.mxu0 0.0
        %1794 = vmatpush1.msra.mxu0 0.0
        %1795 = vmatprep.subr.mxu0 0.0
        %1796 = vmatpush1.msra.mxu0 0.0
        %1797 = vmatprep.subr.mxu0 0.0
        %1798 = vmatpush1.msra.mxu0 0.0
        %1799 = vmatprep.subr.mxu0 0.0
        %1800 = vmatpush1.msra.mxu0 0.0
        %1801 = vmatprep.subr.mxu0 0.0
        %1802 = vmatpush1.msra.mxu0 0.0
        %1803 = vmatprep.subr.mxu0 0.0
        %1804 = vmatpush1.msra.mxu0 0.0
        %1805 = vmatprep.subr.mxu0 0.0
        %1806 = vmatpush1.msra.mxu0 0.0
        %1807 = vmatprep.subr.mxu0 0.0
        %1808 = vmatpush1.msra.mxu0 0.0
        %1809 = vmatprep.subr.mxu0 0.0
        %1810 = vmatpush1.msra.mxu0 0.0
        %1811 = vmatprep.subr.mxu0 0.0
        %1812 = vmatpush1.msra.mxu0 0.0
        %1813 = vmatprep.subr.mxu0 0.0
        %1814 = vmatpush1.msra.mxu0 0.0
        %1815 = vmatprep.subr.mxu0 0.0
        %1816 = vmatpush1.msra.mxu0 0.0
        %1817 = vmatprep.subr.mxu0 0.0
        %1818 = vmatpush1.msra.mxu0 0.0
        %1819 = vmatprep.subr.mxu0 0.0
        %1820 = vmatpush1.msra.mxu0 0.0
        %1821 = vmatprep.subr.mxu0 0.0
        %1822 = vmatpush1.msra.mxu0 0.0
        %1823 = vmatprep.subr.mxu0 0.0
        %1824 = vmatpush1.msra.mxu0 0.0
        %1825 = vmatprep.subr.mxu0 0.0
        %1826 = vmatpush1.msra.mxu0 0.0
        %1827 = vmatprep.subr.mxu0 0.0
        %1828 = vmatpush1.msra.mxu0 0.0
        %1829 = vmatprep.subr.mxu0 0.0
        %1830 = vmatpush1.msra.mxu0 0.0
        %1831 = vmatprep.subr.mxu0 0.0
        %1832 = vmatpush1.msra.mxu0 0.0
        %1833 = vmatprep.subr.mxu0 0.0
        %1834 = vmatpush1.msra.mxu0 0.0
        %1835 = vmatprep.mubr.f32.mxu0 0.0
        %1836 = vmatmul.mubr.f32.gmra.mrb[0].mxu0 %v462
        %v1837 = vpop.f32.mrb[0].mxu0
        %v1838 = vadd.f32 0.0, %v1837
        %v1839 = vpop.f32.mrb[0].mxu0
        %v1840 = vadd.f32 0.0, %v1839
        %1841 = vdwg.mxu0
        %1842 = vmatprep.subr.mxu0 %v179
        %1843 = vmatpush1.msra.mxu0 %v178
        %1844 = vmatprep.subr.mxu0 %v283
        %1845 = vmatpush1.msra.mxu0 %v282
        %1846 = vmatprep.subr.mxu0 %v559
        %1847 = vmatpush1.msra.mxu0 %v556
        %1848 = vmatprep.subr.mxu0 0.0
        %1849 = vmatpush1.msra.mxu0 0.0
        %1850 = vmatprep.subr.mxu0 0.0
        %1851 = vmatpush1.msra.mxu0 0.0
        %1852 = vmatprep.subr.mxu0 0.0
        %1853 = vmatpush1.msra.mxu0 0.0
        %1854 = vmatprep.subr.mxu0 0.0
        %1855 = vmatpush1.msra.mxu0 0.0
        %1856 = vmatprep.subr.mxu0 0.0
        %1857 = vmatpush1.msra.mxu0 0.0
        %1858 = vmatprep.subr.mxu0 0.0
        %1859 = vmatpush1.msra.mxu0 0.0
        %1860 = vmatprep.subr.mxu0 0.0
        %1861 = vmatpush1.msra.mxu0 0.0
        %1862 = vmatprep.subr.mxu0 0.0
        %1863 = vmatpush1.msra.mxu0 0.0
        %1864 = vmatprep.subr.mxu0 0.0
        %1865 = vmatpush1.msra.mxu0 0.0
        %1866 = vmatprep.subr.mxu0 0.0
        %1867 = vmatpush1.msra.mxu0 0.0
        %1868 = vmatprep.subr.mxu0 0.0
        %1869 = vmatpush1.msra.mxu0 0.0
        %1870 = vmatprep.subr.mxu0 0.0
        %1871 = vmatpush1.msra.mxu0 0.0
        %1872 = vmatprep.subr.mxu0 0.0
        %1873 = vmatpush1.msra.mxu0 0.0
        %1874 = vmatprep.subr.mxu0 0.0
        %1875 = vmatpush1.msra.mxu0 0.0
        %1876 = vmatprep.subr.mxu0 0.0
        %1877 = vmatpush1.msra.mxu0 0.0
        %1878 = vmatprep.subr.mxu0 0.0
        %1879 = vmatpush1.msra.mxu0 0.0
        %1880 = vmatprep.subr.mxu0 0.0
        %1881 = vmatpush1.msra.mxu0 0.0
        %1882 = vmatprep.subr.mxu0 0.0
        %1883 = vmatpush1.msra.mxu0 0.0
        %1884 = vmatprep.subr.mxu0 0.0
        %1885 = vmatpush1.msra.mxu0 0.0
        %1886 = vmatprep.subr.mxu0 0.0
        %1887 = vmatpush1.msra.mxu0 0.0
        %1888 = vmatprep.subr.mxu0 0.0
        %1889 = vmatpush1.msra.mxu0 0.0
        %1890 = vmatprep.subr.mxu0 0.0
        %1891 = vmatpush1.msra.mxu0 0.0
        %1892 = vmatprep.subr.mxu0 0.0
        %1893 = vmatpush1.msra.mxu0 0.0
        %1894 = vmatprep.subr.mxu0 0.0
        %1895 = vmatpush1.msra.mxu0 0.0
        %1896 = vmatprep.subr.mxu0 0.0
        %1897 = vmatpush1.msra.mxu0 0.0
        %1898 = vmatprep.subr.mxu0 0.0
        %1899 = vmatpush1.msra.mxu0 0.0
        %1900 = vmatprep.subr.mxu0 0.0
        %1901 = vmatpush1.msra.mxu0 0.0
        %1902 = vmatprep.subr.mxu0 0.0
        %1903 = vmatpush1.msra.mxu0 0.0
        %1904 = vmatprep.subr.mxu0 0.0
        %1905 = vmatpush1.msra.mxu0 0.0
        %1906 = vmatprep.mubr.f32.mxu0 0.0
        %1907 = vmatmul.mubr.f32.gmra.mrb[0].mxu0 %v462
        %v1908 = vpop.f32.mrb[0].mxu0
        %v1909 = vadd.f32 0.0, %v1908
        %v1910 = vpop.f32.mrb[0].mxu0
        %v1911 = vadd.f32 0.0, %v1910
        %1912 = vdwg.mxu0
        %1913 = vmatprep.subr.mxu0 %v181
        %1914 = vmatpush1.msra.mxu0 %v180
        %1915 = vmatprep.subr.mxu0 %v285
        %1916 = vmatpush1.msra.mxu0 %v284
        %1917 = vmatprep.subr.mxu0 %v565
        %1918 = vmatpush1.msra.mxu0 %v562
        %1919 = vmatprep.subr.mxu0 0.0
        %1920 = vmatpush1.msra.mxu0 0.0
        %1921 = vmatprep.subr.mxu0 0.0
        %1922 = vmatpush1.msra.mxu0 0.0
        %1923 = vmatprep.subr.mxu0 0.0
        %1924 = vmatpush1.msra.mxu0 0.0
        %1925 = vmatprep.subr.mxu0 0.0
        %1926 = vmatpush1.msra.mxu0 0.0
        %1927 = vmatprep.subr.mxu0 0.0
        %1928 = vmatpush1.msra.mxu0 0.0
        %1929 = vmatprep.subr.mxu0 0.0
        %1930 = vmatpush1.msra.mxu0 0.0
        %1931 = vmatprep.subr.mxu0 0.0
        %1932 = vmatpush1.msra.mxu0 0.0
        %1933 = vmatprep.subr.mxu0 0.0
        %1934 = vmatpush1.msra.mxu0 0.0
        %1935 = vmatprep.subr.mxu0 0.0
        %1936 = vmatpush1.msra.mxu0 0.0
        %1937 = vmatprep.subr.mxu0 0.0
        %1938 = vmatpush1.msra.mxu0 0.0
        %1939 = vmatprep.subr.mxu0 0.0
        %1940 = vmatpush1.msra.mxu0 0.0
        %1941 = vmatprep.subr.mxu0 0.0
        %1942 = vmatpush1.msra.mxu0 0.0
        %1943 = vmatprep.subr.mxu0 0.0
        %1944 = vmatpush1.msra.mxu0 0.0
        %1945 = vmatprep.subr.mxu0 0.0
        %1946 = vmatpush1.msra.mxu0 0.0
        %1947 = vmatprep.subr.mxu0 0.0
        %1948 = vmatpush1.msra.mxu0 0.0
        %1949 = vmatprep.subr.mxu0 0.0
        %1950 = vmatpush1.msra.mxu0 0.0
        %1951 = vmatprep.subr.mxu0 0.0
        %1952 = vmatpush1.msra.mxu0 0.0
        %1953 = vmatprep.subr.mxu0 0.0
        %1954 = vmatpush1.msra.mxu0 0.0
        %1955 = vmatprep.subr.mxu0 0.0
        %1956 = vmatpush1.msra.mxu0 0.0
        %1957 = vmatprep.subr.mxu0 0.0
        %1958 = vmatpush1.msra.mxu0 0.0
        %1959 = vmatprep.subr.mxu0 0.0
        %1960 = vmatpush1.msra.mxu0 0.0
        %1961 = vmatprep.subr.mxu0 0.0
        %1962 = vmatpush1.msra.mxu0 0.0
        %1963 = vmatprep.subr.mxu0 0.0
        %1964 = vmatpush1.msra.mxu0 0.0
        %1965 = vmatprep.subr.mxu0 0.0
        %1966 = vmatpush1.msra.mxu0 0.0
        %1967 = vmatprep.subr.mxu0 0.0
        %1968 = vmatpush1.msra.mxu0 0.0
        %1969 = vmatprep.subr.mxu0 0.0
        %1970 = vmatpush1.msra.mxu0 0.0
        %1971 = vmatprep.subr.mxu0 0.0
        %1972 = vmatpush1.msra.mxu0 0.0
        %1973 = vmatprep.subr.mxu0 0.0
        %1974 = vmatpush1.msra.mxu0 0.0
        %1975 = vmatprep.subr.mxu0 0.0
        %1976 = vmatpush1.msra.mxu0 0.0
        %1977 = vmatprep.mubr.f32.mxu0 0.0
        %1978 = vmatmul.mubr.f32.gmra.mrb[0].mxu0 %v462
        %v1979 = vpop.f32.mrb[0].mxu0
        %v1980 = vadd.f32 0.0, %v1979
        %v1981 = vpop.f32.mrb[0].mxu0
        %v1982 = vadd.f32 0.0, %v1981
        %1983 = vdwg.mxu0
        %1984 = vmatprep.subr.mxu0 %v183
        %1985 = vmatpush1.msra.mxu0 %v182
        %1986 = vmatprep.subr.mxu0 %v287
        %1987 = vmatpush1.msra.mxu0 %v286
        %1988 = vmatprep.subr.mxu0 %v571
        %1989 = vmatpush1.msra.mxu0 %v568
        %1990 = vmatprep.subr.mxu0 0.0
        %1991 = vmatpush1.msra.mxu0 0.0
        %1992 = vmatprep.subr.mxu0 0.0
        %1993 = vmatpush1.msra.mxu0 0.0
        %1994 = vmatprep.subr.mxu0 0.0
        %1995 = vmatpush1.msra.mxu0 0.0
        %1996 = vmatprep.subr.mxu0 0.0
        %1997 = vmatpush1.msra.mxu0 0.0
        %1998 = vmatprep.subr.mxu0 0.0
        %1999 = vmatpush1.msra.mxu0 0.0
        %2000 = vmatprep.subr.mxu0 0.0
        %2001 = vmatpush1.msra.mxu0 0.0
        %2002 = vmatprep.subr.mxu0 0.0
        %2003 = vmatpush1.msra.mxu0 0.0
        %2004 = vmatprep.subr.mxu0 0.0
        %2005 = vmatpush1.msra.mxu0 0.0
        %2006 = vmatprep.subr.mxu0 0.0
        %2007 = vmatpush1.msra.mxu0 0.0
        %2008 = vmatprep.subr.mxu0 0.0
        %2009 = vmatpush1.msra.mxu0 0.0
        %2010 = vmatprep.subr.mxu0 0.0
        %2011 = vmatpush1.msra.mxu0 0.0
        %2012 = vmatprep.subr.mxu0 0.0
        %2013 = vmatpush1.msra.mxu0 0.0
        %2014 = vmatprep.subr.mxu0 0.0
        %2015 = vmatpush1.msra.mxu0 0.0
        %2016 = vmatprep.subr.mxu0 0.0
        %2017 = vmatpush1.msra.mxu0 0.0
        %2018 = vmatprep.subr.mxu0 0.0
        %2019 = vmatpush1.msra.mxu0 0.0
        %2020 = vmatprep.subr.mxu0 0.0
        %2021 = vmatpush1.msra.mxu0 0.0
        %2022 = vmatprep.subr.mxu0 0.0
        %2023 = vmatpush1.msra.mxu0 0.0
        %2024 = vmatprep.subr.mxu0 0.0
        %2025 = vmatpush1.msra.mxu0 0.0
        %2026 = vmatprep.subr.mxu0 0.0
        %2027 = vmatpush1.msra.mxu0 0.0
        %2028 = vmatprep.subr.mxu0 0.0
        %2029 = vmatpush1.msra.mxu0 0.0
        %2030 = vmatprep.subr.mxu0 0.0
        %2031 = vmatpush1.msra.mxu0 0.0
        %2032 = vmatprep.subr.mxu0 0.0
        %2033 = vmatpush1.msra.mxu0 0.0
        %2034 = vmatprep.subr.mxu0 0.0
        %2035 = vmatpush1.msra.mxu0 0.0
        %2036 = vmatprep.subr.mxu0 0.0
        %2037 = vmatpush1.msra.mxu0 0.0
        %2038 = vmatprep.subr.mxu0 0.0
        %2039 = vmatpush1.msra.mxu0 0.0
        %2040 = vmatprep.subr.mxu0 0.0
        %2041 = vmatpush1.msra.mxu0 0.0
        %2042 = vmatprep.subr.mxu0 0.0
        %2043 = vmatpush1.msra.mxu0 0.0
        %2044 = vmatprep.subr.mxu0 0.0
        %2045 = vmatpush1.msra.mxu0 0.0
        %2046 = vmatprep.subr.mxu0 0.0
        %2047 = vmatpush1.msra.mxu0 0.0
        %2048 = vmatprep.mubr.f32.mxu0 0.0
        %2049 = vmatmul.mubr.f32.gmra.mrb[0].mxu0 %v462
        %v2050 = vpop.f32.mrb[0].mxu0
        %v2051 = vadd.f32 0.0, %v2050
        %v2052 = vpop.f32.mrb[0].mxu0
        %v2053 = vadd.f32 0.0, %v2052
        %2054 = vdwg.mxu0
        %2055 = vmatprep.subr.mxu0 %v185
        %2056 = vmatpush1.msra.mxu0 %v184
        %2057 = vmatprep.subr.mxu0 %v289
        %2058 = vmatpush1.msra.mxu0 %v288
        %2059 = vmatprep.subr.mxu0 %v577
        %2060 = vmatpush1.msra.mxu0 %v574
        %2061 = vmatprep.subr.mxu0 0.0
        %2062 = vmatpush1.msra.mxu0 0.0
        %2063 = vmatprep.subr.mxu0 0.0
        %2064 = vmatpush1.msra.mxu0 0.0
        %2065 = vmatprep.subr.mxu0 0.0
        %2066 = vmatpush1.msra.mxu0 0.0
        %2067 = vmatprep.subr.mxu0 0.0
        %2068 = vmatpush1.msra.mxu0 0.0
        %2069 = vmatprep.subr.mxu0 0.0
        %2070 = vmatpush1.msra.mxu0 0.0
        %2071 = vmatprep.subr.mxu0 0.0
        %2072 = vmatpush1.msra.mxu0 0.0
        %2073 = vmatprep.subr.mxu0 0.0
        %2074 = vmatpush1.msra.mxu0 0.0
        %2075 = vmatprep.subr.mxu0 0.0
        %2076 = vmatpush1.msra.mxu0 0.0
        %2077 = vmatprep.subr.mxu0 0.0
        %2078 = vmatpush1.msra.mxu0 0.0
        %2079 = vmatprep.subr.mxu0 0.0
        %2080 = vmatpush1.msra.mxu0 0.0
        %2081 = vmatprep.subr.mxu0 0.0
        %2082 = vmatpush1.msra.mxu0 0.0
        %2083 = vmatprep.subr.mxu0 0.0
        %2084 = vmatpush1.msra.mxu0 0.0
        %2085 = vmatprep.subr.mxu0 0.0
        %2086 = vmatpush1.msra.mxu0 0.0
        %2087 = vmatprep.subr.mxu0 0.0
        %2088 = vmatpush1.msra.mxu0 0.0
        %2089 = vmatprep.subr.mxu0 0.0
        %2090 = vmatpush1.msra.mxu0 0.0
        %2091 = vmatprep.subr.mxu0 0.0
        %2092 = vmatpush1.msra.mxu0 0.0
        %2093 = vmatprep.subr.mxu0 0.0
        %2094 = vmatpush1.msra.mxu0 0.0
        %2095 = vmatprep.subr.mxu0 0.0
        %2096 = vmatpush1.msra.mxu0 0.0
        %2097 = vmatprep.subr.mxu0 0.0
        %2098 = vmatpush1.msra.mxu0 0.0
        %2099 = vmatprep.subr.mxu0 0.0
        %2100 = vmatpush1.msra.mxu0 0.0
        %2101 = vmatprep.subr.mxu0 0.0
        %2102 = vmatpush1.msra.mxu0 0.0
        %2103 = vmatprep.subr.mxu0 0.0
        %2104 = vmatpush1.msra.mxu0 0.0
        %2105 = vmatprep.subr.mxu0 0.0
        %2106 = vmatpush1.msra.mxu0 0.0
        %2107 = vmatprep.subr.mxu0 0.0
        %2108 = vmatpush1.msra.mxu0 0.0
        %2109 = vmatprep.subr.mxu0 0.0
        %2110 = vmatpush1.msra.mxu0 0.0
        %2111 = vmatprep.subr.mxu0 0.0
        %2112 = vmatpush1.msra.mxu0 0.0
        %2113 = vmatprep.subr.mxu0 0.0
        %2114 = vmatpush1.msra.mxu0 0.0
        %2115 = vmatprep.subr.mxu0 0.0
        %2116 = vmatpush1.msra.mxu0 0.0
        %2117 = vmatprep.subr.mxu0 0.0
        %2118 = vmatpush1.msra.mxu0 0.0
        %2119 = vmatprep.mubr.f32.mxu0 0.0
        %2120 = vmatmul.mubr.f32.gmra.mrb[0].mxu0 %v462
        %v2121 = vpop.f32.mrb[0].mxu0
        %v2122 = vadd.f32 0.0, %v2121
        %v2123 = vpop.f32.mrb[0].mxu0
        %v2124 = vadd.f32 0.0, %v2123
        %2125 = vdwg.mxu0
        %2126 = vmatprep.subr.mxu0 %v187
        %2127 = vmatpush1.msra.mxu0 %v186
        %2128 = vmatprep.subr.mxu0 %v291
        %2129 = vmatpush1.msra.mxu0 %v290
        %2130 = vmatprep.subr.mxu0 %v583
        %2131 = vmatpush1.msra.mxu0 %v580
        %2132 = vmatprep.subr.mxu0 0.0
        %2133 = vmatpush1.msra.mxu0 0.0
        %2134 = vmatprep.subr.mxu0 0.0
        %2135 = vmatpush1.msra.mxu0 0.0
        %2136 = vmatprep.subr.mxu0 0.0
        %2137 = vmatpush1.msra.mxu0 0.0
        %2138 = vmatprep.subr.mxu0 0.0
        %2139 = vmatpush1.msra.mxu0 0.0
        %2140 = vmatprep.subr.mxu0 0.0
        %2141 = vmatpush1.msra.mxu0 0.0
        %2142 = vmatprep.subr.mxu0 0.0
        %2143 = vmatpush1.msra.mxu0 0.0
        %2144 = vmatprep.subr.mxu0 0.0
        %2145 = vmatpush1.msra.mxu0 0.0
        %2146 = vmatprep.subr.mxu0 0.0
        %2147 = vmatpush1.msra.mxu0 0.0
        %2148 = vmatprep.subr.mxu0 0.0
        %2149 = vmatpush1.msra.mxu0 0.0
        %2150 = vmatprep.subr.mxu0 0.0
        %2151 = vmatpush1.msra.mxu0 0.0
        %2152 = vmatprep.subr.mxu0 0.0
        %2153 = vmatpush1.msra.mxu0 0.0
        %2154 = vmatprep.subr.mxu0 0.0
        %2155 = vmatpush1.msra.mxu0 0.0
        %2156 = vmatprep.subr.mxu0 0.0
        %2157 = vmatpush1.msra.mxu0 0.0
        %2158 = vmatprep.subr.mxu0 0.0
        %2159 = vmatpush1.msra.mxu0 0.0
        %2160 = vmatprep.subr.mxu0 0.0
        %2161 = vmatpush1.msra.mxu0 0.0
        %2162 = vmatprep.subr.mxu0 0.0
        %2163 = vmatpush1.msra.mxu0 0.0
        %2164 = vmatprep.subr.mxu0 0.0
        %2165 = vmatpush1.msra.mxu0 0.0
        %2166 = vmatprep.subr.mxu0 0.0
        %2167 = vmatpush1.msra.mxu0 0.0
        %2168 = vmatprep.subr.mxu0 0.0
        %2169 = vmatpush1.msra.mxu0 0.0
        %2170 = vmatprep.subr.mxu0 0.0
        %2171 = vmatpush1.msra.mxu0 0.0
        %2172 = vmatprep.subr.mxu0 0.0
        %2173 = vmatpush1.msra.mxu0 0.0
        %2174 = vmatprep.subr.mxu0 0.0
        %2175 = vmatpush1.msra.mxu0 0.0
        %2176 = vmatprep.subr.mxu0 0.0
        %2177 = vmatpush1.msra.mxu0 0.0
        %2178 = vmatprep.subr.mxu0 0.0
        %2179 = vmatpush1.msra.mxu0 0.0
        %2180 = vmatprep.subr.mxu0 0.0
        %2181 = vmatpush1.msra.mxu0 0.0
        %2182 = vmatprep.subr.mxu0 0.0
        %2183 = vmatpush1.msra.mxu0 0.0
        %2184 = vmatprep.subr.mxu0 0.0
        %2185 = vmatpush1.msra.mxu0 0.0
        %2186 = vmatprep.subr.mxu0 0.0
        %2187 = vmatpush1.msra.mxu0 0.0
        %2188 = vmatprep.subr.mxu0 0.0
        %2189 = vmatpush1.msra.mxu0 0.0
        %2190 = vmatprep.mubr.f32.mxu0 0.0
        %2191 = vmatmul.mubr.f32.gmra.mrb[0].mxu0 %v462
        %v2192 = vpop.f32.mrb[0].mxu0
        %v2193 = vadd.f32 0.0, %v2192
        %v2194 = vpop.f32.mrb[0].mxu0
        %v2195 = vadd.f32 0.0, %v2194
        %2196 = vdwg.mxu0
        %2197 = vmatprep.subr.mxu0 %v189
        %2198 = vmatpush1.msra.mxu0 %v188
        %2199 = vmatprep.subr.mxu0 %v293
        %2200 = vmatpush1.msra.mxu0 %v292
        %2201 = vmatprep.subr.mxu0 %v589
        %2202 = vmatpush1.msra.mxu0 %v586
        %2203 = vmatprep.subr.mxu0 0.0
        %2204 = vmatpush1.msra.mxu0 0.0
        %2205 = vmatprep.subr.mxu0 0.0
        %2206 = vmatpush1.msra.mxu0 0.0
        %2207 = vmatprep.subr.mxu0 0.0
        %2208 = vmatpush1.msra.mxu0 0.0
        %2209 = vmatprep.subr.mxu0 0.0
        %2210 = vmatpush1.msra.mxu0 0.0
        %2211 = vmatprep.subr.mxu0 0.0
        %2212 = vmatpush1.msra.mxu0 0.0
        %2213 = vmatprep.subr.mxu0 0.0
        %2214 = vmatpush1.msra.mxu0 0.0
        %2215 = vmatprep.subr.mxu0 0.0
        %2216 = vmatpush1.msra.mxu0 0.0
        %2217 = vmatprep.subr.mxu0 0.0
        %2218 = vmatpush1.msra.mxu0 0.0
        %2219 = vmatprep.subr.mxu0 0.0
        %2220 = vmatpush1.msra.mxu0 0.0
        %2221 = vmatprep.subr.mxu0 0.0
        %2222 = vmatpush1.msra.mxu0 0.0
        %2223 = vmatprep.subr.mxu0 0.0
        %2224 = vmatpush1.msra.mxu0 0.0
        %2225 = vmatprep.subr.mxu0 0.0
        %2226 = vmatpush1.msra.mxu0 0.0
        %2227 = vmatprep.subr.mxu0 0.0
        %2228 = vmatpush1.msra.mxu0 0.0
        %2229 = vmatprep.subr.mxu0 0.0
        %2230 = vmatpush1.msra.mxu0 0.0
        %2231 = vmatprep.subr.mxu0 0.0
        %2232 = vmatpush1.msra.mxu0 0.0
        %2233 = vmatprep.subr.mxu0 0.0
        %2234 = vmatpush1.msra.mxu0 0.0
        %2235 = vmatprep.subr.mxu0 0.0
        %2236 = vmatpush1.msra.mxu0 0.0
        %2237 = vmatprep.subr.mxu0 0.0
        %2238 = vmatpush1.msra.mxu0 0.0
        %2239 = vmatprep.subr.mxu0 0.0
        %2240 = vmatpush1.msra.mxu0 0.0
        %2241 = vmatprep.subr.mxu0 0.0
        %2242 = vmatpush1.msra.mxu0 0.0
        %2243 = vmatprep.subr.mxu0 0.0
        %2244 = vmatpush1.msra.mxu0 0.0
        %2245 = vmatprep.subr.mxu0 0.0
        %2246 = vmatpush1.msra.mxu0 0.0
        %2247 = vmatprep.subr.mxu0 0.0
        %2248 = vmatpush1.msra.mxu0 0.0
        %2249 = vmatprep.subr.mxu0 0.0
        %2250 = vmatpush1.msra.mxu0 0.0
        %2251 = vmatprep.subr.mxu0 0.0
        %2252 = vmatpush1.msra.mxu0 0.0
        %2253 = vmatprep.subr.mxu0 0.0
        %2254 = vmatpush1.msra.mxu0 0.0
        %2255 = vmatprep.subr.mxu0 0.0
        %2256 = vmatpush1.msra.mxu0 0.0
        %2257 = vmatprep.subr.mxu0 0.0
        %2258 = vmatpush1.msra.mxu0 0.0
        %2259 = vmatprep.subr.mxu0 0.0
        %2260 = vmatpush1.msra.mxu0 0.0
        %2261 = vmatprep.mubr.f32.mxu0 0.0
        %2262 = vmatmul.mubr.f32.gmra.mrb[0].mxu0 %v462
        %v2263 = vpop.f32.mrb[0].mxu0
        %v2264 = vadd.f32 0.0, %v2263
        %v2265 = vpop.f32.mrb[0].mxu0
        %v2266 = vadd.f32 0.0, %v2265
        %2267 = vdwg.mxu0
        %2268 = vmatprep.subr.mxu0 %v191
        %2269 = vmatpush1.msra.mxu0 %v190
        %2270 = vmatprep.subr.mxu0 %v295
        %2271 = vmatpush1.msra.mxu0 %v294
        %2272 = vmatprep.subr.mxu0 %v595
        %2273 = vmatpush1.msra.mxu0 %v592
        %2274 = vmatprep.subr.mxu0 0.0
        %2275 = vmatpush1.msra.mxu0 0.0
        %2276 = vmatprep.subr.mxu0 0.0
        %2277 = vmatpush1.msra.mxu0 0.0
        %2278 = vmatprep.subr.mxu0 0.0
        %2279 = vmatpush1.msra.mxu0 0.0
        %2280 = vmatprep.subr.mxu0 0.0
        %2281 = vmatpush1.msra.mxu0 0.0
        %2282 = vmatprep.subr.mxu0 0.0
        %2283 = vmatpush1.msra.mxu0 0.0
        %2284 = vmatprep.subr.mxu0 0.0
        %2285 = vmatpush1.msra.mxu0 0.0
        %2286 = vmatprep.subr.mxu0 0.0
        %2287 = vmatpush1.msra.mxu0 0.0
        %2288 = vmatprep.subr.mxu0 0.0
        %2289 = vmatpush1.msra.mxu0 0.0
        %2290 = vmatprep.subr.mxu0 0.0
        %2291 = vmatpush1.msra.mxu0 0.0
        %2292 = vmatprep.subr.mxu0 0.0
        %2293 = vmatpush1.msra.mxu0 0.0
        %2294 = vmatprep.subr.mxu0 0.0
        %2295 = vmatpush1.msra.mxu0 0.0
        %2296 = vmatprep.subr.mxu0 0.0
        %2297 = vmatpush1.msra.mxu0 0.0
        %2298 = vmatprep.subr.mxu0 0.0
        %2299 = vmatpush1.msra.mxu0 0.0
        %2300 = vmatprep.subr.mxu0 0.0
        %2301 = vmatpush1.msra.mxu0 0.0
        %2302 = vmatprep.subr.mxu0 0.0
        %2303 = vmatpush1.msra.mxu0 0.0
        %2304 = vmatprep.subr.mxu0 0.0
        %2305 = vmatpush1.msra.mxu0 0.0
        %2306 = vmatprep.subr.mxu0 0.0
        %2307 = vmatpush1.msra.mxu0 0.0
        %2308 = vmatprep.subr.mxu0 0.0
        %2309 = vmatpush1.msra.mxu0 0.0
        %2310 = vmatprep.subr.mxu0 0.0
        %2311 = vmatpush1.msra.mxu0 0.0
        %2312 = vmatprep.subr.mxu0 0.0
        %2313 = vmatpush1.msra.mxu0 0.0
        %2314 = vmatprep.subr.mxu0 0.0
        %2315 = vmatpush1.msra.mxu0 0.0
        %2316 = vmatprep.subr.mxu0 0.0
        %2317 = vmatpush1.msra.mxu0 0.0
        %2318 = vmatprep.subr.mxu0 0.0
        %2319 = vmatpush1.msra.mxu0 0.0
        %2320 = vmatprep.subr.mxu0 0.0
        %2321 = vmatpush1.msra.mxu0 0.0
        %2322 = vmatprep.subr.mxu0 0.0
        %2323 = vmatpush1.msra.mxu0 0.0
        %2324 = vmatprep.subr.mxu0 0.0
        %2325 = vmatpush1.msra.mxu0 0.0
        %2326 = vmatprep.subr.mxu0 0.0
        %2327 = vmatpush1.msra.mxu0 0.0
        %2328 = vmatprep.subr.mxu0 0.0
        %2329 = vmatpush1.msra.mxu0 0.0
        %2330 = vmatprep.subr.mxu0 0.0
        %2331 = vmatpush1.msra.mxu0 0.0
        %2332 = vmatprep.mubr.f32.mxu0 0.0
        %2333 = vmatmul.mubr.f32.gmra.mrb[0].mxu0 %v462
        %v2334 = vpop.f32.mrb[0].mxu0
        %v2335 = vadd.f32 0.0, %v2334
        %v2336 = vpop.f32.mrb[0].mxu0
        %v2337 = vadd.f32 0.0, %v2336
        %2338 = vdwg.mxu0
        %2339 = vmatprep.subr.mxu0 %v193
        %2340 = vmatpush1.msra.mxu0 %v192
        %2341 = vmatprep.subr.mxu0 %v297
        %2342 = vmatpush1.msra.mxu0 %v296
        %2343 = vmatprep.subr.mxu0 %v601
        %2344 = vmatpush1.msra.mxu0 %v598
        %2345 = vmatprep.subr.mxu0 0.0
        %2346 = vmatpush1.msra.mxu0 0.0
        %2347 = vmatprep.subr.mxu0 0.0
        %2348 = vmatpush1.msra.mxu0 0.0
        %2349 = vmatprep.subr.mxu0 0.0
        %2350 = vmatpush1.msra.mxu0 0.0
        %2351 = vmatprep.subr.mxu0 0.0
        %2352 = vmatpush1.msra.mxu0 0.0
        %2353 = vmatprep.subr.mxu0 0.0
        %2354 = vmatpush1.msra.mxu0 0.0
        %2355 = vmatprep.subr.mxu0 0.0
        %2356 = vmatpush1.msra.mxu0 0.0
        %2357 = vmatprep.subr.mxu0 0.0
        %2358 = vmatpush1.msra.mxu0 0.0
        %2359 = vmatprep.subr.mxu0 0.0
        %2360 = vmatpush1.msra.mxu0 0.0
        %2361 = vmatprep.subr.mxu0 0.0
        %2362 = vmatpush1.msra.mxu0 0.0
        %2363 = vmatprep.subr.mxu0 0.0
        %2364 = vmatpush1.msra.mxu0 0.0
        %2365 = vmatprep.subr.mxu0 0.0
        %2366 = vmatpush1.msra.mxu0 0.0
        %2367 = vmatprep.subr.mxu0 0.0
        %2368 = vmatpush1.msra.mxu0 0.0
        %2369 = vmatprep.subr.mxu0 0.0
        %2370 = vmatpush1.msra.mxu0 0.0
        %2371 = vmatprep.subr.mxu0 0.0
        %2372 = vmatpush1.msra.mxu0 0.0
        %2373 = vmatprep.subr.mxu0 0.0
        %2374 = vmatpush1.msra.mxu0 0.0
        %2375 = vmatprep.subr.mxu0 0.0
        %2376 = vmatpush1.msra.mxu0 0.0
        %2377 = vmatprep.subr.mxu0 0.0
        %2378 = vmatpush1.msra.mxu0 0.0
        %2379 = vmatprep.subr.mxu0 0.0
        %2380 = vmatpush1.msra.mxu0 0.0
        %2381 = vmatprep.subr.mxu0 0.0
        %2382 = vmatpush1.msra.mxu0 0.0
        %2383 = vmatprep.subr.mxu0 0.0
        %2384 = vmatpush1.msra.mxu0 0.0
        %2385 = vmatprep.subr.mxu0 0.0
        %2386 = vmatpush1.msra.mxu0 0.0
        %2387 = vmatprep.subr.mxu0 0.0
        %2388 = vmatpush1.msra.mxu0 0.0
        %2389 = vmatprep.subr.mxu0 0.0
        %2390 = vmatpush1.msra.mxu0 0.0
        %2391 = vmatprep.subr.mxu0 0.0
        %2392 = vmatpush1.msra.mxu0 0.0
        %2393 = vmatprep.subr.mxu0 0.0
        %2394 = vmatpush1.msra.mxu0 0.0
        %2395 = vmatprep.subr.mxu0 0.0
        %2396 = vmatpush1.msra.mxu0 0.0
        %2397 = vmatprep.subr.mxu0 0.0
        %2398 = vmatpush1.msra.mxu0 0.0
        %2399 = vmatprep.subr.mxu0 0.0
        %2400 = vmatpush1.msra.mxu0 0.0
        %2401 = vmatprep.subr.mxu0 0.0
        %2402 = vmatpush1.msra.mxu0 0.0
        %2403 = vmatprep.mubr.f32.mxu0 0.0
        %2404 = vmatmul.mubr.f32.gmra.mrb[0].mxu0 %v462
        %v2405 = vpop.f32.mrb[0].mxu0
        %v2406 = vadd.f32 0.0, %v2405
        %v2407 = vpop.f32.mrb[0].mxu0
        %v2408 = vadd.f32 0.0, %v2407
        %2409 = vdwg.mxu0
        %2410 = vmatprep.subr.mxu0 %v195
        %2411 = vmatpush1.msra.mxu0 %v194
        %2412 = vmatprep.subr.mxu0 %v299
        %2413 = vmatpush1.msra.mxu0 %v298
        %2414 = vmatprep.subr.mxu0 %v607
        %2415 = vmatpush1.msra.mxu0 %v604
        %2416 = vmatprep.subr.mxu0 0.0
        %2417 = vmatpush1.msra.mxu0 0.0
        %2418 = vmatprep.subr.mxu0 0.0
        %2419 = vmatpush1.msra.mxu0 0.0
        %2420 = vmatprep.subr.mxu0 0.0
        %2421 = vmatpush1.msra.mxu0 0.0
        %2422 = vmatprep.subr.mxu0 0.0
        %2423 = vmatpush1.msra.mxu0 0.0
        %2424 = vmatprep.subr.mxu0 0.0
        %2425 = vmatpush1.msra.mxu0 0.0
        %2426 = vmatprep.subr.mxu0 0.0
        %2427 = vmatpush1.msra.mxu0 0.0
        %2428 = vmatprep.subr.mxu0 0.0
        %2429 = vmatpush1.msra.mxu0 0.0
        %2430 = vmatprep.subr.mxu0 0.0
        %2431 = vmatpush1.msra.mxu0 0.0
        %2432 = vmatprep.subr.mxu0 0.0
        %2433 = vmatpush1.msra.mxu0 0.0
        %2434 = vmatprep.subr.mxu0 0.0
        %2435 = vmatpush1.msra.mxu0 0.0
        %2436 = vmatprep.subr.mxu0 0.0
        %2437 = vmatpush1.msra.mxu0 0.0
        %2438 = vmatprep.subr.mxu0 0.0
        %2439 = vmatpush1.msra.mxu0 0.0
        %2440 = vmatprep.subr.mxu0 0.0
        %2441 = vmatpush1.msra.mxu0 0.0
        %2442 = vmatprep.subr.mxu0 0.0
        %2443 = vmatpush1.msra.mxu0 0.0
        %2444 = vmatprep.subr.mxu0 0.0
        %2445 = vmatpush1.msra.mxu0 0.0
        %2446 = vmatprep.subr.mxu0 0.0
        %2447 = vmatpush1.msra.mxu0 0.0
        %2448 = vmatprep.subr.mxu0 0.0
        %2449 = vmatpush1.msra.mxu0 0.0
        %2450 = vmatprep.subr.mxu0 0.0
        %2451 = vmatpush1.msra.mxu0 0.0
        %2452 = vmatprep.subr.mxu0 0.0
        %2453 = vmatpush1.msra.mxu0 0.0
        %2454 = vmatprep.subr.mxu0 0.0
        %2455 = vmatpush1.msra.mxu0 0.0
        %2456 = vmatprep.subr.mxu0 0.0
        %2457 = vmatpush1.msra.mxu0 0.0
        %2458 = vmatprep.subr.mxu0 0.0
        %2459 = vmatpush1.msra.mxu0 0.0
        %2460 = vmatprep.subr.mxu0 0.0
        %2461 = vmatpush1.msra.mxu0 0.0
        %2462 = vmatprep.subr.mxu0 0.0
        %2463 = vmatpush1.msra.mxu0 0.0
        %2464 = vmatprep.subr.mxu0 0.0
        %2465 = vmatpush1.msra.mxu0 0.0
        %2466 = vmatprep.subr.mxu0 0.0
        %2467 = vmatpush1.msra.mxu0 0.0
        %2468 = vmatprep.subr.mxu0 0.0
        %2469 = vmatpush1.msra.mxu0 0.0
        %2470 = vmatprep.subr.mxu0 0.0
        %2471 = vmatpush1.msra.mxu0 0.0
        %2472 = vmatprep.subr.mxu0 0.0
        %2473 = vmatpush1.msra.mxu0 0.0
        %2474 = vmatprep.mubr.f32.mxu0 0.0
        %2475 = vmatmul.mubr.f32.gmra.mrb[0].mxu0 %v462
        %v2476 = vpop.f32.mrb[0].mxu0
        %v2477 = vadd.f32 0.0, %v2476
        %v2478 = vpop.f32.mrb[0].mxu0
        %v2479 = vadd.f32 0.0, %v2478
        %2480 = vdwg.mxu0
        %2481 = vmatprep.subr.mxu0 %v197
        %2482 = vmatpush1.msra.mxu0 %v196
        %2483 = vmatprep.subr.mxu0 %v301
        %2484 = vmatpush1.msra.mxu0 %v300
        %2485 = vmatprep.subr.mxu0 %v613
        %2486 = vmatpush1.msra.mxu0 %v610
        %2487 = vmatprep.subr.mxu0 0.0
        %2488 = vmatpush1.msra.mxu0 0.0
        %2489 = vmatprep.subr.mxu0 0.0
        %2490 = vmatpush1.msra.mxu0 0.0
        %2491 = vmatprep.subr.mxu0 0.0
        %2492 = vmatpush1.msra.mxu0 0.0
        %2493 = vmatprep.subr.mxu0 0.0
        %2494 = vmatpush1.msra.mxu0 0.0
        %2495 = vmatprep.subr.mxu0 0.0
        %2496 = vmatpush1.msra.mxu0 0.0
        %2497 = vmatprep.subr.mxu0 0.0
        %2498 = vmatpush1.msra.mxu0 0.0
        %2499 = vmatprep.subr.mxu0 0.0
        %2500 = vmatpush1.msra.mxu0 0.0
        %2501 = vmatprep.subr.mxu0 0.0
        %2502 = vmatpush1.msra.mxu0 0.0
        %2503 = vmatprep.subr.mxu0 0.0
        %2504 = vmatpush1.msra.mxu0 0.0
        %2505 = vmatprep.subr.mxu0 0.0
        %2506 = vmatpush1.msra.mxu0 0.0
        %2507 = vmatprep.subr.mxu0 0.0
        %2508 = vmatpush1.msra.mxu0 0.0
        %2509 = vmatprep.subr.mxu0 0.0
        %2510 = vmatpush1.msra.mxu0 0.0
        %2511 = vmatprep.subr.mxu0 0.0
        %2512 = vmatpush1.msra.mxu0 0.0
        %2513 = vmatprep.subr.mxu0 0.0
        %2514 = vmatpush1.msra.mxu0 0.0
        %2515 = vmatprep.subr.mxu0 0.0
        %2516 = vmatpush1.msra.mxu0 0.0
        %2517 = vmatprep.subr.mxu0 0.0
        %2518 = vmatpush1.msra.mxu0 0.0
        %2519 = vmatprep.subr.mxu0 0.0
        %2520 = vmatpush1.msra.mxu0 0.0
        %2521 = vmatprep.subr.mxu0 0.0
        %2522 = vmatpush1.msra.mxu0 0.0
        %2523 = vmatprep.subr.mxu0 0.0
        %2524 = vmatpush1.msra.mxu0 0.0
        %2525 = vmatprep.subr.mxu0 0.0
        %2526 = vmatpush1.msra.mxu0 0.0
        %2527 = vmatprep.subr.mxu0 0.0
        %2528 = vmatpush1.msra.mxu0 0.0
        %2529 = vmatprep.subr.mxu0 0.0
        %2530 = vmatpush1.msra.mxu0 0.0
        %2531 = vmatprep.subr.mxu0 0.0
        %2532 = vmatpush1.msra.mxu0 0.0
        %2533 = vmatprep.subr.mxu0 0.0
        %2534 = vmatpush1.msra.mxu0 0.0
        %2535 = vmatprep.subr.mxu0 0.0
        %2536 = vmatpush1.msra.mxu0 0.0
        %2537 = vmatprep.subr.mxu0 0.0
        %2538 = vmatpush1.msra.mxu0 0.0
        %2539 = vmatprep.subr.mxu0 0.0
        %2540 = vmatpush1.msra.mxu0 0.0
        %2541 = vmatprep.subr.mxu0 0.0
        %2542 = vmatpush1.msra.mxu0 0.0
        %2543 = vmatprep.subr.mxu0 0.0
        %2544 = vmatpush1.msra.mxu0 0.0
        %2545 = vmatprep.mubr.f32.mxu0 0.0
        %2546 = vmatmul.mubr.f32.gmra.mrb[0].mxu0 %v462
        %v2547 = vpop.f32.mrb[0].mxu0
        %v2548 = vadd.f32 0.0, %v2547
        %v2549 = vpop.f32.mrb[0].mxu0
        %v2550 = vadd.f32 0.0, %v2549
        %2551 = vdwg.mxu0
        %2552 = vmatprep.subr.mxu0 %v199
        %2553 = vmatpush1.msra.mxu0 %v198
        %2554 = vmatprep.subr.mxu0 %v303
        %2555 = vmatpush1.msra.mxu0 %v302
        %2556 = vmatprep.subr.mxu0 %v619
        %2557 = vmatpush1.msra.mxu0 %v616
        %2558 = vmatprep.subr.mxu0 0.0
        %2559 = vmatpush1.msra.mxu0 0.0
        %2560 = vmatprep.subr.mxu0 0.0
        %2561 = vmatpush1.msra.mxu0 0.0
        %2562 = vmatprep.subr.mxu0 0.0
        %2563 = vmatpush1.msra.mxu0 0.0
        %2564 = vmatprep.subr.mxu0 0.0
        %2565 = vmatpush1.msra.mxu0 0.0
        %2566 = vmatprep.subr.mxu0 0.0
        %2567 = vmatpush1.msra.mxu0 0.0
        %2568 = vmatprep.subr.mxu0 0.0
        %2569 = vmatpush1.msra.mxu0 0.0
        %2570 = vmatprep.subr.mxu0 0.0
        %2571 = vmatpush1.msra.mxu0 0.0
        %2572 = vmatprep.subr.mxu0 0.0
        %2573 = vmatpush1.msra.mxu0 0.0
        %2574 = vmatprep.subr.mxu0 0.0
        %2575 = vmatpush1.msra.mxu0 0.0
        %2576 = vmatprep.subr.mxu0 0.0
        %2577 = vmatpush1.msra.mxu0 0.0
        %2578 = vmatprep.subr.mxu0 0.0
        %2579 = vmatpush1.msra.mxu0 0.0
        %2580 = vmatprep.subr.mxu0 0.0
        %2581 = vmatpush1.msra.mxu0 0.0
        %2582 = vmatprep.subr.mxu0 0.0
        %2583 = vmatpush1.msra.mxu0 0.0
        %2584 = vmatprep.subr.mxu0 0.0
        %2585 = vmatpush1.msra.mxu0 0.0
        %2586 = vmatprep.subr.mxu0 0.0
        %2587 = vmatpush1.msra.mxu0 0.0
        %2588 = vmatprep.subr.mxu0 0.0
        %2589 = vmatpush1.msra.mxu0 0.0
        %2590 = vmatprep.subr.mxu0 0.0
        %2591 = vmatpush1.msra.mxu0 0.0
        %2592 = vmatprep.subr.mxu0 0.0
        %2593 = vmatpush1.msra.mxu0 0.0
        %2594 = vmatprep.subr.mxu0 0.0
        %2595 = vmatpush1.msra.mxu0 0.0
        %2596 = vmatprep.subr.mxu0 0.0
        %2597 = vmatpush1.msra.mxu0 0.0
        %2598 = vmatprep.subr.mxu0 0.0
        %2599 = vmatpush1.msra.mxu0 0.0
        %2600 = vmatprep.subr.mxu0 0.0
        %2601 = vmatpush1.msra.mxu0 0.0
        %2602 = vmatprep.subr.mxu0 0.0
        %2603 = vmatpush1.msra.mxu0 0.0
        %2604 = vmatprep.subr.mxu0 0.0
        %2605 = vmatpush1.msra.mxu0 0.0
        %2606 = vmatprep.subr.mxu0 0.0
        %2607 = vmatpush1.msra.mxu0 0.0
        %2608 = vmatprep.subr.mxu0 0.0
        %2609 = vmatpush1.msra.mxu0 0.0
        %2610 = vmatprep.subr.mxu0 0.0
        %2611 = vmatpush1.msra.mxu0 0.0
        %2612 = vmatprep.subr.mxu0 0.0
        %2613 = vmatpush1.msra.mxu0 0.0
        %2614 = vmatprep.subr.mxu0 0.0
        %2615 = vmatpush1.msra.mxu0 0.0
        %2616 = vmatprep.mubr.f32.mxu0 0.0
        %2617 = vmatmul.mubr.f32.gmra.mrb[0].mxu0 %v462
        %v2618 = vpop.f32.mrb[0].mxu0
        %v2619 = vadd.f32 0.0, %v2618
        %v2620 = vpop.f32.mrb[0].mxu0
        %v2621 = vadd.f32 0.0, %v2620
        %2622 = vdwg.mxu0
        %2623 = vmatprep.subr.mxu0 %v201
        %2624 = vmatpush1.msra.mxu0 %v200
        %2625 = vmatprep.subr.mxu0 %v305
        %2626 = vmatpush1.msra.mxu0 %v304
        %2627 = vmatprep.subr.mxu0 %v625
        %2628 = vmatpush1.msra.mxu0 %v622
        %2629 = vmatprep.subr.mxu0 0.0
        %2630 = vmatpush1.msra.mxu0 0.0
        %2631 = vmatprep.subr.mxu0 0.0
        %2632 = vmatpush1.msra.mxu0 0.0
        %2633 = vmatprep.subr.mxu0 0.0
        %2634 = vmatpush1.msra.mxu0 0.0
        %2635 = vmatprep.subr.mxu0 0.0
        %2636 = vmatpush1.msra.mxu0 0.0
        %2637 = vmatprep.subr.mxu0 0.0
        %2638 = vmatpush1.msra.mxu0 0.0
        %2639 = vmatprep.subr.mxu0 0.0
        %2640 = vmatpush1.msra.mxu0 0.0
        %2641 = vmatprep.subr.mxu0 0.0
        %2642 = vmatpush1.msra.mxu0 0.0
        %2643 = vmatprep.subr.mxu0 0.0
        %2644 = vmatpush1.msra.mxu0 0.0
        %2645 = vmatprep.subr.mxu0 0.0
        %2646 = vmatpush1.msra.mxu0 0.0
        %2647 = vmatprep.subr.mxu0 0.0
        %2648 = vmatpush1.msra.mxu0 0.0
        %2649 = vmatprep.subr.mxu0 0.0
        %2650 = vmatpush1.msra.mxu0 0.0
        %2651 = vmatprep.subr.mxu0 0.0
        %2652 = vmatpush1.msra.mxu0 0.0
        %2653 = vmatprep.subr.mxu0 0.0
        %2654 = vmatpush1.msra.mxu0 0.0
        %2655 = vmatprep.subr.mxu0 0.0
        %2656 = vmatpush1.msra.mxu0 0.0
        %2657 = vmatprep.subr.mxu0 0.0
        %2658 = vmatpush1.msra.mxu0 0.0
        %2659 = vmatprep.subr.mxu0 0.0
        %2660 = vmatpush1.msra.mxu0 0.0
        %2661 = vmatprep.subr.mxu0 0.0
        %2662 = vmatpush1.msra.mxu0 0.0
        %2663 = vmatprep.subr.mxu0 0.0
        %2664 = vmatpush1.msra.mxu0 0.0
        %2665 = vmatprep.subr.mxu0 0.0
        %2666 = vmatpush1.msra.mxu0 0.0
        %2667 = vmatprep.subr.mxu0 0.0
        %2668 = vmatpush1.msra.mxu0 0.0
        %2669 = vmatprep.subr.mxu0 0.0
        %2670 = vmatpush1.msra.mxu0 0.0
        %2671 = vmatprep.subr.mxu0 0.0
        %2672 = vmatpush1.msra.mxu0 0.0
        %2673 = vmatprep.subr.mxu0 0.0
        %2674 = vmatpush1.msra.mxu0 0.0
        %2675 = vmatprep.subr.mxu0 0.0
        %2676 = vmatpush1.msra.mxu0 0.0
        %2677 = vmatprep.subr.mxu0 0.0
        %2678 = vmatpush1.msra.mxu0 0.0
        %2679 = vmatprep.subr.mxu0 0.0
        %2680 = vmatpush1.msra.mxu0 0.0
        %2681 = vmatprep.subr.mxu0 0.0
        %2682 = vmatpush1.msra.mxu0 0.0
        %2683 = vmatprep.subr.mxu0 0.0
        %2684 = vmatpush1.msra.mxu0 0.0
        %2685 = vmatprep.subr.mxu0 0.0
        %2686 = vmatpush1.msra.mxu0 0.0
        %2687 = vmatprep.mubr.f32.mxu0 0.0
        %2688 = vmatmul.mubr.f32.gmra.mrb[0].mxu0 %v462
        %v2689 = vpop.f32.mrb[0].mxu0
        %v2690 = vadd.f32 0.0, %v2689
        %v2691 = vpop.f32.mrb[0].mxu0
        %v2692 = vadd.f32 0.0, %v2691
        %2693 = vdwg.mxu0
        %2694 = vmatprep.subr.mxu0 %v203
        %2695 = vmatpush1.msra.mxu0 %v202
        %2696 = vmatprep.subr.mxu0 %v307
        %2697 = vmatpush1.msra.mxu0 %v306
        %2698 = vmatprep.subr.mxu0 %v631
        %2699 = vmatpush1.msra.mxu0 %v628
        %2700 = vmatprep.subr.mxu0 0.0
        %2701 = vmatpush1.msra.mxu0 0.0
        %2702 = vmatprep.subr.mxu0 0.0
        %2703 = vmatpush1.msra.mxu0 0.0
        %2704 = vmatprep.subr.mxu0 0.0
        %2705 = vmatpush1.msra.mxu0 0.0
        %2706 = vmatprep.subr.mxu0 0.0
        %2707 = vmatpush1.msra.mxu0 0.0
        %2708 = vmatprep.subr.mxu0 0.0
        %2709 = vmatpush1.msra.mxu0 0.0
        %2710 = vmatprep.subr.mxu0 0.0
        %2711 = vmatpush1.msra.mxu0 0.0
        %2712 = vmatprep.subr.mxu0 0.0
        %2713 = vmatpush1.msra.mxu0 0.0
        %2714 = vmatprep.subr.mxu0 0.0
        %2715 = vmatpush1.msra.mxu0 0.0
        %2716 = vmatprep.subr.mxu0 0.0
        %2717 = vmatpush1.msra.mxu0 0.0
        %2718 = vmatprep.subr.mxu0 0.0
        %2719 = vmatpush1.msra.mxu0 0.0
        %2720 = vmatprep.subr.mxu0 0.0
        %2721 = vmatpush1.msra.mxu0 0.0
        %2722 = vmatprep.subr.mxu0 0.0
        %2723 = vmatpush1.msra.mxu0 0.0
        %2724 = vmatprep.subr.mxu0 0.0
        %2725 = vmatpush1.msra.mxu0 0.0
        %2726 = vmatprep.subr.mxu0 0.0
        %2727 = vmatpush1.msra.mxu0 0.0
        %2728 = vmatprep.subr.mxu0 0.0
        %2729 = vmatpush1.msra.mxu0 0.0
        %2730 = vmatprep.subr.mxu0 0.0
        %2731 = vmatpush1.msra.mxu0 0.0
        %2732 = vmatprep.subr.mxu0 0.0
        %2733 = vmatpush1.msra.mxu0 0.0
        %2734 = vmatprep.subr.mxu0 0.0
        %2735 = vmatpush1.msra.mxu0 0.0
        %2736 = vmatprep.subr.mxu0 0.0
        %2737 = vmatpush1.msra.mxu0 0.0
        %2738 = vmatprep.subr.mxu0 0.0
        %2739 = vmatpush1.msra.mxu0 0.0
        %2740 = vmatprep.subr.mxu0 0.0
        %2741 = vmatpush1.msra.mxu0 0.0
        %2742 = vmatprep.subr.mxu0 0.0
        %2743 = vmatpush1.msra.mxu0 0.0
        %2744 = vmatprep.subr.mxu0 0.0
        %2745 = vmatpush1.msra.mxu0 0.0
        %2746 = vmatprep.subr.mxu0 0.0
        %2747 = vmatpush1.msra.mxu0 0.0
        %2748 = vmatprep.subr.mxu0 0.0
        %2749 = vmatpush1.msra.mxu0 0.0
        %2750 = vmatprep.subr.mxu0 0.0
        %2751 = vmatpush1.msra.mxu0 0.0
        %2752 = vmatprep.subr.mxu0 0.0
        %2753 = vmatpush1.msra.mxu0 0.0
        %2754 = vmatprep.subr.mxu0 0.0
        %2755 = vmatpush1.msra.mxu0 0.0
        %2756 = vmatprep.subr.mxu0 0.0
        %2757 = vmatpush1.msra.mxu0 0.0
        %2758 = vmatprep.mubr.f32.mxu0 0.0
        %2759 = vmatmul.mubr.f32.gmra.mrb[0].mxu0 %v462
        %v2760 = vpop.f32.mrb[0].mxu0
        %v2761 = vadd.f32 0.0, %v2760
        %v2762 = vpop.f32.mrb[0].mxu0
        %v2763 = vadd.f32 0.0, %v2762
        %2764 = vdwg.mxu0
        %2765 = vmatprep.subr.mxu0 %v205
        %2766 = vmatpush1.msra.mxu0 %v204
        %2767 = vmatprep.subr.mxu0 %v309
        %2768 = vmatpush1.msra.mxu0 %v308
        %2769 = vmatprep.subr.mxu0 %v637
        %2770 = vmatpush1.msra.mxu0 %v634
        %2771 = vmatprep.subr.mxu0 0.0
        %2772 = vmatpush1.msra.mxu0 0.0
        %2773 = vmatprep.subr.mxu0 0.0
        %2774 = vmatpush1.msra.mxu0 0.0
        %2775 = vmatprep.subr.mxu0 0.0
        %2776 = vmatpush1.msra.mxu0 0.0
        %2777 = vmatprep.subr.mxu0 0.0
        %2778 = vmatpush1.msra.mxu0 0.0
        %2779 = vmatprep.subr.mxu0 0.0
        %2780 = vmatpush1.msra.mxu0 0.0
        %2781 = vmatprep.subr.mxu0 0.0
        %2782 = vmatpush1.msra.mxu0 0.0
        %2783 = vmatprep.subr.mxu0 0.0
        %2784 = vmatpush1.msra.mxu0 0.0
        %2785 = vmatprep.subr.mxu0 0.0
        %2786 = vmatpush1.msra.mxu0 0.0
        %2787 = vmatprep.subr.mxu0 0.0
        %2788 = vmatpush1.msra.mxu0 0.0
        %2789 = vmatprep.subr.mxu0 0.0
        %2790 = vmatpush1.msra.mxu0 0.0
        %2791 = vmatprep.subr.mxu0 0.0
        %2792 = vmatpush1.msra.mxu0 0.0
        %2793 = vmatprep.subr.mxu0 0.0
        %2794 = vmatpush1.msra.mxu0 0.0
        %2795 = vmatprep.subr.mxu0 0.0
        %2796 = vmatpush1.msra.mxu0 0.0
        %2797 = vmatprep.subr.mxu0 0.0
        %2798 = vmatpush1.msra.mxu0 0.0
        %2799 = vmatprep.subr.mxu0 0.0
        %2800 = vmatpush1.msra.mxu0 0.0
        %2801 = vmatprep.subr.mxu0 0.0
        %2802 = vmatpush1.msra.mxu0 0.0
        %2803 = vmatprep.subr.mxu0 0.0
        %2804 = vmatpush1.msra.mxu0 0.0
        %2805 = vmatprep.subr.mxu0 0.0
        %2806 = vmatpush1.msra.mxu0 0.0
        %2807 = vmatprep.subr.mxu0 0.0
        %2808 = vmatpush1.msra.mxu0 0.0
        %2809 = vmatprep.subr.mxu0 0.0
        %2810 = vmatpush1.msra.mxu0 0.0
        %2811 = vmatprep.subr.mxu0 0.0
        %2812 = vmatpush1.msra.mxu0 0.0
        %2813 = vmatprep.subr.mxu0 0.0
        %2814 = vmatpush1.msra.mxu0 0.0
        %2815 = vmatprep.subr.mxu0 0.0
        %2816 = vmatpush1.msra.mxu0 0.0
        %2817 = vmatprep.subr.mxu0 0.0
        %2818 = vmatpush1.msra.mxu0 0.0
        %2819 = vmatprep.subr.mxu0 0.0
        %2820 = vmatpush1.msra.mxu0 0.0
        %2821 = vmatprep.subr.mxu0 0.0
        %2822 = vmatpush1.msra.mxu0 0.0
        %2823 = vmatprep.subr.mxu0 0.0
        %2824 = vmatpush1.msra.mxu0 0.0
        %2825 = vmatprep.subr.mxu0 0.0
        %2826 = vmatpush1.msra.mxu0 0.0
        %2827 = vmatprep.subr.mxu0 0.0
        %2828 = vmatpush1.msra.mxu0 0.0
        %2829 = vmatprep.mubr.f32.mxu0 0.0
        %2830 = vmatmul.mubr.f32.gmra.mrb[0].mxu0 %v462
        %v2831 = vpop.f32.mrb[0].mxu0
        %v2832 = vadd.f32 0.0, %v2831
        %v2833 = vpop.f32.mrb[0].mxu0
        %v2834 = vadd.f32 0.0, %v2833
        %2835 = vdwg.mxu0
        %2836 = vmatprep.subr.mxu0 %v207
        %2837 = vmatpush1.msra.mxu0 %v206
        %2838 = vmatprep.subr.mxu0 %v311
        %2839 = vmatpush1.msra.mxu0 %v310
        %2840 = vmatprep.subr.mxu0 %v643
        %2841 = vmatpush1.msra.mxu0 %v640
        %2842 = vmatprep.subr.mxu0 0.0
        %2843 = vmatpush1.msra.mxu0 0.0
        %2844 = vmatprep.subr.mxu0 0.0
        %2845 = vmatpush1.msra.mxu0 0.0
        %2846 = vmatprep.subr.mxu0 0.0
        %2847 = vmatpush1.msra.mxu0 0.0
        %2848 = vmatprep.subr.mxu0 0.0
        %2849 = vmatpush1.msra.mxu0 0.0
        %2850 = vmatprep.subr.mxu0 0.0
        %2851 = vmatpush1.msra.mxu0 0.0
        %2852 = vmatprep.subr.mxu0 0.0
        %2853 = vmatpush1.msra.mxu0 0.0
        %2854 = vmatprep.subr.mxu0 0.0
        %2855 = vmatpush1.msra.mxu0 0.0
        %2856 = vmatprep.subr.mxu0 0.0
        %2857 = vmatpush1.msra.mxu0 0.0
        %2858 = vmatprep.subr.mxu0 0.0
        %2859 = vmatpush1.msra.mxu0 0.0
        %2860 = vmatprep.subr.mxu0 0.0
        %2861 = vmatpush1.msra.mxu0 0.0
        %2862 = vmatprep.subr.mxu0 0.0
        %2863 = vmatpush1.msra.mxu0 0.0
        %2864 = vmatprep.subr.mxu0 0.0
        %2865 = vmatpush1.msra.mxu0 0.0
        %2866 = vmatprep.subr.mxu0 0.0
        %2867 = vmatpush1.msra.mxu0 0.0
        %2868 = vmatprep.subr.mxu0 0.0
        %2869 = vmatpush1.msra.mxu0 0.0
        %2870 = vmatprep.subr.mxu0 0.0
        %2871 = vmatpush1.msra.mxu0 0.0
        %2872 = vmatprep.subr.mxu0 0.0
        %2873 = vmatpush1.msra.mxu0 0.0
        %2874 = vmatprep.subr.mxu0 0.0
        %2875 = vmatpush1.msra.mxu0 0.0
        %2876 = vmatprep.subr.mxu0 0.0
        %2877 = vmatpush1.msra.mxu0 0.0
        %2878 = vmatprep.subr.mxu0 0.0
        %2879 = vmatpush1.msra.mxu0 0.0
        %2880 = vmatprep.subr.mxu0 0.0
        %2881 = vmatpush1.msra.mxu0 0.0
        %2882 = vmatprep.subr.mxu0 0.0
        %2883 = vmatpush1.msra.mxu0 0.0
        %2884 = vmatprep.subr.mxu0 0.0
        %2885 = vmatpush1.msra.mxu0 0.0
        %2886 = vmatprep.subr.mxu0 0.0
        %2887 = vmatpush1.msra.mxu0 0.0
        %2888 = vmatprep.subr.mxu0 0.0
        %2889 = vmatpush1.msra.mxu0 0.0
        %2890 = vmatprep.subr.mxu0 0.0
        %2891 = vmatpush1.msra.mxu0 0.0
        %2892 = vmatprep.subr.mxu0 0.0
        %2893 = vmatpush1.msra.mxu0 0.0
        %2894 = vmatprep.subr.mxu0 0.0
        %2895 = vmatpush1.msra.mxu0 0.0
        %2896 = vmatprep.subr.mxu0 0.0
        %2897 = vmatpush1.msra.mxu0 0.0
        %2898 = vmatprep.subr.mxu0 0.0
        %2899 = vmatpush1.msra.mxu0 0.0
        %2900 = vmatprep.mubr.f32.mxu0 0.0
        %2901 = vmatmul.mubr.f32.gmra.mrb[0].mxu0 %v462
        %v2902 = vpop.f32.mrb[0].mxu0
        %v2903 = vadd.f32 0.0, %v2902
        %v2904 = vpop.f32.mrb[0].mxu0
        %v2905 = vadd.f32 0.0, %v2904
        %2906 = vdwg.mxu0
        %2907 = vmatprep.subr.mxu0 %v209
        %2908 = vmatpush1.msra.mxu0 %v208
        %2909 = vmatprep.subr.mxu0 %v313
        %2910 = vmatpush1.msra.mxu0 %v312
        %2911 = vmatprep.subr.mxu0 %v649
        %2912 = vmatpush1.msra.mxu0 %v646
        %2913 = vmatprep.subr.mxu0 0.0
        %2914 = vmatpush1.msra.mxu0 0.0
        %2915 = vmatprep.subr.mxu0 0.0
        %2916 = vmatpush1.msra.mxu0 0.0
        %2917 = vmatprep.subr.mxu0 0.0
        %2918 = vmatpush1.msra.mxu0 0.0
        %2919 = vmatprep.subr.mxu0 0.0
        %2920 = vmatpush1.msra.mxu0 0.0
        %2921 = vmatprep.subr.mxu0 0.0
        %2922 = vmatpush1.msra.mxu0 0.0
        %2923 = vmatprep.subr.mxu0 0.0
        %2924 = vmatpush1.msra.mxu0 0.0
        %2925 = vmatprep.subr.mxu0 0.0
        %2926 = vmatpush1.msra.mxu0 0.0
        %2927 = vmatprep.subr.mxu0 0.0
        %2928 = vmatpush1.msra.mxu0 0.0
        %2929 = vmatprep.subr.mxu0 0.0
        %2930 = vmatpush1.msra.mxu0 0.0
        %2931 = vmatprep.subr.mxu0 0.0
        %2932 = vmatpush1.msra.mxu0 0.0
        %2933 = vmatprep.subr.mxu0 0.0
        %2934 = vmatpush1.msra.mxu0 0.0
        %2935 = vmatprep.subr.mxu0 0.0
        %2936 = vmatpush1.msra.mxu0 0.0
        %2937 = vmatprep.subr.mxu0 0.0
        %2938 = vmatpush1.msra.mxu0 0.0
        %2939 = vmatprep.subr.mxu0 0.0
        %2940 = vmatpush1.msra.mxu0 0.0
        %2941 = vmatprep.subr.mxu0 0.0
        %2942 = vmatpush1.msra.mxu0 0.0
        %2943 = vmatprep.subr.mxu0 0.0
        %2944 = vmatpush1.msra.mxu0 0.0
        %2945 = vmatprep.subr.mxu0 0.0
        %2946 = vmatpush1.msra.mxu0 0.0
        %2947 = vmatprep.subr.mxu0 0.0
        %2948 = vmatpush1.msra.mxu0 0.0
        %2949 = vmatprep.subr.mxu0 0.0
        %2950 = vmatpush1.msra.mxu0 0.0
        %2951 = vmatprep.subr.mxu0 0.0
        %2952 = vmatpush1.msra.mxu0 0.0
        %2953 = vmatprep.subr.mxu0 0.0
        %2954 = vmatpush1.msra.mxu0 0.0
        %2955 = vmatprep.subr.mxu0 0.0
        %2956 = vmatpush1.msra.mxu0 0.0
        %2957 = vmatprep.subr.mxu0 0.0
        %2958 = vmatpush1.msra.mxu0 0.0
        %2959 = vmatprep.subr.mxu0 0.0
        %2960 = vmatpush1.msra.mxu0 0.0
        %2961 = vmatprep.subr.mxu0 0.0
        %2962 = vmatpush1.msra.mxu0 0.0
        %2963 = vmatprep.subr.mxu0 0.0
        %2964 = vmatpush1.msra.mxu0 0.0
        %2965 = vmatprep.subr.mxu0 0.0
        %2966 = vmatpush1.msra.mxu0 0.0
        %2967 = vmatprep.subr.mxu0 0.0
        %2968 = vmatpush1.msra.mxu0 0.0
        %2969 = vmatprep.subr.mxu0 0.0
        %2970 = vmatpush1.msra.mxu0 0.0
        %2971 = vmatprep.mubr.f32.mxu0 0.0
        %2972 = vmatmul.mubr.f32.gmra.mrb[0].mxu0 %v462
        %v2973 = vpop.f32.mrb[0].mxu0
        %v2974 = vadd.f32 0.0, %v2973
        %v2975 = vpop.f32.mrb[0].mxu0
        %v2976 = vadd.f32 0.0, %v2975
        %2977 = vdwg.mxu0
        %2978 = vmatprep.subr.mxu0 %v211
        %2979 = vmatpush1.msra.mxu0 %v210
        %2980 = vmatprep.subr.mxu0 %v315
        %2981 = vmatpush1.msra.mxu0 %v314
        %2982 = vmatprep.subr.mxu0 %v655
        %2983 = vmatpush1.msra.mxu0 %v652
        %2984 = vmatprep.subr.mxu0 0.0
        %2985 = vmatpush1.msra.mxu0 0.0
        %2986 = vmatprep.subr.mxu0 0.0
        %2987 = vmatpush1.msra.mxu0 0.0
        %2988 = vmatprep.subr.mxu0 0.0
        %2989 = vmatpush1.msra.mxu0 0.0
        %2990 = vmatprep.subr.mxu0 0.0
        %2991 = vmatpush1.msra.mxu0 0.0
        %2992 = vmatprep.subr.mxu0 0.0
        %2993 = vmatpush1.msra.mxu0 0.0
        %2994 = vmatprep.subr.mxu0 0.0
        %2995 = vmatpush1.msra.mxu0 0.0
        %2996 = vmatprep.subr.mxu0 0.0
        %2997 = vmatpush1.msra.mxu0 0.0
        %2998 = vmatprep.subr.mxu0 0.0
        %2999 = vmatpush1.msra.mxu0 0.0
        %3000 = vmatprep.subr.mxu0 0.0
        %3001 = vmatpush1.msra.mxu0 0.0
        %3002 = vmatprep.subr.mxu0 0.0
        %3003 = vmatpush1.msra.mxu0 0.0
        %3004 = vmatprep.subr.mxu0 0.0
        %3005 = vmatpush1.msra.mxu0 0.0
        %3006 = vmatprep.subr.mxu0 0.0
        %3007 = vmatpush1.msra.mxu0 0.0
        %3008 = vmatprep.subr.mxu0 0.0
        %3009 = vmatpush1.msra.mxu0 0.0
        %3010 = vmatprep.subr.mxu0 0.0
        %3011 = vmatpush1.msra.mxu0 0.0
        %3012 = vmatprep.subr.mxu0 0.0
        %3013 = vmatpush1.msra.mxu0 0.0
        %3014 = vmatprep.subr.mxu0 0.0
        %3015 = vmatpush1.msra.mxu0 0.0
        %3016 = vmatprep.subr.mxu0 0.0
        %3017 = vmatpush1.msra.mxu0 0.0
        %3018 = vmatprep.subr.mxu0 0.0
        %3019 = vmatpush1.msra.mxu0 0.0
        %3020 = vmatprep.subr.mxu0 0.0
        %3021 = vmatpush1.msra.mxu0 0.0
        %3022 = vmatprep.subr.mxu0 0.0
        %3023 = vmatpush1.msra.mxu0 0.0
        %3024 = vmatprep.subr.mxu0 0.0
        %3025 = vmatpush1.msra.mxu0 0.0
        %3026 = vmatprep.subr.mxu0 0.0
        %3027 = vmatpush1.msra.mxu0 0.0
        %3028 = vmatprep.subr.mxu0 0.0
        %3029 = vmatpush1.msra.mxu0 0.0
        %3030 = vmatprep.subr.mxu0 0.0
        %3031 = vmatpush1.msra.mxu0 0.0
        %3032 = vmatprep.subr.mxu0 0.0
        %3033 = vmatpush1.msra.mxu0 0.0
        %3034 = vmatprep.subr.mxu0 0.0
        %3035 = vmatpush1.msra.mxu0 0.0
        %3036 = vmatprep.subr.mxu0 0.0
        %3037 = vmatpush1.msra.mxu0 0.0
        %3038 = vmatprep.subr.mxu0 0.0
        %3039 = vmatpush1.msra.mxu0 0.0
        %3040 = vmatprep.subr.mxu0 0.0
        %3041 = vmatpush1.msra.mxu0 0.0
        %3042 = vmatprep.mubr.f32.mxu0 0.0
        %3043 = vmatmul.mubr.f32.gmra.mrb[0].mxu0 %v462
        %v3044 = vpop.f32.mrb[0].mxu0
        %v3045 = vadd.f32 0.0, %v3044
        %v3046 = vpop.f32.mrb[0].mxu0
        %v3047 = vadd.f32 0.0, %v3046
        %3048 = vdwg.mxu0
        %3049 = vmatprep.subr.mxu0 %v213
        %3050 = vmatpush1.msra.mxu0 %v212
        %3051 = vmatprep.subr.mxu0 %v317
        %3052 = vmatpush1.msra.mxu0 %v316
        %3053 = vmatprep.subr.mxu0 %v661
        %3054 = vmatpush1.msra.mxu0 %v658
        %3055 = vmatprep.subr.mxu0 0.0
        %3056 = vmatpush1.msra.mxu0 0.0
        %3057 = vmatprep.subr.mxu0 0.0
        %3058 = vmatpush1.msra.mxu0 0.0
        %3059 = vmatprep.subr.mxu0 0.0
        %3060 = vmatpush1.msra.mxu0 0.0
        %3061 = vmatprep.subr.mxu0 0.0
        %3062 = vmatpush1.msra.mxu0 0.0
        %3063 = vmatprep.subr.mxu0 0.0
        %3064 = vmatpush1.msra.mxu0 0.0
        %3065 = vmatprep.subr.mxu0 0.0
        %3066 = vmatpush1.msra.mxu0 0.0
        %3067 = vmatprep.subr.mxu0 0.0
        %3068 = vmatpush1.msra.mxu0 0.0
        %3069 = vmatprep.subr.mxu0 0.0
        %3070 = vmatpush1.msra.mxu0 0.0
        %3071 = vmatprep.subr.mxu0 0.0
        %3072 = vmatpush1.msra.mxu0 0.0
        %3073 = vmatprep.subr.mxu0 0.0
        %3074 = vmatpush1.msra.mxu0 0.0
        %3075 = vmatprep.subr.mxu0 0.0
        %3076 = vmatpush1.msra.mxu0 0.0
        %3077 = vmatprep.subr.mxu0 0.0
        %3078 = vmatpush1.msra.mxu0 0.0
        %3079 = vmatprep.subr.mxu0 0.0
        %3080 = vmatpush1.msra.mxu0 0.0
        %3081 = vmatprep.subr.mxu0 0.0
        %3082 = vmatpush1.msra.mxu0 0.0
        %3083 = vmatprep.subr.mxu0 0.0
        %3084 = vmatpush1.msra.mxu0 0.0
        %3085 = vmatprep.subr.mxu0 0.0
        %3086 = vmatpush1.msra.mxu0 0.0
        %3087 = vmatprep.subr.mxu0 0.0
        %3088 = vmatpush1.msra.mxu0 0.0
        %3089 = vmatprep.subr.mxu0 0.0
        %3090 = vmatpush1.msra.mxu0 0.0
        %3091 = vmatprep.subr.mxu0 0.0
        %3092 = vmatpush1.msra.mxu0 0.0
        %3093 = vmatprep.subr.mxu0 0.0
        %3094 = vmatpush1.msra.mxu0 0.0
        %3095 = vmatprep.subr.mxu0 0.0
        %3096 = vmatpush1.msra.mxu0 0.0
        %3097 = vmatprep.subr.mxu0 0.0
        %3098 = vmatpush1.msra.mxu0 0.0
        %3099 = vmatprep.subr.mxu0 0.0
        %3100 = vmatpush1.msra.mxu0 0.0
        %3101 = vmatprep.subr.mxu0 0.0
        %3102 = vmatpush1.msra.mxu0 0.0
        %3103 = vmatprep.subr.mxu0 0.0
        %3104 = vmatpush1.msra.mxu0 0.0
        %3105 = vmatprep.subr.mxu0 0.0
        %3106 = vmatpush1.msra.mxu0 0.0
        %3107 = vmatprep.subr.mxu0 0.0
        %3108 = vmatpush1.msra.mxu0 0.0
        %3109 = vmatprep.subr.mxu0 0.0
        %3110 = vmatpush1.msra.mxu0 0.0
        %3111 = vmatprep.subr.mxu0 0.0
        %3112 = vmatpush1.msra.mxu0 0.0
        %3113 = vmatprep.mubr.f32.mxu0 0.0
        %3114 = vmatmul.mubr.f32.gmra.mrb[0].mxu0 %v462
        %v3115 = vpop.f32.mrb[0].mxu0
        %v3116 = vadd.f32 0.0, %v3115
        %v3117 = vpop.f32.mrb[0].mxu0
        %v3118 = vadd.f32 0.0, %v3117
        %3119 = vdwg.mxu0
        %3120 = vmatprep.subr.mxu0 %v215
        %3121 = vmatpush1.msra.mxu0 %v214
        %3122 = vmatprep.subr.mxu0 %v319
        %3123 = vmatpush1.msra.mxu0 %v318
        %3124 = vmatprep.subr.mxu0 %v667
        %3125 = vmatpush1.msra.mxu0 %v664
        %3126 = vmatprep.subr.mxu0 0.0
        %3127 = vmatpush1.msra.mxu0 0.0
        %3128 = vmatprep.subr.mxu0 0.0
        %3129 = vmatpush1.msra.mxu0 0.0
        %3130 = vmatprep.subr.mxu0 0.0
        %3131 = vmatpush1.msra.mxu0 0.0
        %3132 = vmatprep.subr.mxu0 0.0
        %3133 = vmatpush1.msra.mxu0 0.0
        %3134 = vmatprep.subr.mxu0 0.0
        %3135 = vmatpush1.msra.mxu0 0.0
        %3136 = vmatprep.subr.mxu0 0.0
        %3137 = vmatpush1.msra.mxu0 0.0
        %3138 = vmatprep.subr.mxu0 0.0
        %3139 = vmatpush1.msra.mxu0 0.0
        %3140 = vmatprep.subr.mxu0 0.0
        %3141 = vmatpush1.msra.mxu0 0.0
        %3142 = vmatprep.subr.mxu0 0.0
        %3143 = vmatpush1.msra.mxu0 0.0
        %3144 = vmatprep.subr.mxu0 0.0
        %3145 = vmatpush1.msra.mxu0 0.0
        %3146 = vmatprep.subr.mxu0 0.0
        %3147 = vmatpush1.msra.mxu0 0.0
        %3148 = vmatprep.subr.mxu0 0.0
        %3149 = vmatpush1.msra.mxu0 0.0
        %3150 = vmatprep.subr.mxu0 0.0
        %3151 = vmatpush1.msra.mxu0 0.0
        %3152 = vmatprep.subr.mxu0 0.0
        %3153 = vmatpush1.msra.mxu0 0.0
        %3154 = vmatprep.subr.mxu0 0.0
        %3155 = vmatpush1.msra.mxu0 0.0
        %3156 = vmatprep.subr.mxu0 0.0
        %3157 = vmatpush1.msra.mxu0 0.0
        %3158 = vmatprep.subr.mxu0 0.0
        %3159 = vmatpush1.msra.mxu0 0.0
        %3160 = vmatprep.subr.mxu0 0.0
        %3161 = vmatpush1.msra.mxu0 0.0
        %3162 = vmatprep.subr.mxu0 0.0
        %3163 = vmatpush1.msra.mxu0 0.0
        %3164 = vmatprep.subr.mxu0 0.0
        %3165 = vmatpush1.msra.mxu0 0.0
        %3166 = vmatprep.subr.mxu0 0.0
        %3167 = vmatpush1.msra.mxu0 0.0
        %3168 = vmatprep.subr.mxu0 0.0
        %3169 = vmatpush1.msra.mxu0 0.0
        %3170 = vmatprep.subr.mxu0 0.0
        %3171 = vmatpush1.msra.mxu0 0.0
        %3172 = vmatprep.subr.mxu0 0.0
        %3173 = vmatpush1.msra.mxu0 0.0
        %3174 = vmatprep.subr.mxu0 0.0
        %3175 = vmatpush1.msra.mxu0 0.0
        %3176 = vmatprep.subr.mxu0 0.0
        %3177 = vmatpush1.msra.mxu0 0.0
        %3178 = vmatprep.subr.mxu0 0.0
        %3179 = vmatpush1.msra.mxu0 0.0
        %3180 = vmatprep.subr.mxu0 0.0
        %3181 = vmatpush1.msra.mxu0 0.0
        %3182 = vmatprep.subr.mxu0 0.0
        %3183 = vmatpush1.msra.mxu0 0.0
        %3184 = vmatprep.mubr.f32.mxu0 0.0
        %3185 = vmatmul.mubr.f32.gmra.mrb[0].mxu0 %v462
        %v3186 = vpop.f32.mrb[0].mxu0
        %v3187 = vadd.f32 0.0, %v3186
        %v3188 = vpop.f32.mrb[0].mxu0
        %v3189 = vadd.f32 0.0, %v3188
        %3190 = vdwg.mxu0
        %3191 = vmatprep.subr.mxu0 %v217
        %3192 = vmatpush1.msra.mxu0 %v216
        %3193 = vmatprep.subr.mxu0 %v321
        %3194 = vmatpush1.msra.mxu0 %v320
        %3195 = vmatprep.subr.mxu0 %v673
        %3196 = vmatpush1.msra.mxu0 %v670
        %3197 = vmatprep.subr.mxu0 0.0
        %3198 = vmatpush1.msra.mxu0 0.0
        %3199 = vmatprep.subr.mxu0 0.0
        %3200 = vmatpush1.msra.mxu0 0.0
        %3201 = vmatprep.subr.mxu0 0.0
        %3202 = vmatpush1.msra.mxu0 0.0
        %3203 = vmatprep.subr.mxu0 0.0
        %3204 = vmatpush1.msra.mxu0 0.0
        %3205 = vmatprep.subr.mxu0 0.0
        %3206 = vmatpush1.msra.mxu0 0.0
        %3207 = vmatprep.subr.mxu0 0.0
        %3208 = vmatpush1.msra.mxu0 0.0
        %3209 = vmatprep.subr.mxu0 0.0
        %3210 = vmatpush1.msra.mxu0 0.0
        %3211 = vmatprep.subr.mxu0 0.0
        %3212 = vmatpush1.msra.mxu0 0.0
        %3213 = vmatprep.subr.mxu0 0.0
        %3214 = vmatpush1.msra.mxu0 0.0
        %3215 = vmatprep.subr.mxu0 0.0
        %3216 = vmatpush1.msra.mxu0 0.0
        %3217 = vmatprep.subr.mxu0 0.0
        %3218 = vmatpush1.msra.mxu0 0.0
        %3219 = vmatprep.subr.mxu0 0.0
        %3220 = vmatpush1.msra.mxu0 0.0
        %3221 = vmatprep.subr.mxu0 0.0
        %3222 = vmatpush1.msra.mxu0 0.0
        %3223 = vmatprep.subr.mxu0 0.0
        %3224 = vmatpush1.msra.mxu0 0.0
        %3225 = vmatprep.subr.mxu0 0.0
        %3226 = vmatpush1.msra.mxu0 0.0
        %3227 = vmatprep.subr.mxu0 0.0
        %3228 = vmatpush1.msra.mxu0 0.0
        %3229 = vmatprep.subr.mxu0 0.0
        %3230 = vmatpush1.msra.mxu0 0.0
        %3231 = vmatprep.subr.mxu0 0.0
        %3232 = vmatpush1.msra.mxu0 0.0
        %3233 = vmatprep.subr.mxu0 0.0
        %3234 = vmatpush1.msra.mxu0 0.0
        %3235 = vmatprep.subr.mxu0 0.0
        %3236 = vmatpush1.msra.mxu0 0.0
        %3237 = vmatprep.subr.mxu0 0.0
        %3238 = vmatpush1.msra.mxu0 0.0
        %3239 = vmatprep.subr.mxu0 0.0
        %3240 = vmatpush1.msra.mxu0 0.0
        %3241 = vmatprep.subr.mxu0 0.0
        %3242 = vmatpush1.msra.mxu0 0.0
        %3243 = vmatprep.subr.mxu0 0.0
        %3244 = vmatpush1.msra.mxu0 0.0
        %3245 = vmatprep.subr.mxu0 0.0
        %3246 = vmatpush1.msra.mxu0 0.0
        %3247 = vmatprep.subr.mxu0 0.0
        %3248 = vmatpush1.msra.mxu0 0.0
        %3249 = vmatprep.subr.mxu0 0.0
        %3250 = vmatpush1.msra.mxu0 0.0
        %3251 = vmatprep.subr.mxu0 0.0
        %3252 = vmatpush1.msra.mxu0 0.0
        %3253 = vmatprep.subr.mxu0 0.0
        %3254 = vmatpush1.msra.mxu0 0.0
        %3255 = vmatprep.mubr.f32.mxu0 0.0
        %3256 = vmatmul.mubr.f32.gmra.mrb[0].mxu0 %v462
        %v3257 = vpop.f32.mrb[0].mxu0
        %v3258 = vadd.f32 0.0, %v3257
        %v3259 = vpop.f32.mrb[0].mxu0
        %v3260 = vadd.f32 0.0, %v3259
        %3261 = vdwg.mxu0
        %3262 = vmatprep.subr.mxu0 %v219
        %3263 = vmatpush1.msra.mxu0 %v218
        %3264 = vmatprep.subr.mxu0 %v323
        %3265 = vmatpush1.msra.mxu0 %v322
        %3266 = vmatprep.subr.mxu0 %v679
        %3267 = vmatpush1.msra.mxu0 %v676
        %3268 = vmatprep.subr.mxu0 0.0
        %3269 = vmatpush1.msra.mxu0 0.0
        %3270 = vmatprep.subr.mxu0 0.0
        %3271 = vmatpush1.msra.mxu0 0.0
        %3272 = vmatprep.subr.mxu0 0.0
        %3273 = vmatpush1.msra.mxu0 0.0
        %3274 = vmatprep.subr.mxu0 0.0
        %3275 = vmatpush1.msra.mxu0 0.0
        %3276 = vmatprep.subr.mxu0 0.0
        %3277 = vmatpush1.msra.mxu0 0.0
        %3278 = vmatprep.subr.mxu0 0.0
        %3279 = vmatpush1.msra.mxu0 0.0
        %3280 = vmatprep.subr.mxu0 0.0
        %3281 = vmatpush1.msra.mxu0 0.0
        %3282 = vmatprep.subr.mxu0 0.0
        %3283 = vmatpush1.msra.mxu0 0.0
        %3284 = vmatprep.subr.mxu0 0.0
        %3285 = vmatpush1.msra.mxu0 0.0
        %3286 = vmatprep.subr.mxu0 0.0
        %3287 = vmatpush1.msra.mxu0 0.0
        %3288 = vmatprep.subr.mxu0 0.0
        %3289 = vmatpush1.msra.mxu0 0.0
        %3290 = vmatprep.subr.mxu0 0.0
        %3291 = vmatpush1.msra.mxu0 0.0
        %3292 = vmatprep.subr.mxu0 0.0
        %3293 = vmatpush1.msra.mxu0 0.0
        %3294 = vmatprep.subr.mxu0 0.0
        %3295 = vmatpush1.msra.mxu0 0.0
        %3296 = vmatprep.subr.mxu0 0.0
        %3297 = vmatpush1.msra.mxu0 0.0
        %3298 = vmatprep.subr.mxu0 0.0
        %3299 = vmatpush1.msra.mxu0 0.0
        %3300 = vmatprep.subr.mxu0 0.0
        %3301 = vmatpush1.msra.mxu0 0.0
        %3302 = vmatprep.subr.mxu0 0.0
        %3303 = vmatpush1.msra.mxu0 0.0
        %3304 = vmatprep.subr.mxu0 0.0
        %3305 = vmatpush1.msra.mxu0 0.0
        %3306 = vmatprep.subr.mxu0 0.0
        %3307 = vmatpush1.msra.mxu0 0.0
        %3308 = vmatprep.subr.mxu0 0.0
        %3309 = vmatpush1.msra.mxu0 0.0
        %3310 = vmatprep.subr.mxu0 0.0
        %3311 = vmatpush1.msra.mxu0 0.0
        %3312 = vmatprep.subr.mxu0 0.0
        %3313 = vmatpush1.msra.mxu0 0.0
        %3314 = vmatprep.subr.mxu0 0.0
        %3315 = vmatpush1.msra.mxu0 0.0
        %3316 = vmatprep.subr.mxu0 0.0
        %3317 = vmatpush1.msra.mxu0 0.0
        %3318 = vmatprep.subr.mxu0 0.0
        %3319 = vmatpush1.msra.mxu0 0.0
        %3320 = vmatprep.subr.mxu0 0.0
        %3321 = vmatpush1.msra.mxu0 0.0
        %3322 = vmatprep.subr.mxu0 0.0
        %3323 = vmatpush1.msra.mxu0 0.0
        %3324 = vmatprep.subr.mxu0 0.0
        %3325 = vmatpush1.msra.mxu0 0.0
        %3326 = vmatprep.mubr.f32.mxu0 0.0
        %3327 = vmatmul.mubr.f32.gmra.mrb[0].mxu0 %v462
        %v3328 = vpop.f32.mrb[0].mxu0
        %v3329 = vadd.f32 0.0, %v3328
        %v3330 = vpop.f32.mrb[0].mxu0
        %v3331 = vadd.f32 0.0, %v3330
        %3332 = vdwg.mxu0
        %3333 = vmatprep.subr.mxu0 %v221
        %3334 = vmatpush1.msra.mxu0 %v220
        %3335 = vmatprep.subr.mxu0 %v325
        %3336 = vmatpush1.msra.mxu0 %v324
        %3337 = vmatprep.subr.mxu0 %v685
        %3338 = vmatpush1.msra.mxu0 %v682
        %3339 = vmatprep.subr.mxu0 0.0
        %3340 = vmatpush1.msra.mxu0 0.0
        %3341 = vmatprep.subr.mxu0 0.0
        %3342 = vmatpush1.msra.mxu0 0.0
        %3343 = vmatprep.subr.mxu0 0.0
        %3344 = vmatpush1.msra.mxu0 0.0
        %3345 = vmatprep.subr.mxu0 0.0
        %3346 = vmatpush1.msra.mxu0 0.0
        %3347 = vmatprep.subr.mxu0 0.0
        %3348 = vmatpush1.msra.mxu0 0.0
        %3349 = vmatprep.subr.mxu0 0.0
        %3350 = vmatpush1.msra.mxu0 0.0
        %3351 = vmatprep.subr.mxu0 0.0
        %3352 = vmatpush1.msra.mxu0 0.0
        %3353 = vmatprep.subr.mxu0 0.0
        %3354 = vmatpush1.msra.mxu0 0.0
        %3355 = vmatprep.subr.mxu0 0.0
        %3356 = vmatpush1.msra.mxu0 0.0
        %3357 = vmatprep.subr.mxu0 0.0
        %3358 = vmatpush1.msra.mxu0 0.0
        %3359 = vmatprep.subr.mxu0 0.0
        %3360 = vmatpush1.msra.mxu0 0.0
        %3361 = vmatprep.subr.mxu0 0.0
        %3362 = vmatpush1.msra.mxu0 0.0
        %3363 = vmatprep.subr.mxu0 0.0
        %3364 = vmatpush1.msra.mxu0 0.0
        %3365 = vmatprep.subr.mxu0 0.0
        %3366 = vmatpush1.msra.mxu0 0.0
        %3367 = vmatprep.subr.mxu0 0.0
        %3368 = vmatpush1.msra.mxu0 0.0
        %3369 = vmatprep.subr.mxu0 0.0
        %3370 = vmatpush1.msra.mxu0 0.0
        %3371 = vmatprep.subr.mxu0 0.0
        %3372 = vmatpush1.msra.mxu0 0.0
        %3373 = vmatprep.subr.mxu0 0.0
        %3374 = vmatpush1.msra.mxu0 0.0
        %3375 = vmatprep.subr.mxu0 0.0
        %3376 = vmatpush1.msra.mxu0 0.0
        %3377 = vmatprep.subr.mxu0 0.0
        %3378 = vmatpush1.msra.mxu0 0.0
        %3379 = vmatprep.subr.mxu0 0.0
        %3380 = vmatpush1.msra.mxu0 0.0
        %3381 = vmatprep.subr.mxu0 0.0
        %3382 = vmatpush1.msra.mxu0 0.0
        %3383 = vmatprep.subr.mxu0 0.0
        %3384 = vmatpush1.msra.mxu0 0.0
        %3385 = vmatprep.subr.mxu0 0.0
        %3386 = vmatpush1.msra.mxu0 0.0
        %3387 = vmatprep.subr.mxu0 0.0
        %3388 = vmatpush1.msra.mxu0 0.0
        %3389 = vmatprep.subr.mxu0 0.0
        %3390 = vmatpush1.msra.mxu0 0.0
        %3391 = vmatprep.subr.mxu0 0.0
        %3392 = vmatpush1.msra.mxu0 0.0
        %3393 = vmatprep.subr.mxu0 0.0
        %3394 = vmatpush1.msra.mxu0 0.0
        %3395 = vmatprep.subr.mxu0 0.0
        %3396 = vmatpush1.msra.mxu0 0.0
        %3397 = vmatprep.mubr.f32.mxu0 0.0
        %3398 = vmatmul.mubr.f32.gmra.mrb[0].mxu0 %v462
        %v3399 = vpop.f32.mrb[0].mxu0
        %v3400 = vadd.f32 0.0, %v3399
        %v3401 = vpop.f32.mrb[0].mxu0
        %v3402 = vadd.f32 0.0, %v3401
        %3403 = vdwg.mxu0
        %3404 = vmatprep.subr.mxu0 %v223
        %3405 = vmatpush1.msra.mxu0 %v222
        %3406 = vmatprep.subr.mxu0 %v327
        %3407 = vmatpush1.msra.mxu0 %v326
        %3408 = vmatprep.subr.mxu0 %v691
        %3409 = vmatpush1.msra.mxu0 %v688
        %3410 = vmatprep.subr.mxu0 0.0
        %3411 = vmatpush1.msra.mxu0 0.0
        %3412 = vmatprep.subr.mxu0 0.0
        %3413 = vmatpush1.msra.mxu0 0.0
        %3414 = vmatprep.subr.mxu0 0.0
        %3415 = vmatpush1.msra.mxu0 0.0
        %3416 = vmatprep.subr.mxu0 0.0
        %3417 = vmatpush1.msra.mxu0 0.0
        %3418 = vmatprep.subr.mxu0 0.0
        %3419 = vmatpush1.msra.mxu0 0.0
        %3420 = vmatprep.subr.mxu0 0.0
        %3421 = vmatpush1.msra.mxu0 0.0
        %3422 = vmatprep.subr.mxu0 0.0
        %3423 = vmatpush1.msra.mxu0 0.0
        %3424 = vmatprep.subr.mxu0 0.0
        %3425 = vmatpush1.msra.mxu0 0.0
        %3426 = vmatprep.subr.mxu0 0.0
        %3427 = vmatpush1.msra.mxu0 0.0
        %3428 = vmatprep.subr.mxu0 0.0
        %3429 = vmatpush1.msra.mxu0 0.0
        %3430 = vmatprep.subr.mxu0 0.0
        %3431 = vmatpush1.msra.mxu0 0.0
        %3432 = vmatprep.subr.mxu0 0.0
        %3433 = vmatpush1.msra.mxu0 0.0
        %3434 = vmatprep.subr.mxu0 0.0
        %3435 = vmatpush1.msra.mxu0 0.0
        %3436 = vmatprep.subr.mxu0 0.0
        %3437 = vmatpush1.msra.mxu0 0.0
        %3438 = vmatprep.subr.mxu0 0.0
        %3439 = vmatpush1.msra.mxu0 0.0
        %3440 = vmatprep.subr.mxu0 0.0
        %3441 = vmatpush1.msra.mxu0 0.0
        %3442 = vmatprep.subr.mxu0 0.0
        %3443 = vmatpush1.msra.mxu0 0.0
        %3444 = vmatprep.subr.mxu0 0.0
        %3445 = vmatpush1.msra.mxu0 0.0
        %3446 = vmatprep.subr.mxu0 0.0
        %3447 = vmatpush1.msra.mxu0 0.0
        %3448 = vmatprep.subr.mxu0 0.0
        %3449 = vmatpush1.msra.mxu0 0.0
        %3450 = vmatprep.subr.mxu0 0.0
        %3451 = vmatpush1.msra.mxu0 0.0
        %3452 = vmatprep.subr.mxu0 0.0
        %3453 = vmatpush1.msra.mxu0 0.0
        %3454 = vmatprep.subr.mxu0 0.0
        %3455 = vmatpush1.msra.mxu0 0.0
        %3456 = vmatprep.subr.mxu0 0.0
        %3457 = vmatpush1.msra.mxu0 0.0
        %3458 = vmatprep.subr.mxu0 0.0
        %3459 = vmatpush1.msra.mxu0 0.0
        %3460 = vmatprep.subr.mxu0 0.0
        %3461 = vmatpush1.msra.mxu0 0.0
        %3462 = vmatprep.subr.mxu0 0.0
        %3463 = vmatpush1.msra.mxu0 0.0
        %3464 = vmatprep.subr.mxu0 0.0
        %3465 = vmatpush1.msra.mxu0 0.0
        %3466 = vmatprep.subr.mxu0 0.0
        %3467 = vmatpush1.msra.mxu0 0.0
        %3468 = vmatprep.mubr.f32.mxu0 0.0
        %3469 = vmatmul.mubr.f32.gmra.mrb[0].mxu0 %v462
        %v3470 = vpop.f32.mrb[0].mxu0
        %v3471 = vadd.f32 0.0, %v3470
        %v3472 = vpop.f32.mrb[0].mxu0
        %v3473 = vadd.f32 0.0, %v3472
        %3474 = vdwg.mxu0
        %3475 = vmatprep.subr.mxu0 %v225
        %3476 = vmatpush1.msra.mxu0 %v224
        %3477 = vmatprep.subr.mxu0 %v329
        %3478 = vmatpush1.msra.mxu0 %v328
        %3479 = vmatprep.subr.mxu0 %v697
        %3480 = vmatpush1.msra.mxu0 %v694
        %3481 = vmatprep.subr.mxu0 0.0
        %3482 = vmatpush1.msra.mxu0 0.0
        %3483 = vmatprep.subr.mxu0 0.0
        %3484 = vmatpush1.msra.mxu0 0.0
        %3485 = vmatprep.subr.mxu0 0.0
        %3486 = vmatpush1.msra.mxu0 0.0
        %3487 = vmatprep.subr.mxu0 0.0
        %3488 = vmatpush1.msra.mxu0 0.0
        %3489 = vmatprep.subr.mxu0 0.0
        %3490 = vmatpush1.msra.mxu0 0.0
        %3491 = vmatprep.subr.mxu0 0.0
        %3492 = vmatpush1.msra.mxu0 0.0
        %3493 = vmatprep.subr.mxu0 0.0
        %3494 = vmatpush1.msra.mxu0 0.0
        %3495 = vmatprep.subr.mxu0 0.0
        %3496 = vmatpush1.msra.mxu0 0.0
        %3497 = vmatprep.subr.mxu0 0.0
        %3498 = vmatpush1.msra.mxu0 0.0
        %3499 = vmatprep.subr.mxu0 0.0
        %3500 = vmatpush1.msra.mxu0 0.0
        %3501 = vmatprep.subr.mxu0 0.0
        %3502 = vmatpush1.msra.mxu0 0.0
        %3503 = vmatprep.subr.mxu0 0.0
        %3504 = vmatpush1.msra.mxu0 0.0
        %3505 = vmatprep.subr.mxu0 0.0
        %3506 = vmatpush1.msra.mxu0 0.0
        %3507 = vmatprep.subr.mxu0 0.0
        %3508 = vmatpush1.msra.mxu0 0.0
        %3509 = vmatprep.subr.mxu0 0.0
        %3510 = vmatpush1.msra.mxu0 0.0
        %3511 = vmatprep.subr.mxu0 0.0
        %3512 = vmatpush1.msra.mxu0 0.0
        %3513 = vmatprep.subr.mxu0 0.0
        %3514 = vmatpush1.msra.mxu0 0.0
        %3515 = vmatprep.subr.mxu0 0.0
        %3516 = vmatpush1.msra.mxu0 0.0
        %3517 = vmatprep.subr.mxu0 0.0
        %3518 = vmatpush1.msra.mxu0 0.0
        %3519 = vmatprep.subr.mxu0 0.0
        %3520 = vmatpush1.msra.mxu0 0.0
        %3521 = vmatprep.subr.mxu0 0.0
        %3522 = vmatpush1.msra.mxu0 0.0
        %3523 = vmatprep.subr.mxu0 0.0
        %3524 = vmatpush1.msra.mxu0 0.0
        %3525 = vmatprep.subr.mxu0 0.0
        %3526 = vmatpush1.msra.mxu0 0.0
        %3527 = vmatprep.subr.mxu0 0.0
        %3528 = vmatpush1.msra.mxu0 0.0
        %3529 = vmatprep.subr.mxu0 0.0
        %3530 = vmatpush1.msra.mxu0 0.0
        %3531 = vmatprep.subr.mxu0 0.0
        %3532 = vmatpush1.msra.mxu0 0.0
        %3533 = vmatprep.subr.mxu0 0.0
        %3534 = vmatpush1.msra.mxu0 0.0
        %3535 = vmatprep.subr.mxu0 0.0
        %3536 = vmatpush1.msra.mxu0 0.0
        %3537 = vmatprep.subr.mxu0 0.0
        %3538 = vmatpush1.msra.mxu0 0.0
        %3539 = vmatprep.mubr.f32.mxu0 0.0
        %3540 = vmatmul.mubr.f32.gmra.mrb[0].mxu0 %v462
        %v3541 = vpop.f32.mrb[0].mxu0
        %v3542 = vadd.f32 0.0, %v3541
        %v3543 = vpop.f32.mrb[0].mxu0
        %v3544 = vadd.f32 0.0, %v3543
        %3545 = vdwg.mxu0
        %3546 = vmatprep.subr.mxu0 %v227
        %3547 = vmatpush1.msra.mxu0 %v226
        %3548 = vmatprep.subr.mxu0 %v331
        %3549 = vmatpush1.msra.mxu0 %v330
        %3550 = vmatprep.subr.mxu0 %v703
        %3551 = vmatpush1.msra.mxu0 %v700
        %3552 = vmatprep.subr.mxu0 0.0
        %3553 = vmatpush1.msra.mxu0 0.0
        %3554 = vmatprep.subr.mxu0 0.0
        %3555 = vmatpush1.msra.mxu0 0.0
        %3556 = vmatprep.subr.mxu0 0.0
        %3557 = vmatpush1.msra.mxu0 0.0
        %3558 = vmatprep.subr.mxu0 0.0
        %3559 = vmatpush1.msra.mxu0 0.0
        %3560 = vmatprep.subr.mxu0 0.0
        %3561 = vmatpush1.msra.mxu0 0.0
        %3562 = vmatprep.subr.mxu0 0.0
        %3563 = vmatpush1.msra.mxu0 0.0
        %3564 = vmatprep.subr.mxu0 0.0
        %3565 = vmatpush1.msra.mxu0 0.0
        %3566 = vmatprep.subr.mxu0 0.0
        %3567 = vmatpush1.msra.mxu0 0.0
        %3568 = vmatprep.subr.mxu0 0.0
        %3569 = vmatpush1.msra.mxu0 0.0
        %3570 = vmatprep.subr.mxu0 0.0
        %3571 = vmatpush1.msra.mxu0 0.0
        %3572 = vmatprep.subr.mxu0 0.0
        %3573 = vmatpush1.msra.mxu0 0.0
        %3574 = vmatprep.subr.mxu0 0.0
        %3575 = vmatpush1.msra.mxu0 0.0
        %3576 = vmatprep.subr.mxu0 0.0
        %3577 = vmatpush1.msra.mxu0 0.0
        %3578 = vmatprep.subr.mxu0 0.0
        %3579 = vmatpush1.msra.mxu0 0.0
        %3580 = vmatprep.subr.mxu0 0.0
        %3581 = vmatpush1.msra.mxu0 0.0
        %3582 = vmatprep.subr.mxu0 0.0
        %3583 = vmatpush1.msra.mxu0 0.0
        %3584 = vmatprep.subr.mxu0 0.0
        %3585 = vmatpush1.msra.mxu0 0.0
        %3586 = vmatprep.subr.mxu0 0.0
        %3587 = vmatpush1.msra.mxu0 0.0
        %3588 = vmatprep.subr.mxu0 0.0
        %3589 = vmatpush1.msra.mxu0 0.0
        %3590 = vmatprep.subr.mxu0 0.0
        %3591 = vmatpush1.msra.mxu0 0.0
        %3592 = vmatprep.subr.mxu0 0.0
        %3593 = vmatpush1.msra.mxu0 0.0
        %3594 = vmatprep.subr.mxu0 0.0
        %3595 = vmatpush1.msra.mxu0 0.0
        %3596 = vmatprep.subr.mxu0 0.0
        %3597 = vmatpush1.msra.mxu0 0.0
        %3598 = vmatprep.subr.mxu0 0.0
        %3599 = vmatpush1.msra.mxu0 0.0
        %3600 = vmatprep.subr.mxu0 0.0
        %3601 = vmatpush1.msra.mxu0 0.0
        %3602 = vmatprep.subr.mxu0 0.0
        %3603 = vmatpush1.msra.mxu0 0.0
        %3604 = vmatprep.subr.mxu0 0.0
        %3605 = vmatpush1.msra.mxu0 0.0
        %3606 = vmatprep.subr.mxu0 0.0
        %3607 = vmatpush1.msra.mxu0 0.0
        %3608 = vmatprep.subr.mxu0 0.0
        %3609 = vmatpush1.msra.mxu0 0.0
        %3610 = vmatprep.mubr.f32.mxu0 0.0
        %3611 = vmatmul.mubr.f32.gmra.mrb[0].mxu0 %v462
        %v3612 = vpop.f32.mrb[0].mxu0
        %v3613 = vadd.f32 0.0, %v3612
        %v3614 = vpop.f32.mrb[0].mxu0
        %v3615 = vadd.f32 0.0, %v3614
        %3616 = vdwg.mxu0
        %3617 = vmatprep.subr.mxu0 %v229
        %3618 = vmatpush1.msra.mxu0 %v228
        %3619 = vmatprep.subr.mxu0 %v333
        %3620 = vmatpush1.msra.mxu0 %v332
        %3621 = vmatprep.subr.mxu0 %v709
        %3622 = vmatpush1.msra.mxu0 %v706
        %3623 = vmatprep.subr.mxu0 0.0
        %3624 = vmatpush1.msra.mxu0 0.0
        %3625 = vmatprep.subr.mxu0 0.0
        %3626 = vmatpush1.msra.mxu0 0.0
        %3627 = vmatprep.subr.mxu0 0.0
        %3628 = vmatpush1.msra.mxu0 0.0
        %3629 = vmatprep.subr.mxu0 0.0
        %3630 = vmatpush1.msra.mxu0 0.0
        %3631 = vmatprep.subr.mxu0 0.0
        %3632 = vmatpush1.msra.mxu0 0.0
        %3633 = vmatprep.subr.mxu0 0.0
        %3634 = vmatpush1.msra.mxu0 0.0
        %3635 = vmatprep.subr.mxu0 0.0
        %3636 = vmatpush1.msra.mxu0 0.0
        %3637 = vmatprep.subr.mxu0 0.0
        %3638 = vmatpush1.msra.mxu0 0.0
        %3639 = vmatprep.subr.mxu0 0.0
        %3640 = vmatpush1.msra.mxu0 0.0
        %3641 = vmatprep.subr.mxu0 0.0
        %3642 = vmatpush1.msra.mxu0 0.0
        %3643 = vmatprep.subr.mxu0 0.0
        %3644 = vmatpush1.msra.mxu0 0.0
        %3645 = vmatprep.subr.mxu0 0.0
        %3646 = vmatpush1.msra.mxu0 0.0
        %3647 = vmatprep.subr.mxu0 0.0
        %3648 = vmatpush1.msra.mxu0 0.0
        %3649 = vmatprep.subr.mxu0 0.0
        %3650 = vmatpush1.msra.mxu0 0.0
        %3651 = vmatprep.subr.mxu0 0.0
        %3652 = vmatpush1.msra.mxu0 0.0
        %3653 = vmatprep.subr.mxu0 0.0
        %3654 = vmatpush1.msra.mxu0 0.0
        %3655 = vmatprep.subr.mxu0 0.0
        %3656 = vmatpush1.msra.mxu0 0.0
        %3657 = vmatprep.subr.mxu0 0.0
        %3658 = vmatpush1.msra.mxu0 0.0
        %3659 = vmatprep.subr.mxu0 0.0
        %3660 = vmatpush1.msra.mxu0 0.0
        %3661 = vmatprep.subr.mxu0 0.0
        %3662 = vmatpush1.msra.mxu0 0.0
        %3663 = vmatprep.subr.mxu0 0.0
        %3664 = vmatpush1.msra.mxu0 0.0
        %3665 = vmatprep.subr.mxu0 0.0
        %3666 = vmatpush1.msra.mxu0 0.0
        %3667 = vmatprep.subr.mxu0 0.0
        %3668 = vmatpush1.msra.mxu0 0.0
        %3669 = vmatprep.subr.mxu0 0.0
        %3670 = vmatpush1.msra.mxu0 0.0
        %3671 = vmatprep.subr.mxu0 0.0
        %3672 = vmatpush1.msra.mxu0 0.0
        %3673 = vmatprep.subr.mxu0 0.0
        %3674 = vmatpush1.msra.mxu0 0.0
        %3675 = vmatprep.subr.mxu0 0.0
        %3676 = vmatpush1.msra.mxu0 0.0
        %3677 = vmatprep.subr.mxu0 0.0
        %3678 = vmatpush1.msra.mxu0 0.0
        %3679 = vmatprep.subr.mxu0 0.0
        %3680 = vmatpush1.msra.mxu0 0.0
        %3681 = vmatprep.mubr.f32.mxu0 0.0
        %3682 = vmatmul.mubr.f32.gmra.mrb[0].mxu0 %v462
        %v3683 = vpop.f32.mrb[0].mxu0
        %v3684 = vadd.f32 0.0, %v3683
        %v3685 = vpop.f32.mrb[0].mxu0
        %v3686 = vadd.f32 0.0, %v3685
        %3687 = vdwg.mxu0
        %3688 = vmatprep.subr.mxu0 %v231
        %3689 = vmatpush1.msra.mxu0 %v230
        %3690 = vmatprep.subr.mxu0 %v335
        %3691 = vmatpush1.msra.mxu0 %v334
        %3692 = vmatprep.subr.mxu0 %v715
        %3693 = vmatpush1.msra.mxu0 %v712
        %3694 = vmatprep.subr.mxu0 0.0
        %3695 = vmatpush1.msra.mxu0 0.0
        %3696 = vmatprep.subr.mxu0 0.0
        %3697 = vmatpush1.msra.mxu0 0.0
        %3698 = vmatprep.subr.mxu0 0.0
        %3699 = vmatpush1.msra.mxu0 0.0
        %3700 = vmatprep.subr.mxu0 0.0
        %3701 = vmatpush1.msra.mxu0 0.0
        %3702 = vmatprep.subr.mxu0 0.0
        %3703 = vmatpush1.msra.mxu0 0.0
        %3704 = vmatprep.subr.mxu0 0.0
        %3705 = vmatpush1.msra.mxu0 0.0
        %3706 = vmatprep.subr.mxu0 0.0
        %3707 = vmatpush1.msra.mxu0 0.0
        %3708 = vmatprep.subr.mxu0 0.0
        %3709 = vmatpush1.msra.mxu0 0.0
        %3710 = vmatprep.subr.mxu0 0.0
        %3711 = vmatpush1.msra.mxu0 0.0
        %3712 = vmatprep.subr.mxu0 0.0
        %3713 = vmatpush1.msra.mxu0 0.0
        %3714 = vmatprep.subr.mxu0 0.0
        %3715 = vmatpush1.msra.mxu0 0.0
        %3716 = vmatprep.subr.mxu0 0.0
        %3717 = vmatpush1.msra.mxu0 0.0
        %3718 = vmatprep.subr.mxu0 0.0
        %3719 = vmatpush1.msra.mxu0 0.0
        %3720 = vmatprep.subr.mxu0 0.0
        %3721 = vmatpush1.msra.mxu0 0.0
        %3722 = vmatprep.subr.mxu0 0.0
        %3723 = vmatpush1.msra.mxu0 0.0
        %3724 = vmatprep.subr.mxu0 0.0
        %3725 = vmatpush1.msra.mxu0 0.0
        %3726 = vmatprep.subr.mxu0 0.0
        %3727 = vmatpush1.msra.mxu0 0.0
        %3728 = vmatprep.subr.mxu0 0.0
        %3729 = vmatpush1.msra.mxu0 0.0
        %3730 = vmatprep.subr.mxu0 0.0
        %3731 = vmatpush1.msra.mxu0 0.0
        %3732 = vmatprep.subr.mxu0 0.0
        %3733 = vmatpush1.msra.mxu0 0.0
        %3734 = vmatprep.subr.mxu0 0.0
        %3735 = vmatpush1.msra.mxu0 0.0
        %3736 = vmatprep.subr.mxu0 0.0
        %3737 = vmatpush1.msra.mxu0 0.0
        %3738 = vmatprep.subr.mxu0 0.0
        %3739 = vmatpush1.msra.mxu0 0.0
        %3740 = vmatprep.subr.mxu0 0.0
        %3741 = vmatpush1.msra.mxu0 0.0
        %3742 = vmatprep.subr.mxu0 0.0
        %3743 = vmatpush1.msra.mxu0 0.0
        %3744 = vmatprep.subr.mxu0 0.0
        %3745 = vmatpush1.msra.mxu0 0.0
        %3746 = vmatprep.subr.mxu0 0.0
        %3747 = vmatpush1.msra.mxu0 0.0
        %3748 = vmatprep.subr.mxu0 0.0
        %3749 = vmatpush1.msra.mxu0 0.0
        %3750 = vmatprep.subr.mxu0 0.0
        %3751 = vmatpush1.msra.mxu0 0.0
        %3752 = vmatprep.mubr.f32.mxu0 0.0
        %3753 = vmatmul.mubr.f32.gmra.mrb[0].mxu0 %v462
        %v3754 = vpop.f32.mrb[0].mxu0
        %v3755 = vadd.f32 0.0, %v3754
        %v3756 = vpop.f32.mrb[0].mxu0
        %v3757 = vadd.f32 0.0, %v3756
        %3758 = vdwg.mxu0
        %3759 = vmatprep.subr.mxu0 %v233
        %3760 = vmatpush1.msra.mxu0 %v232
        %3761 = vmatprep.subr.mxu0 %v337
        %3762 = vmatpush1.msra.mxu0 %v336
        %3763 = vmatprep.subr.mxu0 %v721
        %3764 = vmatpush1.msra.mxu0 %v718
        %3765 = vmatprep.subr.mxu0 0.0
        %3766 = vmatpush1.msra.mxu0 0.0
        %3767 = vmatprep.subr.mxu0 0.0
        %3768 = vmatpush1.msra.mxu0 0.0
        %3769 = vmatprep.subr.mxu0 0.0
        %3770 = vmatpush1.msra.mxu0 0.0
        %3771 = vmatprep.subr.mxu0 0.0
        %3772 = vmatpush1.msra.mxu0 0.0
        %3773 = vmatprep.subr.mxu0 0.0
        %3774 = vmatpush1.msra.mxu0 0.0
        %3775 = vmatprep.subr.mxu0 0.0
        %3776 = vmatpush1.msra.mxu0 0.0
        %3777 = vmatprep.subr.mxu0 0.0
        %3778 = vmatpush1.msra.mxu0 0.0
        %3779 = vmatprep.subr.mxu0 0.0
        %3780 = vmatpush1.msra.mxu0 0.0
        %3781 = vmatprep.subr.mxu0 0.0
        %3782 = vmatpush1.msra.mxu0 0.0
        %3783 = vmatprep.subr.mxu0 0.0
        %3784 = vmatpush1.msra.mxu0 0.0
        %3785 = vmatprep.subr.mxu0 0.0
        %3786 = vmatpush1.msra.mxu0 0.0
        %3787 = vmatprep.subr.mxu0 0.0
        %3788 = vmatpush1.msra.mxu0 0.0
        %3789 = vmatprep.subr.mxu0 0.0
        %3790 = vmatpush1.msra.mxu0 0.0
        %3791 = vmatprep.subr.mxu0 0.0
        %3792 = vmatpush1.msra.mxu0 0.0
        %3793 = vmatprep.subr.mxu0 0.0
        %3794 = vmatpush1.msra.mxu0 0.0
        %3795 = vmatprep.subr.mxu0 0.0
        %3796 = vmatpush1.msra.mxu0 0.0
        %3797 = vmatprep.subr.mxu0 0.0
        %3798 = vmatpush1.msra.mxu0 0.0
        %3799 = vmatprep.subr.mxu0 0.0
        %3800 = vmatpush1.msra.mxu0 0.0
        %3801 = vmatprep.subr.mxu0 0.0
        %3802 = vmatpush1.msra.mxu0 0.0
        %3803 = vmatprep.subr.mxu0 0.0
        %3804 = vmatpush1.msra.mxu0 0.0
        %3805 = vmatprep.subr.mxu0 0.0
        %3806 = vmatpush1.msra.mxu0 0.0
        %3807 = vmatprep.subr.mxu0 0.0
        %3808 = vmatpush1.msra.mxu0 0.0
        %3809 = vmatprep.subr.mxu0 0.0
        %3810 = vmatpush1.msra.mxu0 0.0
        %3811 = vmatprep.subr.mxu0 0.0
        %3812 = vmatpush1.msra.mxu0 0.0
        %3813 = vmatprep.subr.mxu0 0.0
        %3814 = vmatpush1.msra.mxu0 0.0
        %3815 = vmatprep.subr.mxu0 0.0
        %3816 = vmatpush1.msra.mxu0 0.0
        %3817 = vmatprep.subr.mxu0 0.0
        %3818 = vmatpush1.msra.mxu0 0.0
        %3819 = vmatprep.subr.mxu0 0.0
        %3820 = vmatpush1.msra.mxu0 0.0
        %3821 = vmatprep.subr.mxu0 0.0
        %3822 = vmatpush1.msra.mxu0 0.0
        %3823 = vmatprep.mubr.f32.mxu0 0.0
        %3824 = vmatmul.mubr.f32.gmra.mrb[0].mxu0 %v462
        %v3825 = vpop.f32.mrb[0].mxu0
        %v3826 = vadd.f32 0.0, %v3825
        %v3827 = vpop.f32.mrb[0].mxu0
        %v3828 = vadd.f32 0.0, %v3827
        %3829 = vdwg.mxu0
        %3830 = vmatprep.subr.mxu0 %v235
        %3831 = vmatpush1.msra.mxu0 %v234
        %3832 = vmatprep.subr.mxu0 %v339
        %3833 = vmatpush1.msra.mxu0 %v338
        %3834 = vmatprep.subr.mxu0 %v727
        %3835 = vmatpush1.msra.mxu0 %v724
        %3836 = vmatprep.subr.mxu0 0.0
        %3837 = vmatpush1.msra.mxu0 0.0
        %3838 = vmatprep.subr.mxu0 0.0
        %3839 = vmatpush1.msra.mxu0 0.0
        %3840 = vmatprep.subr.mxu0 0.0
        %3841 = vmatpush1.msra.mxu0 0.0
        %3842 = vmatprep.subr.mxu0 0.0
        %3843 = vmatpush1.msra.mxu0 0.0
        %3844 = vmatprep.subr.mxu0 0.0
        %3845 = vmatpush1.msra.mxu0 0.0
        %3846 = vmatprep.subr.mxu0 0.0
        %3847 = vmatpush1.msra.mxu0 0.0
        %3848 = vmatprep.subr.mxu0 0.0
        %3849 = vmatpush1.msra.mxu0 0.0
        %3850 = vmatprep.subr.mxu0 0.0
        %3851 = vmatpush1.msra.mxu0 0.0
        %3852 = vmatprep.subr.mxu0 0.0
        %3853 = vmatpush1.msra.mxu0 0.0
        %3854 = vmatprep.subr.mxu0 0.0
        %3855 = vmatpush1.msra.mxu0 0.0
        %3856 = vmatprep.subr.mxu0 0.0
        %3857 = vmatpush1.msra.mxu0 0.0
        %3858 = vmatprep.subr.mxu0 0.0
        %3859 = vmatpush1.msra.mxu0 0.0
        %3860 = vmatprep.subr.mxu0 0.0
        %3861 = vmatpush1.msra.mxu0 0.0
        %3862 = vmatprep.subr.mxu0 0.0
        %3863 = vmatpush1.msra.mxu0 0.0
        %3864 = vmatprep.subr.mxu0 0.0
        %3865 = vmatpush1.msra.mxu0 0.0
        %3866 = vmatprep.subr.mxu0 0.0
        %3867 = vmatpush1.msra.mxu0 0.0
        %3868 = vmatprep.subr.mxu0 0.0
        %3869 = vmatpush1.msra.mxu0 0.0
        %3870 = vmatprep.subr.mxu0 0.0
        %3871 = vmatpush1.msra.mxu0 0.0
        %3872 = vmatprep.subr.mxu0 0.0
        %3873 = vmatpush1.msra.mxu0 0.0
        %3874 = vmatprep.subr.mxu0 0.0
        %3875 = vmatpush1.msra.mxu0 0.0
        %3876 = vmatprep.subr.mxu0 0.0
        %3877 = vmatpush1.msra.mxu0 0.0
        %3878 = vmatprep.subr.mxu0 0.0
        %3879 = vmatpush1.msra.mxu0 0.0
        %3880 = vmatprep.subr.mxu0 0.0
        %3881 = vmatpush1.msra.mxu0 0.0
        %3882 = vmatprep.subr.mxu0 0.0
        %3883 = vmatpush1.msra.mxu0 0.0
        %3884 = vmatprep.subr.mxu0 0.0
        %3885 = vmatpush1.msra.mxu0 0.0
        %3886 = vmatprep.subr.mxu0 0.0
        %3887 = vmatpush1.msra.mxu0 0.0
        %3888 = vmatprep.subr.mxu0 0.0
        %3889 = vmatpush1.msra.mxu0 0.0
        %3890 = vmatprep.subr.mxu0 0.0
        %3891 = vmatpush1.msra.mxu0 0.0
        %3892 = vmatprep.subr.mxu0 0.0
        %3893 = vmatpush1.msra.mxu0 0.0
        %3894 = vmatprep.mubr.f32.mxu0 0.0
        %3895 = vmatmul.mubr.f32.gmra.mrb[0].mxu0 %v462
        %v3896 = vpop.f32.mrb[0].mxu0
        %v3897 = vadd.f32 0.0, %v3896
        %v3898 = vpop.f32.mrb[0].mxu0
        %v3899 = vadd.f32 0.0, %v3898
        %3900 = vdwg.mxu0
        %3901 = vmatprep.subr.mxu0 %v237
        %3902 = vmatpush1.msra.mxu0 %v236
        %3903 = vmatprep.subr.mxu0 %v341
        %3904 = vmatpush1.msra.mxu0 %v340
        %3905 = vmatprep.subr.mxu0 %v733
        %3906 = vmatpush1.msra.mxu0 %v730
        %3907 = vmatprep.subr.mxu0 0.0
        %3908 = vmatpush1.msra.mxu0 0.0
        %3909 = vmatprep.subr.mxu0 0.0
        %3910 = vmatpush1.msra.mxu0 0.0
        %3911 = vmatprep.subr.mxu0 0.0
        %3912 = vmatpush1.msra.mxu0 0.0
        %3913 = vmatprep.subr.mxu0 0.0
        %3914 = vmatpush1.msra.mxu0 0.0
        %3915 = vmatprep.subr.mxu0 0.0
        %3916 = vmatpush1.msra.mxu0 0.0
        %3917 = vmatprep.subr.mxu0 0.0
        %3918 = vmatpush1.msra.mxu0 0.0
        %3919 = vmatprep.subr.mxu0 0.0
        %3920 = vmatpush1.msra.mxu0 0.0
        %3921 = vmatprep.subr.mxu0 0.0
        %3922 = vmatpush1.msra.mxu0 0.0
        %3923 = vmatprep.subr.mxu0 0.0
        %3924 = vmatpush1.msra.mxu0 0.0
        %3925 = vmatprep.subr.mxu0 0.0
        %3926 = vmatpush1.msra.mxu0 0.0
        %3927 = vmatprep.subr.mxu0 0.0
        %3928 = vmatpush1.msra.mxu0 0.0
        %3929 = vmatprep.subr.mxu0 0.0
        %3930 = vmatpush1.msra.mxu0 0.0
        %3931 = vmatprep.subr.mxu0 0.0
        %3932 = vmatpush1.msra.mxu0 0.0
        %3933 = vmatprep.subr.mxu0 0.0
        %3934 = vmatpush1.msra.mxu0 0.0
        %3935 = vmatprep.subr.mxu0 0.0
        %3936 = vmatpush1.msra.mxu0 0.0
        %3937 = vmatprep.subr.mxu0 0.0
        %3938 = vmatpush1.msra.mxu0 0.0
        %3939 = vmatprep.subr.mxu0 0.0
        %3940 = vmatpush1.msra.mxu0 0.0
        %3941 = vmatprep.subr.mxu0 0.0
        %3942 = vmatpush1.msra.mxu0 0.0
        %3943 = vmatprep.subr.mxu0 0.0
        %3944 = vmatpush1.msra.mxu0 0.0
        %3945 = vmatprep.subr.mxu0 0.0
        %3946 = vmatpush1.msra.mxu0 0.0
        %3947 = vmatprep.subr.mxu0 0.0
        %3948 = vmatpush1.msra.mxu0 0.0
        %3949 = vmatprep.subr.mxu0 0.0
        %3950 = vmatpush1.msra.mxu0 0.0
        %3951 = vmatprep.subr.mxu0 0.0
        %3952 = vmatpush1.msra.mxu0 0.0
        %3953 = vmatprep.subr.mxu0 0.0
        %3954 = vmatpush1.msra.mxu0 0.0
        %3955 = vmatprep.subr.mxu0 0.0
        %3956 = vmatpush1.msra.mxu0 0.0
        %3957 = vmatprep.subr.mxu0 0.0
        %3958 = vmatpush1.msra.mxu0 0.0
        %3959 = vmatprep.subr.mxu0 0.0
        %3960 = vmatpush1.msra.mxu0 0.0
        %3961 = vmatprep.subr.mxu0 0.0
        %3962 = vmatpush1.msra.mxu0 0.0
        %3963 = vmatprep.subr.mxu0 0.0
        %3964 = vmatpush1.msra.mxu0 0.0
        %3965 = vmatprep.mubr.f32.mxu0 0.0
        %3966 = vmatmul.mubr.f32.gmra.mrb[0].mxu0 %v462
        %v3967 = vpop.f32.mrb[0].mxu0
        %v3968 = vadd.f32 0.0, %v3967
        %v3969 = vpop.f32.mrb[0].mxu0
        %v3970 = vadd.f32 0.0, %v3969
        %3971 = vdwg.mxu0
        %3972 = vmatprep.subr.mxu0 %v239
        %3973 = vmatpush1.msra.mxu0 %v238
        %3974 = vmatprep.subr.mxu0 %v343
        %3975 = vmatpush1.msra.mxu0 %v342
        %3976 = vmatprep.subr.mxu0 %v739
        %3977 = vmatpush1.msra.mxu0 %v736
        %3978 = vmatprep.subr.mxu0 0.0
        %3979 = vmatpush1.msra.mxu0 0.0
        %3980 = vmatprep.subr.mxu0 0.0
        %3981 = vmatpush1.msra.mxu0 0.0
        %3982 = vmatprep.subr.mxu0 0.0
        %3983 = vmatpush1.msra.mxu0 0.0
        %3984 = vmatprep.subr.mxu0 0.0
        %3985 = vmatpush1.msra.mxu0 0.0
        %3986 = vmatprep.subr.mxu0 0.0
        %3987 = vmatpush1.msra.mxu0 0.0
        %3988 = vmatprep.subr.mxu0 0.0
        %3989 = vmatpush1.msra.mxu0 0.0
        %3990 = vmatprep.subr.mxu0 0.0
        %3991 = vmatpush1.msra.mxu0 0.0
        %3992 = vmatprep.subr.mxu0 0.0
        %3993 = vmatpush1.msra.mxu0 0.0
        %3994 = vmatprep.subr.mxu0 0.0
        %3995 = vmatpush1.msra.mxu0 0.0
        %3996 = vmatprep.subr.mxu0 0.0
        %3997 = vmatpush1.msra.mxu0 0.0
        %3998 = vmatprep.subr.mxu0 0.0
        %3999 = vmatpush1.msra.mxu0 0.0
        %4000 = vmatprep.subr.mxu0 0.0
        %4001 = vmatpush1.msra.mxu0 0.0
        %4002 = vmatprep.subr.mxu0 0.0
        %4003 = vmatpush1.msra.mxu0 0.0
        %4004 = vmatprep.subr.mxu0 0.0
        %4005 = vmatpush1.msra.mxu0 0.0
        %4006 = vmatprep.subr.mxu0 0.0
        %4007 = vmatpush1.msra.mxu0 0.0
        %4008 = vmatprep.subr.mxu0 0.0
        %4009 = vmatpush1.msra.mxu0 0.0
        %4010 = vmatprep.subr.mxu0 0.0
        %4011 = vmatpush1.msra.mxu0 0.0
        %4012 = vmatprep.subr.mxu0 0.0
        %4013 = vmatpush1.msra.mxu0 0.0
        %4014 = vmatprep.subr.mxu0 0.0
        %4015 = vmatpush1.msra.mxu0 0.0
        %4016 = vmatprep.subr.mxu0 0.0
        %4017 = vmatpush1.msra.mxu0 0.0
        %4018 = vmatprep.subr.mxu0 0.0
        %4019 = vmatpush1.msra.mxu0 0.0
        %4020 = vmatprep.subr.mxu0 0.0
        %4021 = vmatpush1.msra.mxu0 0.0
        %4022 = vmatprep.subr.mxu0 0.0
        %4023 = vmatpush1.msra.mxu0 0.0
        %4024 = vmatprep.subr.mxu0 0.0
        %4025 = vmatpush1.msra.mxu0 0.0
        %4026 = vmatprep.subr.mxu0 0.0
        %4027 = vmatpush1.msra.mxu0 0.0
        %4028 = vmatprep.subr.mxu0 0.0
        %4029 = vmatpush1.msra.mxu0 0.0
        %4030 = vmatprep.subr.mxu0 0.0
        %4031 = vmatpush1.msra.mxu0 0.0
        %4032 = vmatprep.subr.mxu0 0.0
        %4033 = vmatpush1.msra.mxu0 0.0
        %4034 = vmatprep.subr.mxu0 0.0
        %4035 = vmatpush1.msra.mxu0 0.0
        %4036 = vmatprep.mubr.f32.mxu0 0.0
        %4037 = vmatmul.mubr.f32.gmra.mrb[0].mxu0 %v462
        %v4038 = vpop.f32.mrb[0].mxu0
        %v4039 = vadd.f32 0.0, %v4038
        %v4040 = vpop.f32.mrb[0].mxu0
        %v4041 = vadd.f32 0.0, %v4040
        %4042 = vdwg.mxu0
        %4043 = vmatprep.subr.mxu0 %v241
        %4044 = vmatpush1.msra.mxu0 %v240
        %4045 = vmatprep.subr.mxu0 %v345
        %4046 = vmatpush1.msra.mxu0 %v344
        %4047 = vmatprep.subr.mxu0 %v745
        %4048 = vmatpush1.msra.mxu0 %v742
        %4049 = vmatprep.subr.mxu0 0.0
        %4050 = vmatpush1.msra.mxu0 0.0
        %4051 = vmatprep.subr.mxu0 0.0
        %4052 = vmatpush1.msra.mxu0 0.0
        %4053 = vmatprep.subr.mxu0 0.0
        %4054 = vmatpush1.msra.mxu0 0.0
        %4055 = vmatprep.subr.mxu0 0.0
        %4056 = vmatpush1.msra.mxu0 0.0
        %4057 = vmatprep.subr.mxu0 0.0
        %4058 = vmatpush1.msra.mxu0 0.0
        %4059 = vmatprep.subr.mxu0 0.0
        %4060 = vmatpush1.msra.mxu0 0.0
        %4061 = vmatprep.subr.mxu0 0.0
        %4062 = vmatpush1.msra.mxu0 0.0
        %4063 = vmatprep.subr.mxu0 0.0
        %4064 = vmatpush1.msra.mxu0 0.0
        %4065 = vmatprep.subr.mxu0 0.0
        %4066 = vmatpush1.msra.mxu0 0.0
        %4067 = vmatprep.subr.mxu0 0.0
        %4068 = vmatpush1.msra.mxu0 0.0
        %4069 = vmatprep.subr.mxu0 0.0
        %4070 = vmatpush1.msra.mxu0 0.0
        %4071 = vmatprep.subr.mxu0 0.0
        %4072 = vmatpush1.msra.mxu0 0.0
        %4073 = vmatprep.subr.mxu0 0.0
        %4074 = vmatpush1.msra.mxu0 0.0
        %4075 = vmatprep.subr.mxu0 0.0
        %4076 = vmatpush1.msra.mxu0 0.0
        %4077 = vmatprep.subr.mxu0 0.0
        %4078 = vmatpush1.msra.mxu0 0.0
        %4079 = vmatprep.subr.mxu0 0.0
        %4080 = vmatpush1.msra.mxu0 0.0
        %4081 = vmatprep.subr.mxu0 0.0
        %4082 = vmatpush1.msra.mxu0 0.0
        %4083 = vmatprep.subr.mxu0 0.0
        %4084 = vmatpush1.msra.mxu0 0.0
        %4085 = vmatprep.subr.mxu0 0.0
        %4086 = vmatpush1.msra.mxu0 0.0
        %4087 = vmatprep.subr.mxu0 0.0
        %4088 = vmatpush1.msra.mxu0 0.0
        %4089 = vmatprep.subr.mxu0 0.0
        %4090 = vmatpush1.msra.mxu0 0.0
        %4091 = vmatprep.subr.mxu0 0.0
        %4092 = vmatpush1.msra.mxu0 0.0
        %4093 = vmatprep.subr.mxu0 0.0
        %4094 = vmatpush1.msra.mxu0 0.0
        %4095 = vmatprep.subr.mxu0 0.0
        %4096 = vmatpush1.msra.mxu0 0.0
        %4097 = vmatprep.subr.mxu0 0.0
        %4098 = vmatpush1.msra.mxu0 0.0
        %4099 = vmatprep.subr.mxu0 0.0
        %4100 = vmatpush1.msra.mxu0 0.0
        %4101 = vmatprep.subr.mxu0 0.0
        %4102 = vmatpush1.msra.mxu0 0.0
        %4103 = vmatprep.subr.mxu0 0.0
        %4104 = vmatpush1.msra.mxu0 0.0
        %4105 = vmatprep.subr.mxu0 0.0
        %4106 = vmatpush1.msra.mxu0 0.0
        %4107 = vmatprep.mubr.f32.mxu0 0.0
        %4108 = vmatmul.mubr.f32.gmra.mrb[0].mxu0 %v462
        %v4109 = vpop.f32.mrb[0].mxu0
        %v4110 = vadd.f32 0.0, %v4109
        %v4111 = vpop.f32.mrb[0].mxu0
        %v4112 = vadd.f32 0.0, %v4111
        %4113 = vdwg.mxu0
        %4114 = vmatprep.subr.mxu0 %v243
        %4115 = vmatpush1.msra.mxu0 %v242
        %4116 = vmatprep.subr.mxu0 %v347
        %4117 = vmatpush1.msra.mxu0 %v346
        %4118 = vmatprep.subr.mxu0 %v751
        %4119 = vmatpush1.msra.mxu0 %v748
        %4120 = vmatprep.subr.mxu0 0.0
        %4121 = vmatpush1.msra.mxu0 0.0
        %4122 = vmatprep.subr.mxu0 0.0
        %4123 = vmatpush1.msra.mxu0 0.0
        %4124 = vmatprep.subr.mxu0 0.0
        %4125 = vmatpush1.msra.mxu0 0.0
        %4126 = vmatprep.subr.mxu0 0.0
        %4127 = vmatpush1.msra.mxu0 0.0
        %4128 = vmatprep.subr.mxu0 0.0
        %4129 = vmatpush1.msra.mxu0 0.0
        %4130 = vmatprep.subr.mxu0 0.0
        %4131 = vmatpush1.msra.mxu0 0.0
        %4132 = vmatprep.subr.mxu0 0.0
        %4133 = vmatpush1.msra.mxu0 0.0
        %4134 = vmatprep.subr.mxu0 0.0
        %4135 = vmatpush1.msra.mxu0 0.0
        %4136 = vmatprep.subr.mxu0 0.0
        %4137 = vmatpush1.msra.mxu0 0.0
        %4138 = vmatprep.subr.mxu0 0.0
        %4139 = vmatpush1.msra.mxu0 0.0
        %4140 = vmatprep.subr.mxu0 0.0
        %4141 = vmatpush1.msra.mxu0 0.0
        %4142 = vmatprep.subr.mxu0 0.0
        %4143 = vmatpush1.msra.mxu0 0.0
        %4144 = vmatprep.subr.mxu0 0.0
        %4145 = vmatpush1.msra.mxu0 0.0
        %4146 = vmatprep.subr.mxu0 0.0
        %4147 = vmatpush1.msra.mxu0 0.0
        %4148 = vmatprep.subr.mxu0 0.0
        %4149 = vmatpush1.msra.mxu0 0.0
        %4150 = vmatprep.subr.mxu0 0.0
        %4151 = vmatpush1.msra.mxu0 0.0
        %4152 = vmatprep.subr.mxu0 0.0
        %4153 = vmatpush1.msra.mxu0 0.0
        %4154 = vmatprep.subr.mxu0 0.0
        %4155 = vmatpush1.msra.mxu0 0.0
        %4156 = vmatprep.subr.mxu0 0.0
        %4157 = vmatpush1.msra.mxu0 0.0
        %4158 = vmatprep.subr.mxu0 0.0
        %4159 = vmatpush1.msra.mxu0 0.0
        %4160 = vmatprep.subr.mxu0 0.0
        %4161 = vmatpush1.msra.mxu0 0.0
        %4162 = vmatprep.subr.mxu0 0.0
        %4163 = vmatpush1.msra.mxu0 0.0
        %4164 = vmatprep.subr.mxu0 0.0
        %4165 = vmatpush1.msra.mxu0 0.0
        %4166 = vmatprep.subr.mxu0 0.0
        %4167 = vmatpush1.msra.mxu0 0.0
        %4168 = vmatprep.subr.mxu0 0.0
        %4169 = vmatpush1.msra.mxu0 0.0
        %4170 = vmatprep.subr.mxu0 0.0
        %4171 = vmatpush1.msra.mxu0 0.0
        %4172 = vmatprep.subr.mxu0 0.0
        %4173 = vmatpush1.msra.mxu0 0.0
        %4174 = vmatprep.subr.mxu0 0.0
        %4175 = vmatpush1.msra.mxu0 0.0
        %4176 = vmatprep.subr.mxu0 0.0
        %4177 = vmatpush1.msra.mxu0 0.0
        %4178 = vmatprep.mubr.f32.mxu0 0.0
        %4179 = vmatmul.mubr.f32.gmra.mrb[0].mxu0 %v462
        %v4180 = vpop.f32.mrb[0].mxu0
        %v4181 = vadd.f32 0.0, %v4180
        %v4182 = vpop.f32.mrb[0].mxu0
        %v4183 = vadd.f32 0.0, %v4182
        %4184 = vdwg.mxu0
        %4185 = vmatprep.subr.mxu0 %v245
        %4186 = vmatpush1.msra.mxu0 %v244
        %4187 = vmatprep.subr.mxu0 %v349
        %4188 = vmatpush1.msra.mxu0 %v348
        %4189 = vmatprep.subr.mxu0 %v757
        %4190 = vmatpush1.msra.mxu0 %v754
        %4191 = vmatprep.subr.mxu0 0.0
        %4192 = vmatpush1.msra.mxu0 0.0
        %4193 = vmatprep.subr.mxu0 0.0
        %4194 = vmatpush1.msra.mxu0 0.0
        %4195 = vmatprep.subr.mxu0 0.0
        %4196 = vmatpush1.msra.mxu0 0.0
        %4197 = vmatprep.subr.mxu0 0.0
        %4198 = vmatpush1.msra.mxu0 0.0
        %4199 = vmatprep.subr.mxu0 0.0
        %4200 = vmatpush1.msra.mxu0 0.0
        %4201 = vmatprep.subr.mxu0 0.0
        %4202 = vmatpush1.msra.mxu0 0.0
        %4203 = vmatprep.subr.mxu0 0.0
        %4204 = vmatpush1.msra.mxu0 0.0
        %4205 = vmatprep.subr.mxu0 0.0
        %4206 = vmatpush1.msra.mxu0 0.0
        %4207 = vmatprep.subr.mxu0 0.0
        %4208 = vmatpush1.msra.mxu0 0.0
        %4209 = vmatprep.subr.mxu0 0.0
        %4210 = vmatpush1.msra.mxu0 0.0
        %4211 = vmatprep.subr.mxu0 0.0
        %4212 = vmatpush1.msra.mxu0 0.0
        %4213 = vmatprep.subr.mxu0 0.0
        %4214 = vmatpush1.msra.mxu0 0.0
        %4215 = vmatprep.subr.mxu0 0.0
        %4216 = vmatpush1.msra.mxu0 0.0
        %4217 = vmatprep.subr.mxu0 0.0
        %4218 = vmatpush1.msra.mxu0 0.0
        %4219 = vmatprep.subr.mxu0 0.0
        %4220 = vmatpush1.msra.mxu0 0.0
        %4221 = vmatprep.subr.mxu0 0.0
        %4222 = vmatpush1.msra.mxu0 0.0
        %4223 = vmatprep.subr.mxu0 0.0
        %4224 = vmatpush1.msra.mxu0 0.0
        %4225 = vmatprep.subr.mxu0 0.0
        %4226 = vmatpush1.msra.mxu0 0.0
        %4227 = vmatprep.subr.mxu0 0.0
        %4228 = vmatpush1.msra.mxu0 0.0
        %4229 = vmatprep.subr.mxu0 0.0
        %4230 = vmatpush1.msra.mxu0 0.0
        %4231 = vmatprep.subr.mxu0 0.0
        %4232 = vmatpush1.msra.mxu0 0.0
        %4233 = vmatprep.subr.mxu0 0.0
        %4234 = vmatpush1.msra.mxu0 0.0
        %4235 = vmatprep.subr.mxu0 0.0
        %4236 = vmatpush1.msra.mxu0 0.0
        %4237 = vmatprep.subr.mxu0 0.0
        %4238 = vmatpush1.msra.mxu0 0.0
        %4239 = vmatprep.subr.mxu0 0.0
        %4240 = vmatpush1.msra.mxu0 0.0
        %4241 = vmatprep.subr.mxu0 0.0
        %4242 = vmatpush1.msra.mxu0 0.0
        %4243 = vmatprep.subr.mxu0 0.0
        %4244 = vmatpush1.msra.mxu0 0.0
        %4245 = vmatprep.subr.mxu0 0.0
        %4246 = vmatpush1.msra.mxu0 0.0
        %4247 = vmatprep.subr.mxu0 0.0
        %4248 = vmatpush1.msra.mxu0 0.0
        %4249 = vmatprep.mubr.f32.mxu0 0.0
        %4250 = vmatmul.mubr.f32.gmra.mrb[0].mxu0 %v462
        %v4251 = vpop.f32.mrb[0].mxu0
        %v4252 = vadd.f32 0.0, %v4251
        %v4253 = vpop.f32.mrb[0].mxu0
        %v4254 = vadd.f32 0.0, %v4253
        %4255 = vdwg.mxu0
        %4256 = vmatprep.subr.mxu0 %v247
        %4257 = vmatpush1.msra.mxu0 %v246
        %4258 = vmatprep.subr.mxu0 %v351
        %4259 = vmatpush1.msra.mxu0 %v350
        %4260 = vmatprep.subr.mxu0 %v763
        %4261 = vmatpush1.msra.mxu0 %v760
        %4262 = vmatprep.subr.mxu0 0.0
        %4263 = vmatpush1.msra.mxu0 0.0
        %4264 = vmatprep.subr.mxu0 0.0
        %4265 = vmatpush1.msra.mxu0 0.0
        %4266 = vmatprep.subr.mxu0 0.0
        %4267 = vmatpush1.msra.mxu0 0.0
        %4268 = vmatprep.subr.mxu0 0.0
        %4269 = vmatpush1.msra.mxu0 0.0
        %4270 = vmatprep.subr.mxu0 0.0
        %4271 = vmatpush1.msra.mxu0 0.0
        %4272 = vmatprep.subr.mxu0 0.0
        %4273 = vmatpush1.msra.mxu0 0.0
        %4274 = vmatprep.subr.mxu0 0.0
        %4275 = vmatpush1.msra.mxu0 0.0
        %4276 = vmatprep.subr.mxu0 0.0
        %4277 = vmatpush1.msra.mxu0 0.0
        %4278 = vmatprep.subr.mxu0 0.0
        %4279 = vmatpush1.msra.mxu0 0.0
        %4280 = vmatprep.subr.mxu0 0.0
        %4281 = vmatpush1.msra.mxu0 0.0
        %4282 = vmatprep.subr.mxu0 0.0
        %4283 = vmatpush1.msra.mxu0 0.0
        %4284 = vmatprep.subr.mxu0 0.0
        %4285 = vmatpush1.msra.mxu0 0.0
        %4286 = vmatprep.subr.mxu0 0.0
        %4287 = vmatpush1.msra.mxu0 0.0
        %4288 = vmatprep.subr.mxu0 0.0
        %4289 = vmatpush1.msra.mxu0 0.0
        %4290 = vmatprep.subr.mxu0 0.0
        %4291 = vmatpush1.msra.mxu0 0.0
        %4292 = vmatprep.subr.mxu0 0.0
        %4293 = vmatpush1.msra.mxu0 0.0
        %4294 = vmatprep.subr.mxu0 0.0
        %4295 = vmatpush1.msra.mxu0 0.0
        %4296 = vmatprep.subr.mxu0 0.0
        %4297 = vmatpush1.msra.mxu0 0.0
        %4298 = vmatprep.subr.mxu0 0.0
        %4299 = vmatpush1.msra.mxu0 0.0
        %4300 = vmatprep.subr.mxu0 0.0
        %4301 = vmatpush1.msra.mxu0 0.0
        %4302 = vmatprep.subr.mxu0 0.0
        %4303 = vmatpush1.msra.mxu0 0.0
        %4304 = vmatprep.subr.mxu0 0.0
        %4305 = vmatpush1.msra.mxu0 0.0
        %4306 = vmatprep.subr.mxu0 0.0
        %4307 = vmatpush1.msra.mxu0 0.0
        %4308 = vmatprep.subr.mxu0 0.0
        %4309 = vmatpush1.msra.mxu0 0.0
        %4310 = vmatprep.subr.mxu0 0.0
        %4311 = vmatpush1.msra.mxu0 0.0
        %4312 = vmatprep.subr.mxu0 0.0
        %4313 = vmatpush1.msra.mxu0 0.0
        %4314 = vmatprep.subr.mxu0 0.0
        %4315 = vmatpush1.msra.mxu0 0.0
        %4316 = vmatprep.subr.mxu0 0.0
        %4317 = vmatpush1.msra.mxu0 0.0
        %4318 = vmatprep.subr.mxu0 0.0
        %4319 = vmatpush1.msra.mxu0 0.0
        %4320 = vmatprep.mubr.f32.mxu0 0.0
        %4321 = vmatmul.mubr.f32.gmra.mrb[0].mxu0 %v462
        %v4322 = vpop.f32.mrb[0].mxu0
        %v4323 = vadd.f32 0.0, %v4322
        %v4324 = vpop.f32.mrb[0].mxu0
        %v4325 = vadd.f32 0.0, %v4324
        %4326 = vdwg.mxu0
        %4327 = vmatprep.subr.mxu0 %v249
        %4328 = vmatpush1.msra.mxu0 %v248
        %4329 = vmatprep.subr.mxu0 %v353
        %4330 = vmatpush1.msra.mxu0 %v352
        %4331 = vmatprep.subr.mxu0 %v769
        %4332 = vmatpush1.msra.mxu0 %v766
        %4333 = vmatprep.subr.mxu0 0.0
        %4334 = vmatpush1.msra.mxu0 0.0
        %4335 = vmatprep.subr.mxu0 0.0
        %4336 = vmatpush1.msra.mxu0 0.0
        %4337 = vmatprep.subr.mxu0 0.0
        %4338 = vmatpush1.msra.mxu0 0.0
        %4339 = vmatprep.subr.mxu0 0.0
        %4340 = vmatpush1.msra.mxu0 0.0
        %4341 = vmatprep.subr.mxu0 0.0
        %4342 = vmatpush1.msra.mxu0 0.0
        %4343 = vmatprep.subr.mxu0 0.0
        %4344 = vmatpush1.msra.mxu0 0.0
        %4345 = vmatprep.subr.mxu0 0.0
        %4346 = vmatpush1.msra.mxu0 0.0
        %4347 = vmatprep.subr.mxu0 0.0
        %4348 = vmatpush1.msra.mxu0 0.0
        %4349 = vmatprep.subr.mxu0 0.0
        %4350 = vmatpush1.msra.mxu0 0.0
        %4351 = vmatprep.subr.mxu0 0.0
        %4352 = vmatpush1.msra.mxu0 0.0
        %4353 = vmatprep.subr.mxu0 0.0
        %4354 = vmatpush1.msra.mxu0 0.0
        %4355 = vmatprep.subr.mxu0 0.0
        %4356 = vmatpush1.msra.mxu0 0.0
        %4357 = vmatprep.subr.mxu0 0.0
        %4358 = vmatpush1.msra.mxu0 0.0
        %4359 = vmatprep.subr.mxu0 0.0
        %4360 = vmatpush1.msra.mxu0 0.0
        %4361 = vmatprep.subr.mxu0 0.0
        %4362 = vmatpush1.msra.mxu0 0.0
        %4363 = vmatprep.subr.mxu0 0.0
        %4364 = vmatpush1.msra.mxu0 0.0
        %4365 = vmatprep.subr.mxu0 0.0
        %4366 = vmatpush1.msra.mxu0 0.0
        %4367 = vmatprep.subr.mxu0 0.0
        %4368 = vmatpush1.msra.mxu0 0.0
        %4369 = vmatprep.subr.mxu0 0.0
        %4370 = vmatpush1.msra.mxu0 0.0
        %4371 = vmatprep.subr.mxu0 0.0
        %4372 = vmatpush1.msra.mxu0 0.0
        %4373 = vmatprep.subr.mxu0 0.0
        %4374 = vmatpush1.msra.mxu0 0.0
        %4375 = vmatprep.subr.mxu0 0.0
        %4376 = vmatpush1.msra.mxu0 0.0
        %4377 = vmatprep.subr.mxu0 0.0
        %4378 = vmatpush1.msra.mxu0 0.0
        %4379 = vmatprep.subr.mxu0 0.0
        %4380 = vmatpush1.msra.mxu0 0.0
        %4381 = vmatprep.subr.mxu0 0.0
        %4382 = vmatpush1.msra.mxu0 0.0
        %4383 = vmatprep.subr.mxu0 0.0
        %4384 = vmatpush1.msra.mxu0 0.0
        %4385 = vmatprep.subr.mxu0 0.0
        %4386 = vmatpush1.msra.mxu0 0.0
        %4387 = vmatprep.subr.mxu0 0.0
        %4388 = vmatpush1.msra.mxu0 0.0
        %4389 = vmatprep.subr.mxu0 0.0
        %4390 = vmatpush1.msra.mxu0 0.0
        %4391 = vmatprep.mubr.f32.mxu0 0.0
        %4392 = vmatmul.mubr.f32.gmra.mrb[0].mxu0 %v462
        %v4393 = vpop.f32.mrb[0].mxu0
        %v4394 = vadd.f32 0.0, %v4393
        %v4395 = vpop.f32.mrb[0].mxu0
        %v4396 = vadd.f32 0.0, %v4395
        %4397 = vdwg.mxu0
        %4398 = vmatprep.subr.mxu0 %v251
        %4399 = vmatpush1.msra.mxu0 %v250
        %4400 = vmatprep.subr.mxu0 %v355
        %4401 = vmatpush1.msra.mxu0 %v354
        %4402 = vmatprep.subr.mxu0 %v775
        %4403 = vmatpush1.msra.mxu0 %v772
        %4404 = vmatprep.subr.mxu0 0.0
        %4405 = vmatpush1.msra.mxu0 0.0
        %4406 = vmatprep.subr.mxu0 0.0
        %4407 = vmatpush1.msra.mxu0 0.0
        %4408 = vmatprep.subr.mxu0 0.0
        %4409 = vmatpush1.msra.mxu0 0.0
        %4410 = vmatprep.subr.mxu0 0.0
        %4411 = vmatpush1.msra.mxu0 0.0
        %4412 = vmatprep.subr.mxu0 0.0
        %4413 = vmatpush1.msra.mxu0 0.0
        %4414 = vmatprep.subr.mxu0 0.0
        %4415 = vmatpush1.msra.mxu0 0.0
        %4416 = vmatprep.subr.mxu0 0.0
        %4417 = vmatpush1.msra.mxu0 0.0
        %4418 = vmatprep.subr.mxu0 0.0
        %4419 = vmatpush1.msra.mxu0 0.0
        %4420 = vmatprep.subr.mxu0 0.0
        %4421 = vmatpush1.msra.mxu0 0.0
        %4422 = vmatprep.subr.mxu0 0.0
        %4423 = vmatpush1.msra.mxu0 0.0
        %4424 = vmatprep.subr.mxu0 0.0
        %4425 = vmatpush1.msra.mxu0 0.0
        %4426 = vmatprep.subr.mxu0 0.0
        %4427 = vmatpush1.msra.mxu0 0.0
        %4428 = vmatprep.subr.mxu0 0.0
        %4429 = vmatpush1.msra.mxu0 0.0
        %4430 = vmatprep.subr.mxu0 0.0
        %4431 = vmatpush1.msra.mxu0 0.0
        %4432 = vmatprep.subr.mxu0 0.0
        %4433 = vmatpush1.msra.mxu0 0.0
        %4434 = vmatprep.subr.mxu0 0.0
        %4435 = vmatpush1.msra.mxu0 0.0
        %4436 = vmatprep.subr.mxu0 0.0
        %4437 = vmatpush1.msra.mxu0 0.0
        %4438 = vmatprep.subr.mxu0 0.0
        %4439 = vmatpush1.msra.mxu0 0.0
        %4440 = vmatprep.subr.mxu0 0.0
        %4441 = vmatpush1.msra.mxu0 0.0
        %4442 = vmatprep.subr.mxu0 0.0
        %4443 = vmatpush1.msra.mxu0 0.0
        %4444 = vmatprep.subr.mxu0 0.0
        %4445 = vmatpush1.msra.mxu0 0.0
        %4446 = vmatprep.subr.mxu0 0.0
        %4447 = vmatpush1.msra.mxu0 0.0
        %4448 = vmatprep.subr.mxu0 0.0
        %4449 = vmatpush1.msra.mxu0 0.0
        %4450 = vmatprep.subr.mxu0 0.0
        %4451 = vmatpush1.msra.mxu0 0.0
        %4452 = vmatprep.subr.mxu0 0.0
        %4453 = vmatpush1.msra.mxu0 0.0
        %4454 = vmatprep.subr.mxu0 0.0
        %4455 = vmatpush1.msra.mxu0 0.0
        %4456 = vmatprep.subr.mxu0 0.0
        %4457 = vmatpush1.msra.mxu0 0.0
        %4458 = vmatprep.subr.mxu0 0.0
        %4459 = vmatpush1.msra.mxu0 0.0
        %4460 = vmatprep.subr.mxu0 0.0
        %4461 = vmatpush1.msra.mxu0 0.0
        %4462 = vmatprep.mubr.f32.mxu0 0.0
        %4463 = vmatmul.mubr.f32.gmra.mrb[0].mxu0 %v462
        %v4464 = vpop.f32.mrb[0].mxu0
        %v4465 = vadd.f32 0.0, %v4464
        %v4466 = vpop.f32.mrb[0].mxu0
        %v4467 = vadd.f32 0.0, %v4466
        %4468 = vdwg.mxu0
        %v4573 = vcombine.low %v844, %v846
        %v4574 = vcombine.low %v915, %v917
        %v4575 = vcombine.low %v986, %v988
        %v4576 = vcombine.low %v1057, %v1059
        %v4577 = vcombine.low %v1128, %v1130
        %v4578 = vcombine.low %v1199, %v1201
        %v4579 = vcombine.low %v1270, %v1272
        %v4580 = vcombine.low %v1341, %v1343
        %v4581 = vcombine.low %v1412, %v1414
        %v4582 = vcombine.low %v1483, %v1485
        %v4583 = vcombine.low %v1554, %v1556
        %v4584 = vcombine.low %v1625, %v1627
        %v4585 = vcombine.low %v1696, %v1698
        %v4586 = vcombine.low %v1767, %v1769
        %v4587 = vcombine.low %v1838, %v1840
        %v4588 = vcombine.low %v1909, %v1911
        %v4589 = vcombine.low %v1980, %v1982
        %v4590 = vcombine.low %v2051, %v2053
        %v4591 = vcombine.low %v2122, %v2124
        %v4592 = vcombine.low %v2193, %v2195
        %v4593 = vcombine.low %v2264, %v2266
        %v4594 = vcombine.low %v2335, %v2337
        %v4595 = vcombine.low %v2406, %v2408
        %v4596 = vcombine.low %v2477, %v2479
        %v4597 = vcombine.low %v2548, %v2550
        %v4598 = vcombine.low %v2619, %v2621
        %v4599 = vcombine.low %v2690, %v2692
        %v4600 = vcombine.low %v2761, %v2763
        %v4601 = vcombine.low %v2832, %v2834
        %v4602 = vcombine.low %v2903, %v2905
        %v4603 = vcombine.low %v2974, %v2976
        %v4604 = vcombine.low %v3045, %v3047
        %v4605 = vcombine.low %v3116, %v3118
        %v4606 = vcombine.low %v3187, %v3189
        %v4607 = vcombine.low %v3258, %v3260
        %v4608 = vcombine.low %v3329, %v3331
        %v4609 = vcombine.low %v3400, %v3402
        %v4610 = vcombine.low %v3471, %v3473
        %v4611 = vcombine.low %v3542, %v3544
        %v4612 = vcombine.low %v3613, %v3615
        %v4613 = vcombine.low %v3684, %v3686
        %v4614 = vcombine.low %v3755, %v3757
        %v4615 = vcombine.low %v3826, %v3828
        %v4616 = vcombine.low %v3897, %v3899
        %v4617 = vcombine.low %v3968, %v3970
        %v4618 = vcombine.low %v4039, %v4041
        %v4619 = vcombine.low %v4110, %v4112
        %v4620 = vcombine.low %v4181, %v4183
        %v4621 = vcombine.low %v4252, %v4254
        %v4622 = vcombine.low %v4323, %v4325
        %v4623 = vcombine.low %v4394, %v4396
        %v4624 = vcombine.low %v4465, %v4467
        %4677 = vst [vmem:[%s136] sm:$0xff] %v4573
        %4678 = vst [vmem:[%s136 + $0x8] sm:$0xff] %v4574
        %4679 = vst [vmem:[%s136 + $0x10] sm:$0xff] %v4575
        %4680 = vst [vmem:[%s136 + $0x18] sm:$0xff] %v4576
        %4681 = vst [vmem:[%s136 + $0x20] sm:$0xff] %v4577
        %4682 = vst [vmem:[%s136 + $0x28] sm:$0xff] %v4578
        %4683 = vst [vmem:[%s136 + $0x30] sm:$0xff] %v4579
        %4684 = vst [vmem:[%s136 + $0x38] sm:$0xff] %v4580
        %4685 = vst [vmem:[%s136 + $0x40] sm:$0xff] %v4581
        %4686 = vst [vmem:[%s136 + $0x48] sm:$0xff] %v4582
        %4687 = vst [vmem:[%s136 + $0x50] sm:$0xff] %v4583
        %4688 = vst [vmem:[%s136 + $0x58] sm:$0xff] %v4584
        %4689 = vst [vmem:[%s136 + $0x60] sm:$0xff] %v4585
        %4690 = vst [vmem:[%s136 + $0x68] sm:$0xff] %v4586
        %4691 = vst [vmem:[%s136 + $0x70] sm:$0xff] %v4587
        %4692 = vst [vmem:[%s136 + $0x78] sm:$0xff] %v4588
        %4693 = vst [vmem:[%s136 + $0x80] sm:$0xff] %v4589
        %4694 = vst [vmem:[%s136 + $0x88] sm:$0xff] %v4590
        %4695 = vst [vmem:[%s136 + $0x90] sm:$0xff] %v4591
        %4696 = vst [vmem:[%s136 + $0x98] sm:$0xff] %v4592
        %4697 = vst [vmem:[%s136 + $0xa0] sm:$0xff] %v4593
        %4698 = vst [vmem:[%s136 + $0xa8] sm:$0xff] %v4594
        %4699 = vst [vmem:[%s136 + $0xb0] sm:$0xff] %v4595
        %4700 = vst [vmem:[%s136 + $0xb8] sm:$0xff] %v4596
        %4701 = vst [vmem:[%s136 + $0xc0] sm:$0xff] %v4597
        %4702 = vst [vmem:[%s136 + $0xc8] sm:$0xff] %v4598
        %4703 = vst [vmem:[%s136 + $0xd0] sm:$0xff] %v4599
        %4704 = vst [vmem:[%s136 + $0xd8] sm:$0xff] %v4600
        %4705 = vst [vmem:[%s136 + $0xe0] sm:$0xff] %v4601
        %4706 = vst [vmem:[%s136 + $0xe8] sm:$0xff] %v4602
        %4707 = vst [vmem:[%s136 + $0xf0] sm:$0xff] %v4603
        %4708 = vst [vmem:[%s136 + $0xf8] sm:$0xff] %v4604
        %4709 = vst [vmem:[%s136 + $0x100] sm:$0xff] %v4605
        %4710 = vst [vmem:[%s136 + $0x108] sm:$0xff] %v4606
        %4711 = vst [vmem:[%s136 + $0x110] sm:$0xff] %v4607
        %4712 = vst [vmem:[%s136 + $0x118] sm:$0xff] %v4608
        %4713 = vst [vmem:[%s136 + $0x120] sm:$0xff] %v4609
        %4714 = vst [vmem:[%s136 + $0x128] sm:$0xff] %v4610
        %4715 = vst [vmem:[%s136 + $0x130] sm:$0xff] %v4611
        %4716 = vst [vmem:[%s136 + $0x138] sm:$0xff] %v4612
        %4717 = vst [vmem:[%s136 + $0x140] sm:$0xff] %v4613
        %4718 = vst [vmem:[%s136 + $0x148] sm:$0xff] %v4614
        %4719 = vst [vmem:[%s136 + $0x150] sm:$0xff] %v4615
        %4720 = vst [vmem:[%s136 + $0x158] sm:$0xff] %v4616
        %4721 = vst [vmem:[%s136 + $0x160] sm:$0xff] %v4617
        %4722 = vst [vmem:[%s136 + $0x168] sm:$0xff] %v4618
        %4723 = vst [vmem:[%s136 + $0x170] sm:$0xff] %v4619
        %4724 = vst [vmem:[%s136 + $0x178] sm:$0xff] %v4620
        %4725 = vst [vmem:[%s136 + $0x180] sm:$0xff] %v4621
        %4726 = vst [vmem:[%s136 + $0x188] sm:$0xff] %v4622
        %4727 = vst [vmem:[%s136 + $0x190] sm:$0xff] %v4623
        %4728 = vst [vmem:[%s136 + $0x198] sm:$0xff] %v4624
        %s4729 = sand.u32 %s71, 1
        %s4730 = scalar_lea.sflag [#allocation3], %s4729
        %s4731 = sand.u32 %s71, 1
        %s4732 = smul.addr %s4731, 416
        %s4733 = scalar_lea.vmem [#allocation2], %s4732
        // Predicated region
        $region29: #{linear_pallas.1} parent=27 // pred_check
          %p4734 = pneg %p81
        $region30: #{linear_pallas.1} parent=27 // pred_check_branch
          %4736 = sbr.rel (%p4734) target = $region32
        $region31: #{linear_pallas.1} parent=27 // pred_region
          %s4737 = smul.u32 104, %s16
          %s4738 = ssub.s32 413, %s4737
          %p4739 = scmp.lt.s32.totalorder %s4738, 104
          %s4740 = scalar_select %p4739, %s4738, 104
          %s4741 = smul.u32 64, %s4740
          %s4743 = ssub.s32 6656, %s4741
          %4744 = vsyncadd %s4730, %s4743
          %p4745 = scmp.ne.s32.totalorder 0, %s4741
          %s4746 = smul.addr %s4737, 64
          %s4747 = scalar_lea.hbm %s2, %s4746
          %s4748 = smul.u32 %s4740, 4
          %s4749 = sshll.u32 %s4748, 4
          %s4750 = sshll.u32 %s4733, 4
          %s4751 = int_to_ptr.vmem [resolvable:$true] %s4750
          %4753 = dma.vmem_to_hbm [thread:$0]  (%p4745), %s4751, %s4749, %s4747, %s4730
        $region32: #{linear_pallas.1} parent=27 // pred_fallthru
          _
      $region28: #{linear_pallas.1} parent=5 // pred_fallthru
        _
      %p4754 = scmp.le.s32.totalorder 2, %s11
      // Predicated region
      $region33: #{linear_pallas.1} parent=5 // pred_check
        %p4755 = pneg %p4754
      $region34: #{linear_pallas.1} parent=5 // pred_check_branch
        %4757 = sbr.rel (%p4755) target = $region36
      $region35: #{linear_pallas.1} parent=5 // pred_region
        %s4758 = ssub.s32 %s11, 2
        // Predicated region
        $region37: #{linear_pallas.1} parent=35 // pred_check
          %p4759 = pneg %p87
        $region38: #{linear_pallas.1} parent=35 // pred_check_branch
          %4761 = sbr.rel (%p4759) target = $region40
        $region39: #{linear_pallas.1} parent=35 // pred_region
          %s4762 = sand.u32 %s72, 1
          %s4763 = scalar_lea.sflag [#allocation3], %s4762
          %s4764 = sand.u32 %s72, 1
          %s4765 = smul.addr %s4764, 416
          %s4766 = scalar_lea.vmem [#allocation2], %s4765
          %4767 = dma.done %s4763, 6656
        $region40: #{linear_pallas.1} parent=35 // pred_fallthru
          _
      $region36: #{linear_pallas.1} parent=5 // pred_fallthru
        _
    $region6: #{linear_pallas.1} parent=1 // loop_footer
      %s15 = sadd.s32 1, %s11
    $region7: #{linear_pallas.1} parent=1 // loop_footer_branch
      %10 = sbr.rel target = $region3
    $region8: #{linear_pallas.1} parent=1 // loop_exit
      _
    %4768 = vsyncpa [#allocation3], 1
    %s4769 = scalar_lea.sflag [#allocation3], 1
    %4770 = vsyncpa %s4769, 1

</llo_original>
